<compile_context>
chip_gen: v5e
topology: v5e:2x2
jax: 0.10.0
libtpu: 0.0.40
codegen_flags: <defaults>
</compile_context>

<pallas_src>
import functools

import jax
import jax.numpy as jnp
from jax.experimental import pallas as pl
from jax.experimental.pallas import tpu as pltpu


# ---------------------------------------------------------------------------
# Fused kernel
# ---------------------------------------------------------------------------
def cnn1d_fused_kernel(x_ref,
                       w1_ref, s1_ref, t1_ref,
                       w2_ref, s2_ref, t2_ref,
                       w3_ref, b3_ref,
                       fw1_ref, fb1_ref, fw2_ref, fb2_ref,
                       fw3_ref, fb3_ref, fw4_ref, fb4_ref,
                       out_ref):
    f32 = jnp.float32
    L1, Bt, _ = x_ref.shape                       # (64, Bt, 1) position-major

    def pool2(y):
        # MaxPool1d(2): split the LEADING position dim (metadata-only reshape)
        # and take one bulk pairwise max — no per-row loads/stores.
        L, B, C = y.shape
        yr = y.reshape(L // 2, 2, B, C)
        return jnp.maximum(yr[:, 0], yr[:, 1])

    def conv3x1(x, w_ref, scale, shift):
        # Conv1d(k=3, pad=1) + affine (+bias / folded BN) + ReLU.
        # x: (L, Bt, Cin) f32; w_ref: (3, Cin, Cout).
        L, B, Cin = x.shape
        zrow = jnp.zeros((1, B, Cin), f32)
        xp = jnp.concatenate([zrow, x, zrow], axis=0)          # (L+2, Bt, Cin)
        acc = None
        for k in range(3):                                      # 3 accumulating MXU dots
            wk = w_ref[k]                                       # (Cin, Cout)
            tap = xp[k:k + L].reshape(L * B, Cin).astype(wk.dtype)
            d = jnp.dot(tap, wk, preferred_element_type=f32)
            acc = d if acc is None else acc + d
        y = acc * scale + shift if scale is not None else acc + shift
        return jnp.maximum(y, 0.0).reshape(L, B, -1)

    # ---- conv1 (Cin=1 -> VPU broadcast) + bn1 + ReLU + MaxPool(2) ----
    xv = x_ref[...]                                             # (64, Bt, 1)
    zrow = jnp.zeros((1, Bt, 1), f32)
    xp = jnp.concatenate([zrow, xv, zrow], axis=0)              # (66, Bt, 1)
    w1 = w1_ref[...]                                            # (3, 64)
    acc = None
    for k in range(3):
        tap = xp[k:k + L1].reshape(L1 * Bt, 1)                  # (64*Bt, 1)
        d = tap * w1[k:k + 1, :]                                # broadcast -> (64*Bt, 64)
        acc = d if acc is None else acc + d
    y1 = jnp.maximum(acc * s1_ref[...] + t1_ref[...], 0.0).reshape(L1, Bt, 64)
    x1 = pool2(y1)                                              # (32, Bt, 64)

    # ---- conv2 + bn2 + ReLU + MaxPool(2) ----
    x2 = pool2(conv3x1(x1, w2_ref, s2_ref[...], t2_ref[...]))  # (16, Bt, 128)

    # ---- conv3 (+bias) + ReLU + MaxPool(2) ----
    x3 = pool2(conv3x1(x2, w3_ref, None, b3_ref[...]))         # (8, Bt, 256)

    # ---- MLP head (PyTorch NCW flatten folded into fw1's layout; dropout=eval) ----
    h = None
    for l in range(8):                                          # fc1: 8 accumulating dots
        wl = fw1_ref[l]                                         # (256, 64)
        d = jnp.dot(x3[l].astype(wl.dtype), wl, preferred_element_type=f32)
        h = d if h is None else h + d
    h = jnp.tanh(h + fb1_ref[...])                              # (Bt, 64)
    h = jnp.tanh(jnp.dot(h, fw2_ref[...], preferred_element_type=f32) + fb2_ref[...])
    h = jnp.maximum(jnp.dot(h, fw3_ref[...], preferred_element_type=f32) + fb3_ref[...],
                    0.0)
    # fc4 output padded to 128 lanes at init -> lane-dense store.
    out_ref[...] = jnp.dot(h, fw4_ref[...], preferred_element_type=f32) + fb4_ref[...]


# ---------------------------------------------------------------------------
# Wrapper
# ---------------------------------------------------------------------------
_PARAM_ORDER = ("w1", "s1", "t1", "w2", "s2", "t2", "w3", "b3",
                "fw1", "fb1", "fw2", "fb2", "fw3", "fb3", "fw4", "fb4")


def _const_spec(shape):
    zeros = (0,) * len(shape)
    return pl.BlockSpec(shape, lambda b, _z=zeros: _z)   # staged once per core


def _pick_batch_tile(batch, cap=128):
    """Multiple of 8, at most `cap` (cap ~128 keeps v7x's 64 MiB VMEM happy)."""
    cap = max(8, (cap // 8) * 8)
    return min(cap, ((batch + 7) // 8) * 8)


def cnn1d_forward(x_ncl, params, num_classes=10, batch_tile=128):
    """x_ncl: (B, 1, 64) PyTorch NCW input -> (B, num_classes) logits."""
    B, cin, L = x_ncl.shape
    assert cin == 1 and L == 64, "CNN_1D expects (B, 1, 64) input"
    assert num_classes <= 128
    bt = _pick_batch_tile(B, batch_tile)
    b_pad = ((B + bt - 1) // bt) * bt                 # zero-pad batch to the tile
    grid = (b_pad // bt,)

    # NCW (B,1,64) -> position-major (64, B_pad, 1).
    x2 = x_ncl.astype(jnp.float32).reshape(B, L)
    x2 = jnp.pad(x2, ((0, b_pad - B), (0, 0)))
    x_pm = x2.T.reshape(L, b_pad, 1)

    weights = [params[k] for k in _PARAM_ORDER]
    in_specs = [pl.BlockSpec((L, bt, 1), lambda b: (0, b, 0))]
    in_specs += [_const_spec(tuple(w.shape)) for w in weights]
    out_spec = pl.BlockSpec((bt, 128), lambda b: (b, 0))

    out = pl.pallas_call(
        cnn1d_fused_kernel,
        out_shape=jax.ShapeDtypeStruct((b_pad, 128), jnp.float32),
        grid=grid,
        in_specs=in_specs,
        out_specs=out_spec,
        compiler_params=pltpu.CompilerParams(
            dimension_semantics=("parallel",),        # batch tiles across TCs (v7x)
        ),
    )(x_pm, *weights)
    return out[:B, :num_classes]


# ---------------------------------------------------------------------------
# Parameter construction (synthetic, matches shapes of CNN_1D.__init__)
# ---------------------------------------------------------------------------
def _fold_bn(bias, gamma, beta, mean, var, eps=1e-5):
    scale = gamma / jnp.sqrt(var + eps)
    shift = beta + (bias - mean) * scale
    return scale.reshape(1, -1), shift.reshape(1, -1)


def init_params(key, num_classes=10):
    ks = jax.random.split(key, 24)
    n = lambda k, shp, s: s * jax.random.normal(k, shp, jnp.float32)
    f32, bf16 = jnp.float32, jnp.bfloat16
    p = {}

    # conv1 + bn1: torch weight (64, 1, 3) -> (3, 64); small VPU path stays f32.
    w1 = n(ks[0], (64, 1, 3), 0.30)
    b1 = n(ks[1], (64,), 0.05)
    g1, be1 = 1.0 + n(ks[2], (64,), 0.10), n(ks[3], (64,), 0.05)
    m1, v1 = n(ks[4], (64,), 0.10), 1.0 + 0.2 * jnp.abs(n(ks[5], (64,), 1.0))
    p["w1"] = jnp.transpose(w1, (2, 1, 0)).reshape(3, 64)
    p["s1"], p["t1"] = _fold_bn(b1, g1, be1, m1, v1)

    # conv2 + bn2: torch weight (128, 64, 3) -> (3, 64, 128) bf16 (MXU operand).
    w2 = n(ks[6], (128, 64, 3), 0.08)
    b2 = n(ks[7], (128,), 0.05)
    g2, be2 = 1.0 + n(ks[8], (128,), 0.10), n(ks[9], (128,), 0.05)
    m2, v2 = n(ks[10], (128,), 0.10), 1.0 + 0.2 * jnp.abs(n(ks[11], (128,), 1.0))
    p["w2"] = jnp.transpose(w2, (2, 1, 0)).astype(bf16)
    p["s2"], p["t2"] = _fold_bn(b2, g2, be2, m2, v2)

    # conv3 (no BN): torch weight (256, 128, 3) -> (3, 128, 256) bf16.
    w3 = n(ks[12], (256, 128, 3), 0.06)
    b3 = n(ks[13], (256,), 0.05)
    p["w3"] = jnp.transpose(w3, (2, 1, 0)).astype(bf16)
    p["b3"] = b3.reshape(1, 256)

    # fc1: torch Linear(2048, 64) stored as W^T (2048, 64) with row index c*8+l;
    # fold the NCW flatten order into an (l, c, out) = (8, 256, 64) layout.
    fw1_t = n(ks[14], (256 * 8, 64), 0.02)
    p["fw1"] = fw1_t.reshape(256, 8, 64).transpose(1, 0, 2).astype(bf16)
    p["fb1"] = n(ks[15], (1, 64), 0.02)
    p["fw2"] = n(ks[16], (64, 32), 0.08)
    p["fb2"] = n(ks[17], (1, 32), 0.02)
    p["fw3"] = n(ks[18], (32, 16), 0.12)
    p["fb3"] = n(ks[19], (1, 16), 0.02)
    # fc4: pad logits to 128 lanes (zero columns) -> lane-dense output store.
    fw4 = n(ks[20], (16, num_classes), 0.15)
    fb4 = n(ks[21], (1, num_classes), 0.02)
    p["fw4"] = jnp.concatenate([fw4, jnp.zeros((16, 128 - num_classes), f32)], axis=1)
    p["fb4"] = jnp.concatenate([fb4, jnp.zeros((1, 128 - num_classes), f32)], axis=1)
    return p


# ---------------------------------------------------------------------------
# Pure-JAX reference (same eval-mode math, no Pallas) for a sanity check
# ---------------------------------------------------------------------------
def reference_forward(x_ncl, params, num_classes=10):
    hp = jax.lax.Precision.HIGHEST
    f32 = jnp.float32
    B, _, L = x_ncl.shape
    x = x_ncl.astype(f32).reshape(B, L).T.reshape(L, B, 1)     # position-major

    def conv_block(x, w3d, scale, shift):
        Lc = x.shape[0]
        xp = jnp.pad(x, ((1, 1), (0, 0), (0, 0)))
        y = sum(jnp.einsum("lbc,co->lbo", xp[k:k + Lc], w3d[k].astype(f32),
                           precision=hp) for k in range(3))
        y = y * scale + shift if scale is not None else y + shift
        y = jnp.maximum(y, 0.0)
        yr = y.reshape(Lc // 2, 2, *y.shape[1:])
        return jnp.maximum(yr[:, 0], yr[:, 1])                 # MaxPool1d(2)

    x = conv_block(x, params["w1"].reshape(3, 1, 64), params["s1"], params["t1"])
    x = conv_block(x, params["w2"], params["s2"], params["t2"])
    x = conv_block(x, params["w3"], None, params["b3"])        # (8, B, 256)
    h = jnp.einsum("lbc,lco->bo", x, params["fw1"].astype(f32), precision=hp)
    h = jnp.tanh(h + params["fb1"])
    h = jnp.tanh(jnp.dot(h, params["fw2"], precision=hp) + params["fb2"])
    h = jnp.maximum(jnp.dot(h, params["fw3"], precision=hp) + params["fb3"], 0.0)
    out = jnp.dot(h, params["fw4"], precision=hp) + params["fb4"]
    return out[:, :num_classes]


# ---------------------------------------------------------------------------
if __name__ == "__main__":
    key = jax.random.PRNGKey(0)
    kx, kp = jax.random.split(key)

    B, L, num_classes = 2, 64, 10        # L=64 is fixed by fc1 = Linear(256*8, 64)
    x = jax.random.normal(kx, (B, 1, L), jnp.float32)   # PyTorch NCW input (B, 1, 64)
    params = init_params(kp, num_classes)

    fwd = jax.jit(functools.partial(cnn1d_forward, num_classes=num_classes))
    out = jax.block_until_ready(fwd(x, params))

    ref = reference_forward(x, params, num_classes)
    assert out.shape == (B, num_classes)
    assert bool(jnp.all(jnp.isfinite(out)))
    max_err = float(jnp.max(jnp.abs(out - ref)))
    assert max_err < 5e-2, f"kernel vs reference mismatch: {max_err}"
    print("KERNEL_OK")
</pallas_src>

<mosaic_0001>
module attributes {stable_mosaic.version = 11 : i64} {
  func.func @cnn1d_fused_kernel(%arg0: i32, %arg1: memref<64x8x1xf32, #tpu.memory_space<vmem>>, %arg2: memref<3x64xf32, #tpu.memory_space<vmem>>, %arg3: memref<1x64xf32, #tpu.memory_space<vmem>>, %arg4: memref<1x64xf32, #tpu.memory_space<vmem>>, %arg5: memref<3x64x128xbf16, #tpu.memory_space<vmem>>, %arg6: memref<1x128xf32, #tpu.memory_space<vmem>>, %arg7: memref<1x128xf32, #tpu.memory_space<vmem>>, %arg8: memref<3x128x256xbf16, #tpu.memory_space<vmem>>, %arg9: memref<1x256xf32, #tpu.memory_space<vmem>>, %arg10: memref<8x256x64xbf16, #tpu.memory_space<vmem>>, %arg11: memref<1x64xf32, #tpu.memory_space<vmem>>, %arg12: memref<64x32xf32, #tpu.memory_space<vmem>>, %arg13: memref<1x32xf32, #tpu.memory_space<vmem>>, %arg14: memref<32x16xf32, #tpu.memory_space<vmem>>, %arg15: memref<1x16xf32, #tpu.memory_space<vmem>>, %arg16: memref<16x128xf32, #tpu.memory_space<vmem>>, %arg17: memref<1x128xf32, #tpu.memory_space<vmem>>, %arg18: memref<8x128xf32, #tpu.memory_space<vmem>>) attributes {dimension_semantics = [#tpu.dimension_semantics<parallel>], iteration_bounds = array<i64: 1>, scalar_prefetch = 0 : i64, scratch_operands = 0 : i64, tpu.core_type = #tpu.core_type<tc>, window_params = [{transform_indices = @transform_0, window_bounds = array<i64: 64, 8, 1>}, {pipeline_mode = #tpu.pipeline_mode<synchronous>, transform_indices = @transform_1, window_bounds = array<i64: 3, 64>}, {pipeline_mode = #tpu.pipeline_mode<synchronous>, transform_indices = @transform_2, window_bounds = array<i64: 1, 64>}, {pipeline_mode = #tpu.pipeline_mode<synchronous>, transform_indices = @transform_3, window_bounds = array<i64: 1, 64>}, {pipeline_mode = #tpu.pipeline_mode<synchronous>, transform_indices = @transform_4, window_bounds = array<i64: 3, 64, 128>}, {pipeline_mode = #tpu.pipeline_mode<synchronous>, transform_indices = @transform_5, window_bounds = array<i64: 1, 128>}, {pipeline_mode = #tpu.pipeline_mode<synchronous>, transform_indices = @transform_6, window_bounds = array<i64: 1, 128>}, {pipeline_mode = #tpu.pipeline_mode<synchronous>, transform_indices = @transform_7, window_bounds = array<i64: 3, 128, 256>}, {pipeline_mode = #tpu.pipeline_mode<synchronous>, transform_indices = @transform_8, window_bounds = array<i64: 1, 256>}, {pipeline_mode = #tpu.pipeline_mode<synchronous>, transform_indices = @transform_9, window_bounds = array<i64: 8, 256, 64>}, {pipeline_mode = #tpu.pipeline_mode<synchronous>, transform_indices = @transform_10, window_bounds = array<i64: 1, 64>}, {pipeline_mode = #tpu.pipeline_mode<synchronous>, transform_indices = @transform_11, window_bounds = array<i64: 64, 32>}, {pipeline_mode = #tpu.pipeline_mode<synchronous>, transform_indices = @transform_12, window_bounds = array<i64: 1, 32>}, {pipeline_mode = #tpu.pipeline_mode<synchronous>, transform_indices = @transform_13, window_bounds = array<i64: 32, 16>}, {pipeline_mode = #tpu.pipeline_mode<synchronous>, transform_indices = @transform_14, window_bounds = array<i64: 1, 16>}, {pipeline_mode = #tpu.pipeline_mode<synchronous>, transform_indices = @transform_15, window_bounds = array<i64: 16, 128>}, {pipeline_mode = #tpu.pipeline_mode<synchronous>, transform_indices = @transform_16, window_bounds = array<i64: 1, 128>}, {transform_indices = @transform_17, window_bounds = array<i64: 8, 128>}]} {
    %c0 = arith.constant 0 : index
    %c0_0 = arith.constant 0 : index
    %c0_1 = arith.constant 0 : index
    %0 = vector.load %arg1[%c0, %c0_0, %c0_1] : memref<64x8x1xf32, #tpu.memory_space<vmem>>, vector<64x8x1xf32>
    %cst = arith.constant 0.000000e+00 : f32
    %1 = vector.broadcast %cst : f32 to vector<1x8x1xf32>
    %2 = tpu.concatenate %1, %0, %1 in 0 : vector<1x8x1xf32>, vector<64x8x1xf32>, vector<1x8x1xf32> -> vector<66x8x1xf32>
    %c0_2 = arith.constant 0 : index
    %c0_3 = arith.constant 0 : index
    %3 = vector.load %arg2[%c0_2, %c0_3] : memref<3x64xf32, #tpu.memory_space<vmem>>, vector<3x64xf32>
    %4 = vector.extract_strided_slice %2 {offsets = [0, 0, 0], sizes = [64, 8, 1], strides = [1, 1, 1]} : vector<66x8x1xf32> to vector<64x8x1xf32>
    %5 = vector.shape_cast %4 : vector<64x8x1xf32> to vector<512x1xf32>
    %6 = vector.extract_strided_slice %3 {offsets = [0, 0], sizes = [1, 64], strides = [1, 1]} : vector<3x64xf32> to vector<1x64xf32>
    %7 = vector.broadcast %5 : vector<512x1xf32> to vector<512x64xf32>
    %8 = vector.broadcast %6 : vector<1x64xf32> to vector<512x64xf32>
    %9 = arith.mulf %7, %8 : vector<512x64xf32>
    %10 = vector.extract_strided_slice %2 {offsets = [1, 0, 0], sizes = [64, 8, 1], strides = [1, 1, 1]} : vector<66x8x1xf32> to vector<64x8x1xf32>
    %11 = vector.shape_cast %10 : vector<64x8x1xf32> to vector<512x1xf32>
    %12 = vector.extract_strided_slice %3 {offsets = [1, 0], sizes = [1, 64], strides = [1, 1]} : vector<3x64xf32> to vector<1x64xf32>
    %13 = vector.broadcast %11 : vector<512x1xf32> to vector<512x64xf32>
    %14 = vector.broadcast %12 : vector<1x64xf32> to vector<512x64xf32>
    %15 = arith.mulf %13, %14 : vector<512x64xf32>
    %16 = arith.addf %9, %15 : vector<512x64xf32>
    %17 = vector.extract_strided_slice %2 {offsets = [2, 0, 0], sizes = [64, 8, 1], strides = [1, 1, 1]} : vector<66x8x1xf32> to vector<64x8x1xf32>
    %18 = vector.shape_cast %17 : vector<64x8x1xf32> to vector<512x1xf32>
    %19 = vector.extract_strided_slice %3 {offsets = [2, 0], sizes = [1, 64], strides = [1, 1]} : vector<3x64xf32> to vector<1x64xf32>
    %20 = vector.broadcast %18 : vector<512x1xf32> to vector<512x64xf32>
    %21 = vector.broadcast %19 : vector<1x64xf32> to vector<512x64xf32>
    %22 = arith.mulf %20, %21 : vector<512x64xf32>
    %23 = arith.addf %16, %22 : vector<512x64xf32>
    %c0_4 = arith.constant 0 : index
    %c0_5 = arith.constant 0 : index
    %24 = vector.load %arg3[%c0_4, %c0_5] : memref<1x64xf32, #tpu.memory_space<vmem>>, vector<1x64xf32>
    %25 = vector.broadcast %24 : vector<1x64xf32> to vector<512x64xf32>
    %26 = arith.mulf %23, %25 : vector<512x64xf32>
    %c0_6 = arith.constant 0 : index
    %c0_7 = arith.constant 0 : index
    %27 = vector.load %arg4[%c0_6, %c0_7] : memref<1x64xf32, #tpu.memory_space<vmem>>, vector<1x64xf32>
    %28 = vector.broadcast %27 : vector<1x64xf32> to vector<512x64xf32>
    %29 = arith.addf %26, %28 : vector<512x64xf32>
    %cst_8 = arith.constant 0.000000e+00 : f32
    %30 = vector.broadcast %cst_8 : f32 to vector<512x64xf32>
    %31 = arith.maximumf %29, %30 : vector<512x64xf32>
    %32 = vector.shape_cast %31 : vector<512x64xf32> to vector<64x8x64xf32>
    %33 = vector.shape_cast %32 : vector<64x8x64xf32> to vector<32x2x8x64xf32>
    %34 = vector.extract_strided_slice %33 {offsets = [0, 0, 0, 0], sizes = [32, 1, 8, 64], strides = [1, 1, 1, 1]} : vector<32x2x8x64xf32> to vector<32x1x8x64xf32>
    %35 = vector.shape_cast %34 : vector<32x1x8x64xf32> to vector<32x8x64xf32>
    %36 = vector.extract_strided_slice %33 {offsets = [0, 1, 0, 0], sizes = [32, 1, 8, 64], strides = [1, 1, 1, 1]} : vector<32x2x8x64xf32> to vector<32x1x8x64xf32>
    %37 = vector.shape_cast %36 : vector<32x1x8x64xf32> to vector<32x8x64xf32>
    %38 = arith.maximumf %35, %37 : vector<32x8x64xf32>
    %c0_9 = arith.constant 0 : index
    %c0_10 = arith.constant 0 : index
    %39 = vector.load %arg6[%c0_9, %c0_10] : memref<1x128xf32, #tpu.memory_space<vmem>>, vector<1x128xf32>
    %c0_11 = arith.constant 0 : index
    %c0_12 = arith.constant 0 : index
    %40 = vector.load %arg7[%c0_11, %c0_12] : memref<1x128xf32, #tpu.memory_space<vmem>>, vector<1x128xf32>
    %cst_13 = arith.constant 0.000000e+00 : f32
    %41 = vector.broadcast %cst_13 : f32 to vector<1x8x64xf32>
    %42 = tpu.concatenate %41, %38, %41 in 0 : vector<1x8x64xf32>, vector<32x8x64xf32>, vector<1x8x64xf32> -> vector<34x8x64xf32>
    %c0_14 = arith.constant 0 : index
    %c0_15 = arith.constant 0 : index
    %c0_16 = arith.constant 0 : index
    %43 = vector.load %arg5[%c0_14, %c0_15, %c0_16] : memref<3x64x128xbf16, #tpu.memory_space<vmem>>, vector<1x64x128xbf16>
    %44 = vector.shape_cast %43 : vector<1x64x128xbf16> to vector<64x128xbf16>
    %45 = vector.extract_strided_slice %42 {offsets = [0, 0, 0], sizes = [32, 8, 64], strides = [1, 1, 1]} : vector<34x8x64xf32> to vector<32x8x64xf32>
    %46 = vector.shape_cast %45 : vector<32x8x64xf32> to vector<256x64xf32>
    %47 = arith.truncf %46 : vector<256x64xf32> to vector<256x64xbf16>
    %cst_17 = arith.constant dense<0.000000e+00> : vector<256x128xf32>
    %48 = tpu.matmul %47, %44, %cst_17 {dimension_numbers = #tpu.dot_dimension_numbers<[1], [0], [0], [1], [0, 0, 1, 1], [], []>} : vector<256x64xbf16>, vector<64x128xbf16>, vector<256x128xf32> -> vector<256x128xf32>
    %c1 = arith.constant 1 : index
    %c0_18 = arith.constant 0 : index
    %c0_19 = arith.constant 0 : index
    %49 = vector.load %arg5[%c1, %c0_18, %c0_19] : memref<3x64x128xbf16, #tpu.memory_space<vmem>>, vector<1x64x128xbf16>
    %50 = vector.shape_cast %49 : vector<1x64x128xbf16> to vector<64x128xbf16>
    %51 = vector.extract_strided_slice %42 {offsets = [1, 0, 0], sizes = [32, 8, 64], strides = [1, 1, 1]} : vector<34x8x64xf32> to vector<32x8x64xf32>
    %52 = vector.shape_cast %51 : vector<32x8x64xf32> to vector<256x64xf32>
    %53 = arith.truncf %52 : vector<256x64xf32> to vector<256x64xbf16>
    %cst_20 = arith.constant dense<0.000000e+00> : vector<256x128xf32>
    %54 = tpu.matmul %53, %50, %cst_20 {dimension_numbers = #tpu.dot_dimension_numbers<[1], [0], [0], [1], [0, 0, 1, 1], [], []>} : vector<256x64xbf16>, vector<64x128xbf16>, vector<256x128xf32> -> vector<256x128xf32>
    %55 = arith.addf %48, %54 : vector<256x128xf32>
    %c2 = arith.constant 2 : index
    %c0_21 = arith.constant 0 : index
    %c0_22 = arith.constant 0 : index
    %56 = vector.load %arg5[%c2, %c0_21, %c0_22] : memref<3x64x128xbf16, #tpu.memory_space<vmem>>, vector<1x64x128xbf16>
    %57 = vector.shape_cast %56 : vector<1x64x128xbf16> to vector<64x128xbf16>
    %58 = vector.extract_strided_slice %42 {offsets = [2, 0, 0], sizes = [32, 8, 64], strides = [1, 1, 1]} : vector<34x8x64xf32> to vector<32x8x64xf32>
    %59 = vector.shape_cast %58 : vector<32x8x64xf32> to vector<256x64xf32>
    %60 = arith.truncf %59 : vector<256x64xf32> to vector<256x64xbf16>
    %cst_23 = arith.constant dense<0.000000e+00> : vector<256x128xf32>
    %61 = tpu.matmul %60, %57, %cst_23 {dimension_numbers = #tpu.dot_dimension_numbers<[1], [0], [0], [1], [0, 0, 1, 1], [], []>} : vector<256x64xbf16>, vector<64x128xbf16>, vector<256x128xf32> -> vector<256x128xf32>
    %62 = arith.addf %55, %61 : vector<256x128xf32>
    %63 = vector.broadcast %39 : vector<1x128xf32> to vector<256x128xf32>
    %64 = arith.mulf %62, %63 : vector<256x128xf32>
    %65 = vector.broadcast %40 : vector<1x128xf32> to vector<256x128xf32>
    %66 = arith.addf %64, %65 : vector<256x128xf32>
    %cst_24 = arith.constant 0.000000e+00 : f32
    %67 = vector.broadcast %cst_24 : f32 to vector<256x128xf32>
    %68 = arith.maximumf %66, %67 : vector<256x128xf32>
    %69 = vector.shape_cast %68 : vector<256x128xf32> to vector<32x8x128xf32>
    %70 = vector.shape_cast %69 : vector<32x8x128xf32> to vector<16x2x8x128xf32>
    %71 = vector.extract_strided_slice %70 {offsets = [0, 0, 0, 0], sizes = [16, 1, 8, 128], strides = [1, 1, 1, 1]} : vector<16x2x8x128xf32> to vector<16x1x8x128xf32>
    %72 = vector.shape_cast %71 : vector<16x1x8x128xf32> to vector<16x8x128xf32>
    %73 = vector.extract_strided_slice %70 {offsets = [0, 1, 0, 0], sizes = [16, 1, 8, 128], strides = [1, 1, 1, 1]} : vector<16x2x8x128xf32> to vector<16x1x8x128xf32>
    %74 = vector.shape_cast %73 : vector<16x1x8x128xf32> to vector<16x8x128xf32>
    %75 = arith.maximumf %72, %74 : vector<16x8x128xf32>
    %c0_25 = arith.constant 0 : index
    %c0_26 = arith.constant 0 : index
    %76 = vector.load %arg9[%c0_25, %c0_26] : memref<1x256xf32, #tpu.memory_space<vmem>>, vector<1x256xf32>
    %cst_27 = arith.constant 0.000000e+00 : f32
    %77 = vector.broadcast %cst_27 : f32 to vector<1x8x128xf32>
    %78 = tpu.concatenate %77, %75, %77 in 0 : vector<1x8x128xf32>, vector<16x8x128xf32>, vector<1x8x128xf32> -> vector<18x8x128xf32>
    %c0_28 = arith.constant 0 : index
    %c0_29 = arith.constant 0 : index
    %c0_30 = arith.constant 0 : index
    %79 = vector.load %arg8[%c0_28, %c0_29, %c0_30] : memref<3x128x256xbf16, #tpu.memory_space<vmem>>, vector<1x128x256xbf16>
    %80 = vector.shape_cast %79 : vector<1x128x256xbf16> to vector<128x256xbf16>
    %81 = vector.extract_strided_slice %78 {offsets = [0, 0, 0], sizes = [16, 8, 128], strides = [1, 1, 1]} : vector<18x8x128xf32> to vector<16x8x128xf32>
    %82 = vector.shape_cast %81 : vector<16x8x128xf32> to vector<128x128xf32>
    %83 = arith.truncf %82 : vector<128x128xf32> to vector<128x128xbf16>
    %cst_31 = arith.constant dense<0.000000e+00> : vector<128x256xf32>
    %84 = tpu.matmul %83, %80, %cst_31 {dimension_numbers = #tpu.dot_dimension_numbers<[1], [0], [0], [1], [0, 0, 1, 1], [], []>} : vector<128x128xbf16>, vector<128x256xbf16>, vector<128x256xf32> -> vector<128x256xf32>
    %c1_32 = arith.constant 1 : index
    %c0_33 = arith.constant 0 : index
    %c0_34 = arith.constant 0 : index
    %85 = vector.load %arg8[%c1_32, %c0_33, %c0_34] : memref<3x128x256xbf16, #tpu.memory_space<vmem>>, vector<1x128x256xbf16>
    %86 = vector.shape_cast %85 : vector<1x128x256xbf16> to vector<128x256xbf16>
    %87 = vector.extract_strided_slice %78 {offsets = [1, 0, 0], sizes = [16, 8, 128], strides = [1, 1, 1]} : vector<18x8x128xf32> to vector<16x8x128xf32>
    %88 = vector.shape_cast %87 : vector<16x8x128xf32> to vector<128x128xf32>
    %89 = arith.truncf %88 : vector<128x128xf32> to vector<128x128xbf16>
    %cst_35 = arith.constant dense<0.000000e+00> : vector<128x256xf32>
    %90 = tpu.matmul %89, %86, %cst_35 {dimension_numbers = #tpu.dot_dimension_numbers<[1], [0], [0], [1], [0, 0, 1, 1], [], []>} : vector<128x128xbf16>, vector<128x256xbf16>, vector<128x256xf32> -> vector<128x256xf32>
    %91 = arith.addf %84, %90 : vector<128x256xf32>
    %c2_36 = arith.constant 2 : index
    %c0_37 = arith.constant 0 : index
    %c0_38 = arith.constant 0 : index
    %92 = vector.load %arg8[%c2_36, %c0_37, %c0_38] : memref<3x128x256xbf16, #tpu.memory_space<vmem>>, vector<1x128x256xbf16>
    %93 = vector.shape_cast %92 : vector<1x128x256xbf16> to vector<128x256xbf16>
    %94 = vector.extract_strided_slice %78 {offsets = [2, 0, 0], sizes = [16, 8, 128], strides = [1, 1, 1]} : vector<18x8x128xf32> to vector<16x8x128xf32>
    %95 = vector.shape_cast %94 : vector<16x8x128xf32> to vector<128x128xf32>
    %96 = arith.truncf %95 : vector<128x128xf32> to vector<128x128xbf16>
    %cst_39 = arith.constant dense<0.000000e+00> : vector<128x256xf32>
    %97 = tpu.matmul %96, %93, %cst_39 {dimension_numbers = #tpu.dot_dimension_numbers<[1], [0], [0], [1], [0, 0, 1, 1], [], []>} : vector<128x128xbf16>, vector<128x256xbf16>, vector<128x256xf32> -> vector<128x256xf32>
    %98 = arith.addf %91, %97 : vector<128x256xf32>
    %99 = vector.broadcast %76 : vector<1x256xf32> to vector<128x256xf32>
    %100 = arith.addf %98, %99 : vector<128x256xf32>
    %cst_40 = arith.constant 0.000000e+00 : f32
    %101 = vector.broadcast %cst_40 : f32 to vector<128x256xf32>
    %102 = arith.maximumf %100, %101 : vector<128x256xf32>
    %103 = vector.shape_cast %102 : vector<128x256xf32> to vector<16x8x256xf32>
    %104 = vector.shape_cast %103 : vector<16x8x256xf32> to vector<8x2x8x256xf32>
    %105 = vector.extract_strided_slice %104 {offsets = [0, 0, 0, 0], sizes = [8, 1, 8, 256], strides = [1, 1, 1, 1]} : vector<8x2x8x256xf32> to vector<8x1x8x256xf32>
    %106 = vector.shape_cast %105 : vector<8x1x8x256xf32> to vector<8x8x256xf32>
    %107 = vector.extract_strided_slice %104 {offsets = [0, 1, 0, 0], sizes = [8, 1, 8, 256], strides = [1, 1, 1, 1]} : vector<8x2x8x256xf32> to vector<8x1x8x256xf32>
    %108 = vector.shape_cast %107 : vector<8x1x8x256xf32> to vector<8x8x256xf32>
    %109 = arith.maximumf %106, %108 : vector<8x8x256xf32>
    %c0_41 = arith.constant 0 : index
    %c0_42 = arith.constant 0 : index
    %c0_43 = arith.constant 0 : index
    %110 = vector.load %arg10[%c0_41, %c0_42, %c0_43] : memref<8x256x64xbf16, #tpu.memory_space<vmem>>, vector<1x256x64xbf16>
    %111 = vector.shape_cast %110 : vector<1x256x64xbf16> to vector<256x64xbf16>
    %112 = vector.extract_strided_slice %109 {offsets = [0, 0, 0], sizes = [1, 8, 256], strides = [1, 1, 1]} : vector<8x8x256xf32> to vector<1x8x256xf32>
    %113 = vector.shape_cast %112 : vector<1x8x256xf32> to vector<8x256xf32>
    %114 = arith.truncf %113 : vector<8x256xf32> to vector<8x256xbf16>
    %cst_44 = arith.constant dense<0.000000e+00> : vector<8x64xf32>
    %115 = tpu.matmul %114, %111, %cst_44 {dimension_numbers = #tpu.dot_dimension_numbers<[1], [0], [0], [1], [0, 0, 1, 1], [], []>} : vector<8x256xbf16>, vector<256x64xbf16>, vector<8x64xf32> -> vector<8x64xf32>
    %c1_45 = arith.constant 1 : index
    %c0_46 = arith.constant 0 : index
    %c0_47 = arith.constant 0 : index
    %116 = vector.load %arg10[%c1_45, %c0_46, %c0_47] : memref<8x256x64xbf16, #tpu.memory_space<vmem>>, vector<1x256x64xbf16>
    %117 = vector.shape_cast %116 : vector<1x256x64xbf16> to vector<256x64xbf16>
    %118 = vector.extract_strided_slice %109 {offsets = [1, 0, 0], sizes = [1, 8, 256], strides = [1, 1, 1]} : vector<8x8x256xf32> to vector<1x8x256xf32>
    %119 = vector.shape_cast %118 : vector<1x8x256xf32> to vector<8x256xf32>
    %120 = arith.truncf %119 : vector<8x256xf32> to vector<8x256xbf16>
    %cst_48 = arith.constant dense<0.000000e+00> : vector<8x64xf32>
    %121 = tpu.matmul %120, %117, %cst_48 {dimension_numbers = #tpu.dot_dimension_numbers<[1], [0], [0], [1], [0, 0, 1, 1], [], []>} : vector<8x256xbf16>, vector<256x64xbf16>, vector<8x64xf32> -> vector<8x64xf32>
    %122 = arith.addf %115, %121 : vector<8x64xf32>
    %c2_49 = arith.constant 2 : index
    %c0_50 = arith.constant 0 : index
    %c0_51 = arith.constant 0 : index
    %123 = vector.load %arg10[%c2_49, %c0_50, %c0_51] : memref<8x256x64xbf16, #tpu.memory_space<vmem>>, vector<1x256x64xbf16>
    %124 = vector.shape_cast %123 : vector<1x256x64xbf16> to vector<256x64xbf16>
    %125 = vector.extract_strided_slice %109 {offsets = [2, 0, 0], sizes = [1, 8, 256], strides = [1, 1, 1]} : vector<8x8x256xf32> to vector<1x8x256xf32>
    %126 = vector.shape_cast %125 : vector<1x8x256xf32> to vector<8x256xf32>
    %127 = arith.truncf %126 : vector<8x256xf32> to vector<8x256xbf16>
    %cst_52 = arith.constant dense<0.000000e+00> : vector<8x64xf32>
    %128 = tpu.matmul %127, %124, %cst_52 {dimension_numbers = #tpu.dot_dimension_numbers<[1], [0], [0], [1], [0, 0, 1, 1], [], []>} : vector<8x256xbf16>, vector<256x64xbf16>, vector<8x64xf32> -> vector<8x64xf32>
    %129 = arith.addf %122, %128 : vector<8x64xf32>
    %c3 = arith.constant 3 : index
    %c0_53 = arith.constant 0 : index
    %c0_54 = arith.constant 0 : index
    %130 = vector.load %arg10[%c3, %c0_53, %c0_54] : memref<8x256x64xbf16, #tpu.memory_space<vmem>>, vector<1x256x64xbf16>
    %131 = vector.shape_cast %130 : vector<1x256x64xbf16> to vector<256x64xbf16>
    %132 = vector.extract_strided_slice %109 {offsets = [3, 0, 0], sizes = [1, 8, 256], strides = [1, 1, 1]} : vector<8x8x256xf32> to vector<1x8x256xf32>
    %133 = vector.shape_cast %132 : vector<1x8x256xf32> to vector<8x256xf32>
    %134 = arith.truncf %133 : vector<8x256xf32> to vector<8x256xbf16>
    %cst_55 = arith.constant dense<0.000000e+00> : vector<8x64xf32>
    %135 = tpu.matmul %134, %131, %cst_55 {dimension_numbers = #tpu.dot_dimension_numbers<[1], [0], [0], [1], [0, 0, 1, 1], [], []>} : vector<8x256xbf16>, vector<256x64xbf16>, vector<8x64xf32> -> vector<8x64xf32>
    %136 = arith.addf %129, %135 : vector<8x64xf32>
    %c4 = arith.constant 4 : index
    %c0_56 = arith.constant 0 : index
    %c0_57 = arith.constant 0 : index
    %137 = vector.load %arg10[%c4, %c0_56, %c0_57] : memref<8x256x64xbf16, #tpu.memory_space<vmem>>, vector<1x256x64xbf16>
    %138 = vector.shape_cast %137 : vector<1x256x64xbf16> to vector<256x64xbf16>
    %139 = vector.extract_strided_slice %109 {offsets = [4, 0, 0], sizes = [1, 8, 256], strides = [1, 1, 1]} : vector<8x8x256xf32> to vector<1x8x256xf32>
    %140 = vector.shape_cast %139 : vector<1x8x256xf32> to vector<8x256xf32>
    %141 = arith.truncf %140 : vector<8x256xf32> to vector<8x256xbf16>
    %cst_58 = arith.constant dense<0.000000e+00> : vector<8x64xf32>
    %142 = tpu.matmul %141, %138, %cst_58 {dimension_numbers = #tpu.dot_dimension_numbers<[1], [0], [0], [1], [0, 0, 1, 1], [], []>} : vector<8x256xbf16>, vector<256x64xbf16>, vector<8x64xf32> -> vector<8x64xf32>
    %143 = arith.addf %136, %142 : vector<8x64xf32>
    %c5 = arith.constant 5 : index
    %c0_59 = arith.constant 0 : index
    %c0_60 = arith.constant 0 : index
    %144 = vector.load %arg10[%c5, %c0_59, %c0_60] : memref<8x256x64xbf16, #tpu.memory_space<vmem>>, vector<1x256x64xbf16>
    %145 = vector.shape_cast %144 : vector<1x256x64xbf16> to vector<256x64xbf16>
    %146 = vector.extract_strided_slice %109 {offsets = [5, 0, 0], sizes = [1, 8, 256], strides = [1, 1, 1]} : vector<8x8x256xf32> to vector<1x8x256xf32>
    %147 = vector.shape_cast %146 : vector<1x8x256xf32> to vector<8x256xf32>
    %148 = arith.truncf %147 : vector<8x256xf32> to vector<8x256xbf16>
    %cst_61 = arith.constant dense<0.000000e+00> : vector<8x64xf32>
    %149 = tpu.matmul %148, %145, %cst_61 {dimension_numbers = #tpu.dot_dimension_numbers<[1], [0], [0], [1], [0, 0, 1, 1], [], []>} : vector<8x256xbf16>, vector<256x64xbf16>, vector<8x64xf32> -> vector<8x64xf32>
    %150 = arith.addf %143, %149 : vector<8x64xf32>
    %c6 = arith.constant 6 : index
    %c0_62 = arith.constant 0 : index
    %c0_63 = arith.constant 0 : index
    %151 = vector.load %arg10[%c6, %c0_62, %c0_63] : memref<8x256x64xbf16, #tpu.memory_space<vmem>>, vector<1x256x64xbf16>
    %152 = vector.shape_cast %151 : vector<1x256x64xbf16> to vector<256x64xbf16>
    %153 = vector.extract_strided_slice %109 {offsets = [6, 0, 0], sizes = [1, 8, 256], strides = [1, 1, 1]} : vector<8x8x256xf32> to vector<1x8x256xf32>
    %154 = vector.shape_cast %153 : vector<1x8x256xf32> to vector<8x256xf32>
    %155 = arith.truncf %154 : vector<8x256xf32> to vector<8x256xbf16>
    %cst_64 = arith.constant dense<0.000000e+00> : vector<8x64xf32>
    %156 = tpu.matmul %155, %152, %cst_64 {dimension_numbers = #tpu.dot_dimension_numbers<[1], [0], [0], [1], [0, 0, 1, 1], [], []>} : vector<8x256xbf16>, vector<256x64xbf16>, vector<8x64xf32> -> vector<8x64xf32>
    %157 = arith.addf %150, %156 : vector<8x64xf32>
    %c7 = arith.constant 7 : index
    %c0_65 = arith.constant 0 : index
    %c0_66 = arith.constant 0 : index
    %158 = vector.load %arg10[%c7, %c0_65, %c0_66] : memref<8x256x64xbf16, #tpu.memory_space<vmem>>, vector<1x256x64xbf16>
    %159 = vector.shape_cast %158 : vector<1x256x64xbf16> to vector<256x64xbf16>
    %160 = vector.extract_strided_slice %109 {offsets = [7, 0, 0], sizes = [1, 8, 256], strides = [1, 1, 1]} : vector<8x8x256xf32> to vector<1x8x256xf32>
    %161 = vector.shape_cast %160 : vector<1x8x256xf32> to vector<8x256xf32>
    %162 = arith.truncf %161 : vector<8x256xf32> to vector<8x256xbf16>
    %cst_67 = arith.constant dense<0.000000e+00> : vector<8x64xf32>
    %163 = tpu.matmul %162, %159, %cst_67 {dimension_numbers = #tpu.dot_dimension_numbers<[1], [0], [0], [1], [0, 0, 1, 1], [], []>} : vector<8x256xbf16>, vector<256x64xbf16>, vector<8x64xf32> -> vector<8x64xf32>
    %164 = arith.addf %157, %163 : vector<8x64xf32>
    %c0_68 = arith.constant 0 : index
    %c0_69 = arith.constant 0 : index
    %165 = vector.load %arg11[%c0_68, %c0_69] : memref<1x64xf32, #tpu.memory_space<vmem>>, vector<1x64xf32>
    %166 = vector.broadcast %165 : vector<1x64xf32> to vector<8x64xf32>
    %167 = arith.addf %164, %166 : vector<8x64xf32>
    %168 = math.tanh %167 : vector<8x64xf32>
    %c0_70 = arith.constant 0 : index
    %c0_71 = arith.constant 0 : index
    %169 = vector.load %arg12[%c0_70, %c0_71] : memref<64x32xf32, #tpu.memory_space<vmem>>, vector<64x32xf32>
    %cst_72 = arith.constant dense<0.000000e+00> : vector<8x32xf32>
    %170 = tpu.matmul %168, %169, %cst_72 {dimension_numbers = #tpu.dot_dimension_numbers<[1], [0], [0], [1], [0, 0, 1, 1], [], []>} : vector<8x64xf32>, vector<64x32xf32>, vector<8x32xf32> -> vector<8x32xf32>
    %c0_73 = arith.constant 0 : index
    %c0_74 = arith.constant 0 : index
    %171 = vector.load %arg13[%c0_73, %c0_74] : memref<1x32xf32, #tpu.memory_space<vmem>>, vector<1x32xf32>
    %172 = vector.broadcast %171 : vector<1x32xf32> to vector<8x32xf32>
    %173 = arith.addf %170, %172 : vector<8x32xf32>
    %174 = math.tanh %173 : vector<8x32xf32>
    %c0_75 = arith.constant 0 : index
    %c0_76 = arith.constant 0 : index
    %175 = vector.load %arg14[%c0_75, %c0_76] : memref<32x16xf32, #tpu.memory_space<vmem>>, vector<32x16xf32>
    %cst_77 = arith.constant dense<0.000000e+00> : vector<8x16xf32>
    %176 = tpu.matmul %174, %175, %cst_77 {dimension_numbers = #tpu.dot_dimension_numbers<[1], [0], [0], [1], [0, 0, 1, 1], [], []>} : vector<8x32xf32>, vector<32x16xf32>, vector<8x16xf32> -> vector<8x16xf32>
    %c0_78 = arith.constant 0 : index
    %c0_79 = arith.constant 0 : index
    %177 = vector.load %arg15[%c0_78, %c0_79] : memref<1x16xf32, #tpu.memory_space<vmem>>, vector<1x16xf32>
    %178 = vector.broadcast %177 : vector<1x16xf32> to vector<8x16xf32>
    %179 = arith.addf %176, %178 : vector<8x16xf32>
    %cst_80 = arith.constant 0.000000e+00 : f32
    %180 = vector.broadcast %cst_80 : f32 to vector<8x16xf32>
    %181 = arith.maximumf %179, %180 : vector<8x16xf32>
    %c0_81 = arith.constant 0 : index
    %c0_82 = arith.constant 0 : index
    %182 = vector.load %arg16[%c0_81, %c0_82] : memref<16x128xf32, #tpu.memory_space<vmem>>, vector<16x128xf32>
    %cst_83 = arith.constant dense<0.000000e+00> : vector<8x128xf32>
    %183 = tpu.matmul %181, %182, %cst_83 {dimension_numbers = #tpu.dot_dimension_numbers<[1], [0], [0], [1], [0, 0, 1, 1], [], []>} : vector<8x16xf32>, vector<16x128xf32>, vector<8x128xf32> -> vector<8x128xf32>
    %c0_84 = arith.constant 0 : index
    %c0_85 = arith.constant 0 : index
    %184 = vector.load %arg17[%c0_84, %c0_85] : memref<1x128xf32, #tpu.memory_space<vmem>>, vector<1x128xf32>
    %185 = vector.broadcast %184 : vector<1x128xf32> to vector<8x128xf32>
    %186 = arith.addf %183, %185 : vector<8x128xf32>
    %c0_86 = arith.constant 0 : index
    %c0_87 = arith.constant 0 : index
    %187 = vector.load %arg18[%c0_86, %c0_87] : memref<8x128xf32, #tpu.memory_space<vmem>>, vector<8x128xf32>
    tpu.vector_store %arg18[%c0_86, %c0_87], %186 {strides = array<i32>} : memref<8x128xf32, #tpu.memory_space<vmem>>, vector<8x128xf32>,
    return
  }
  func.func @transform_0(%arg0: i32) -> (i32, i32, i32) {
    %c0_i32 = arith.constant 0 : i32
    %c0_i32_0 = arith.constant 0 : i32
    %c0_i32_1 = arith.constant 0 : i32
    return %c0_i32, %arg0, %c0_i32_0 : i32, i32, i32
  }
  func.func @transform_1(%arg0: i32) -> (i32, i32) {
    %c0_i32 = arith.constant 0 : i32
    %c0_i32_0 = arith.constant 0 : i32
    %c0_i32_1 = arith.constant 0 : i32
    return %c0_i32, %c0_i32_0 : i32, i32
  }
  func.func @transform_2(%arg0: i32) -> (i32, i32) {
    %c0_i32 = arith.constant 0 : i32
    %c0_i32_0 = arith.constant 0 : i32
    %c0_i32_1 = arith.constant 0 : i32
    return %c0_i32, %c0_i32_0 : i32, i32
  }
  func.func @transform_3(%arg0: i32) -> (i32, i32) {
    %c0_i32 = arith.constant 0 : i32
    %c0_i32_0 = arith.constant 0 : i32
    %c0_i32_1 = arith.constant 0 : i32
    return %c0_i32, %c0_i32_0 : i32, i32
  }
  func.func @transform_4(%arg0: i32) -> (i32, i32, i32) {
    %c0_i32 = arith.constant 0 : i32
    %c0_i32_0 = arith.constant 0 : i32
    %c0_i32_1 = arith.constant 0 : i32
    %c0_i32_2 = arith.constant 0 : i32
    return %c0_i32, %c0_i32_0, %c0_i32_1 : i32, i32, i32
  }
  func.func @transform_5(%arg0: i32) -> (i32, i32) {
    %c0_i32 = arith.constant 0 : i32
    %c0_i32_0 = arith.constant 0 : i32
    %c0_i32_1 = arith.constant 0 : i32
    return %c0_i32, %c0_i32_0 : i32, i32
  }
  func.func @transform_6(%arg0: i32) -> (i32, i32) {
    %c0_i32 = arith.constant 0 : i32
    %c0_i32_0 = arith.constant 0 : i32
    %c0_i32_1 = arith.constant 0 : i32
    return %c0_i32, %c0_i32_0 : i32, i32
  }
  func.func @transform_7(%arg0: i32) -> (i32, i32, i32) {
    %c0_i32 = arith.constant 0 : i32
    %c0_i32_0 = arith.constant 0 : i32
    %c0_i32_1 = arith.constant 0 : i32
    %c0_i32_2 = arith.constant 0 : i32
    return %c0_i32, %c0_i32_0, %c0_i32_1 : i32, i32, i32
  }
  func.func @transform_8(%arg0: i32) -> (i32, i32) {
    %c0_i32 = arith.constant 0 : i32
    %c0_i32_0 = arith.constant 0 : i32
    %c0_i32_1 = arith.constant 0 : i32
    return %c0_i32, %c0_i32_0 : i32, i32
  }
  func.func @transform_9(%arg0: i32) -> (i32, i32, i32) {
    %c0_i32 = arith.constant 0 : i32
    %c0_i32_0 = arith.constant 0 : i32
    %c0_i32_1 = arith.constant 0 : i32
    %c0_i32_2 = arith.constant 0 : i32
    return %c0_i32, %c0_i32_0, %c0_i32_1 : i32, i32, i32
  }
  func.func @transform_10(%arg0: i32) -> (i32, i32) {
    %c0_i32 = arith.constant 0 : i32
    %c0_i32_0 = arith.constant 0 : i32
    %c0_i32_1 = arith.constant 0 : i32
    return %c0_i32, %c0_i32_0 : i32, i32
  }
  func.func @transform_11(%arg0: i32) -> (i32, i32) {
    %c0_i32 = arith.constant 0 : i32
    %c0_i32_0 = arith.constant 0 : i32
    %c0_i32_1 = arith.constant 0 : i32
    return %c0_i32, %c0_i32_0 : i32, i32
  }
  func.func @transform_12(%arg0: i32) -> (i32, i32) {
    %c0_i32 = arith.constant 0 : i32
    %c0_i32_0 = arith.constant 0 : i32
    %c0_i32_1 = arith.constant 0 : i32
    return %c0_i32, %c0_i32_0 : i32, i32
  }
  func.func @transform_13(%arg0: i32) -> (i32, i32) {
    %c0_i32 = arith.constant 0 : i32
    %c0_i32_0 = arith.constant 0 : i32
    %c0_i32_1 = arith.constant 0 : i32
    return %c0_i32, %c0_i32_0 : i32, i32
  }
  func.func @transform_14(%arg0: i32) -> (i32, i32) {
    %c0_i32 = arith.constant 0 : i32
    %c0_i32_0 = arith.constant 0 : i32
    %c0_i32_1 = arith.constant 0 : i32
    return %c0_i32, %c0_i32_0 : i32, i32
  }
  func.func @transform_15(%arg0: i32) -> (i32, i32) {
    %c0_i32 = arith.constant 0 : i32
    %c0_i32_0 = arith.constant 0 : i32
    %c0_i32_1 = arith.constant 0 : i32
    return %c0_i32, %c0_i32_0 : i32, i32
  }
  func.func @transform_16(%arg0: i32) -> (i32, i32) {
    %c0_i32 = arith.constant 0 : i32
    %c0_i32_0 = arith.constant 0 : i32
    %c0_i32_1 = arith.constant 0 : i32
    return %c0_i32, %c0_i32_0 : i32, i32
  }
  func.func @transform_17(%arg0: i32) -> (i32, i32) {
    %c0_i32 = arith.constant 0 : i32
    %c0_i32_0 = arith.constant 0 : i32
    return %arg0, %c0_i32 : i32, i32
  }
}

</mosaic_0001>

<llo_original>
// kernel: cnn1d_forward.1
$region0: #{cnn1d_forward.1}
  #allocation0 [shape = 'u32[]', space=smem, size = 0x4, offset = 0x4, fixed_abs, tag = 'smem constant byte address 0x4 - core index']
  #allocation1 [shape = 'u32[72,128]{1,0:T(1,128)}', space=vmem, size = 0x9000, scoped, tag = 'internal scratch']
  %s0 = inlined_call_operand.vmem [shape: f32[64,8,1], index: 0, kind: input, shape index: {}]
  %s1 = inlined_call_operand.vmem [shape: f32[3,64], index: 1, kind: input, shape index: {}]
  %s2 = inlined_call_operand.vmem [shape: f32[1,64], index: 2, kind: input, shape index: {}]
  %s3 = inlined_call_operand.vmem [shape: f32[1,64], index: 3, kind: input, shape index: {}]
  %s4 = inlined_call_operand.vmem [shape: bf16[3,64,128], index: 4, kind: input, shape index: {}]
  %s5 = inlined_call_operand.vmem [shape: f32[1,128], index: 5, kind: input, shape index: {}]
  %s6 = inlined_call_operand.vmem [shape: f32[1,128], index: 6, kind: input, shape index: {}]
  %s7 = inlined_call_operand.vmem [shape: bf16[3,128,256], index: 7, kind: input, shape index: {}]
  %s8 = inlined_call_operand.vmem [shape: f32[1,256], index: 8, kind: input, shape index: {}]
  %s9 = inlined_call_operand.vmem [shape: bf16[8,256,64], index: 9, kind: input, shape index: {}]
  %s10 = inlined_call_operand.vmem [shape: f32[1,64], index: 10, kind: input, shape index: {}]
  %s11 = inlined_call_operand.vmem [shape: f32[64,32], index: 11, kind: input, shape index: {}]
  %s12 = inlined_call_operand.vmem [shape: f32[1,32], index: 12, kind: input, shape index: {}]
  %s13 = inlined_call_operand.vmem [shape: f32[32,16], index: 13, kind: input, shape index: {}]
  %s14 = inlined_call_operand.vmem [shape: f32[1,16], index: 14, kind: input, shape index: {}]
  %s15 = inlined_call_operand.vmem [shape: f32[16,128], index: 15, kind: input, shape index: {}]
  %s16 = inlined_call_operand.vmem [shape: f32[1,128], index: 16, kind: input, shape index: {}]
  %s17 = inlined_call_operand.vmem [shape: f32[8,128], index: 17, kind: output, shape index: {}]
  %s18 = sld [smem:[#allocation0]]
  $region78: #{cnn1d_forward.1} parent=0
    _
  %s20 = ssub.s32 1, %s18
  %s21 = scalar_select 0, %s20, %s18
  // Predicated region
  $region2: #{cnn1d_forward.1} parent=0 // pred_check
    _
  $region3: #{cnn1d_forward.1} parent=0 // pred_check_branch
    %23 = sbr.rel (0) target = $region5
  $region4: #{cnn1d_forward.1} parent=0 // pred_region
    _
  $region5: #{cnn1d_forward.1} parent=0 // pred_fallthru
    _
  // Predicated region
  $region6: #{cnn1d_forward.1} parent=0 // pred_check
    _
  $region7: #{cnn1d_forward.1} parent=0 // pred_check_branch
    %25 = sbr.rel (0) target = $region9
  $region8: #{cnn1d_forward.1} parent=0 // pred_region
    _
  $region9: #{cnn1d_forward.1} parent=0 // pred_fallthru
    _
  // Predicated region
  $region10: #{cnn1d_forward.1} parent=0 // pred_check
    _
  $region11: #{cnn1d_forward.1} parent=0 // pred_check_branch
    %27 = sbr.rel (0) target = $region13
  $region12: #{cnn1d_forward.1} parent=0 // pred_region
    _
  $region13: #{cnn1d_forward.1} parent=0 // pred_fallthru
    _
  // Predicated region
  $region14: #{cnn1d_forward.1} parent=0 // pred_check
    _
  $region15: #{cnn1d_forward.1} parent=0 // pred_check_branch
    %29 = sbr.rel (0) target = $region17
  $region16: #{cnn1d_forward.1} parent=0 // pred_region
    _
  $region17: #{cnn1d_forward.1} parent=0 // pred_fallthru
    _
  // Predicated region
  $region18: #{cnn1d_forward.1} parent=0 // pred_check
    _
  $region19: #{cnn1d_forward.1} parent=0 // pred_check_branch
    %31 = sbr.rel (0) target = $region21
  $region20: #{cnn1d_forward.1} parent=0 // pred_region
    _
  $region21: #{cnn1d_forward.1} parent=0 // pred_fallthru
    _
  // Predicated region
  $region22: #{cnn1d_forward.1} parent=0 // pred_check
    _
  $region23: #{cnn1d_forward.1} parent=0 // pred_check_branch
    %33 = sbr.rel (0) target = $region25
  $region24: #{cnn1d_forward.1} parent=0 // pred_region
    _
  $region25: #{cnn1d_forward.1} parent=0 // pred_fallthru
    _
  // Predicated region
  $region26: #{cnn1d_forward.1} parent=0 // pred_check
    _
  $region27: #{cnn1d_forward.1} parent=0 // pred_check_branch
    %35 = sbr.rel (0) target = $region29
  $region28: #{cnn1d_forward.1} parent=0 // pred_region
    _
  $region29: #{cnn1d_forward.1} parent=0 // pred_fallthru
    _
  // Predicated region
  $region30: #{cnn1d_forward.1} parent=0 // pred_check
    _
  $region31: #{cnn1d_forward.1} parent=0 // pred_check_branch
    %37 = sbr.rel (0) target = $region33
  $region32: #{cnn1d_forward.1} parent=0 // pred_region
    _
  $region33: #{cnn1d_forward.1} parent=0 // pred_fallthru
    _
  // Predicated region
  $region34: #{cnn1d_forward.1} parent=0 // pred_check
    _
  $region35: #{cnn1d_forward.1} parent=0 // pred_check_branch
    %39 = sbr.rel (0) target = $region37
  $region36: #{cnn1d_forward.1} parent=0 // pred_region
    _
  $region37: #{cnn1d_forward.1} parent=0 // pred_fallthru
    _
  // Predicated region
  $region38: #{cnn1d_forward.1} parent=0 // pred_check
    _
  $region39: #{cnn1d_forward.1} parent=0 // pred_check_branch
    %41 = sbr.rel (0) target = $region41
  $region40: #{cnn1d_forward.1} parent=0 // pred_region
    _
  $region41: #{cnn1d_forward.1} parent=0 // pred_fallthru
    _
  // Predicated region
  $region42: #{cnn1d_forward.1} parent=0 // pred_check
    _
  $region43: #{cnn1d_forward.1} parent=0 // pred_check_branch
    %43 = sbr.rel (0) target = $region45
  $region44: #{cnn1d_forward.1} parent=0 // pred_region
    _
  $region45: #{cnn1d_forward.1} parent=0 // pred_fallthru
    _
  // Predicated region
  $region46: #{cnn1d_forward.1} parent=0 // pred_check
    _
  $region47: #{cnn1d_forward.1} parent=0 // pred_check_branch
    %45 = sbr.rel (0) target = $region49
  $region48: #{cnn1d_forward.1} parent=0 // pred_region
    _
  $region49: #{cnn1d_forward.1} parent=0 // pred_fallthru
    _
  // Predicated region
  $region50: #{cnn1d_forward.1} parent=0 // pred_check
    _
  $region51: #{cnn1d_forward.1} parent=0 // pred_check_branch
    %47 = sbr.rel (0) target = $region53
  $region52: #{cnn1d_forward.1} parent=0 // pred_region
    _
  $region53: #{cnn1d_forward.1} parent=0 // pred_fallthru
    _
  // Predicated region
  $region54: #{cnn1d_forward.1} parent=0 // pred_check
    _
  $region55: #{cnn1d_forward.1} parent=0 // pred_check_branch
    %49 = sbr.rel (0) target = $region57
  $region56: #{cnn1d_forward.1} parent=0 // pred_region
    _
  $region57: #{cnn1d_forward.1} parent=0 // pred_fallthru
    _
  // Predicated region
  $region58: #{cnn1d_forward.1} parent=0 // pred_check
    _
  $region59: #{cnn1d_forward.1} parent=0 // pred_check_branch
    %51 = sbr.rel (0) target = $region61
  $region60: #{cnn1d_forward.1} parent=0 // pred_region
    _
  $region61: #{cnn1d_forward.1} parent=0 // pred_fallthru
    _
  // Predicated region
  $region62: #{cnn1d_forward.1} parent=0 // pred_check
    _
  $region63: #{cnn1d_forward.1} parent=0 // pred_check_branch
    %53 = sbr.rel (0) target = $region65
  $region64: #{cnn1d_forward.1} parent=0 // pred_region
    _
  $region65: #{cnn1d_forward.1} parent=0 // pred_fallthru
    _
  // Predicated region
  $region66: #{cnn1d_forward.1} parent=0 // pred_check
    _
  $region67: #{cnn1d_forward.1} parent=0 // pred_check_branch
    %55 = sbr.rel (0) target = $region69
  $region68: #{cnn1d_forward.1} parent=0 // pred_region
    _
  $region69: #{cnn1d_forward.1} parent=0 // pred_fallthru
    _
  %v57 = vld [vmem:[%s0] sm:$0xff]
  %v58 = vld [vmem:[%s0 + $0x8] sm:$0xff]
  %v59 = vld [vmem:[%s0 + $0x10] sm:$0xff]
  %v60 = vld [vmem:[%s0 + $0x18] sm:$0xff]
  %v61 = vld [vmem:[%s0 + $0x20] sm:$0xff]
  %v62 = vld [vmem:[%s0 + $0x28] sm:$0xff]
  %v63 = vld [vmem:[%s0 + $0x30] sm:$0xff]
  %v64 = vld [vmem:[%s0 + $0x38] sm:$0xff]
  %v65 = vld [vmem:[%s0 + $0x40] sm:$0xff]
  %v66 = vld [vmem:[%s0 + $0x48] sm:$0xff]
  %v67 = vld [vmem:[%s0 + $0x50] sm:$0xff]
  %v68 = vld [vmem:[%s0 + $0x58] sm:$0xff]
  %v69 = vld [vmem:[%s0 + $0x60] sm:$0xff]
  %v70 = vld [vmem:[%s0 + $0x68] sm:$0xff]
  %v71 = vld [vmem:[%s0 + $0x70] sm:$0xff]
  %v72 = vld [vmem:[%s0 + $0x78] sm:$0xff]
  %v73 = vld [vmem:[%s0 + $0x80] sm:$0xff]
  %v74 = vld [vmem:[%s0 + $0x88] sm:$0xff]
  %v75 = vld [vmem:[%s0 + $0x90] sm:$0xff]
  %v76 = vld [vmem:[%s0 + $0x98] sm:$0xff]
  %v77 = vld [vmem:[%s0 + $0xa0] sm:$0xff]
  %v78 = vld [vmem:[%s0 + $0xa8] sm:$0xff]
  %v79 = vld [vmem:[%s0 + $0xb0] sm:$0xff]
  %v80 = vld [vmem:[%s0 + $0xb8] sm:$0xff]
  %v81 = vld [vmem:[%s0 + $0xc0] sm:$0xff]
  %v82 = vld [vmem:[%s0 + $0xc8] sm:$0xff]
  %v83 = vld [vmem:[%s0 + $0xd0] sm:$0xff]
  %v84 = vld [vmem:[%s0 + $0xd8] sm:$0xff]
  %v85 = vld [vmem:[%s0 + $0xe0] sm:$0xff]
  %v86 = vld [vmem:[%s0 + $0xe8] sm:$0xff]
  %v87 = vld [vmem:[%s0 + $0xf0] sm:$0xff]
  %v88 = vld [vmem:[%s0 + $0xf8] sm:$0xff]
  %v89 = vld [vmem:[%s0 + $0x100] sm:$0xff]
  %v90 = vld [vmem:[%s0 + $0x108] sm:$0xff]
  %v91 = vld [vmem:[%s0 + $0x110] sm:$0xff]
  %v92 = vld [vmem:[%s0 + $0x118] sm:$0xff]
  %v93 = vld [vmem:[%s0 + $0x120] sm:$0xff]
  %v94 = vld [vmem:[%s0 + $0x128] sm:$0xff]
  %v95 = vld [vmem:[%s0 + $0x130] sm:$0xff]
  %v96 = vld [vmem:[%s0 + $0x138] sm:$0xff]
  %v97 = vld [vmem:[%s0 + $0x140] sm:$0xff]
  %v98 = vld [vmem:[%s0 + $0x148] sm:$0xff]
  %v99 = vld [vmem:[%s0 + $0x150] sm:$0xff]
  %v100 = vld [vmem:[%s0 + $0x158] sm:$0xff]
  %v101 = vld [vmem:[%s0 + $0x160] sm:$0xff]
  %v102 = vld [vmem:[%s0 + $0x168] sm:$0xff]
  %v103 = vld [vmem:[%s0 + $0x170] sm:$0xff]
  %v104 = vld [vmem:[%s0 + $0x178] sm:$0xff]
  %v105 = vld [vmem:[%s0 + $0x180] sm:$0xff]
  %v106 = vld [vmem:[%s0 + $0x188] sm:$0xff]
  %v107 = vld [vmem:[%s0 + $0x190] sm:$0xff]
  %v108 = vld [vmem:[%s0 + $0x198] sm:$0xff]
  %v109 = vld [vmem:[%s0 + $0x1a0] sm:$0xff]
  %v110 = vld [vmem:[%s0 + $0x1a8] sm:$0xff]
  %v111 = vld [vmem:[%s0 + $0x1b0] sm:$0xff]
  %v112 = vld [vmem:[%s0 + $0x1b8] sm:$0xff]
  %v113 = vld [vmem:[%s0 + $0x1c0] sm:$0xff]
  %v114 = vld [vmem:[%s0 + $0x1c8] sm:$0xff]
  %v115 = vld [vmem:[%s0 + $0x1d0] sm:$0xff]
  %v116 = vld [vmem:[%s0 + $0x1d8] sm:$0xff]
  %v117 = vld [vmem:[%s0 + $0x1e0] sm:$0xff]
  %v118 = vld [vmem:[%s0 + $0x1e8] sm:$0xff]
  %v119 = vld [vmem:[%s0 + $0x1f0] sm:$0xff]
  %v120 = vld [vmem:[%s0 + $0x1f8] sm:$0xff]
  %v121 = vld [vmem:[%s1] sm:$0x7]
  %123 = vset.pattern.permute.xlu0 0
  %124 = vperm.xlu0 %123, 0.0
  %v125 = vpop.permute.xlu0 %124
  %128 = vset.pattern.permute.xlu0 0
  %129 = vperm.xlu0 %128, %v57
  %v130 = vpop.permute.xlu0 %129
  %133 = vset.pattern.permute.xlu0 0
  %134 = vperm.xlu0 %133, %v58
  %v135 = vpop.permute.xlu0 %134
  %138 = vset.pattern.permute.xlu0 0
  %139 = vperm.xlu0 %138, %v59
  %v140 = vpop.permute.xlu0 %139
  %143 = vset.pattern.permute.xlu0 0
  %144 = vperm.xlu0 %143, %v60
  %v145 = vpop.permute.xlu0 %144
  %148 = vset.pattern.permute.xlu0 0
  %149 = vperm.xlu0 %148, %v61
  %v150 = vpop.permute.xlu0 %149
  %153 = vset.pattern.permute.xlu0 0
  %154 = vperm.xlu0 %153, %v62
  %v155 = vpop.permute.xlu0 %154
  %158 = vset.pattern.permute.xlu0 0
  %159 = vperm.xlu0 %158, %v63
  %v160 = vpop.permute.xlu0 %159
  %163 = vset.pattern.permute.xlu0 0
  %164 = vperm.xlu0 %163, %v64
  %v165 = vpop.permute.xlu0 %164
  %168 = vset.pattern.permute.xlu0 0
  %169 = vperm.xlu0 %168, %v65
  %v170 = vpop.permute.xlu0 %169
  %173 = vset.pattern.permute.xlu0 0
  %174 = vperm.xlu0 %173, %v66
  %v175 = vpop.permute.xlu0 %174
  %178 = vset.pattern.permute.xlu0 0
  %179 = vperm.xlu0 %178, %v67
  %v180 = vpop.permute.xlu0 %179
  %183 = vset.pattern.permute.xlu0 0
  %184 = vperm.xlu0 %183, %v68
  %v185 = vpop.permute.xlu0 %184
  %188 = vset.pattern.permute.xlu0 0
  %189 = vperm.xlu0 %188, %v69
  %v190 = vpop.permute.xlu0 %189
  %193 = vset.pattern.permute.xlu0 0
  %194 = vperm.xlu0 %193, %v70
  %v195 = vpop.permute.xlu0 %194
  %198 = vset.pattern.permute.xlu0 0
  %199 = vperm.xlu0 %198, %v71
  %v200 = vpop.permute.xlu0 %199
  %203 = vset.pattern.permute.xlu0 0
  %204 = vperm.xlu0 %203, %v72
  %v205 = vpop.permute.xlu0 %204
  %208 = vset.pattern.permute.xlu0 0
  %209 = vperm.xlu0 %208, %v73
  %v210 = vpop.permute.xlu0 %209
  %213 = vset.pattern.permute.xlu0 0
  %214 = vperm.xlu0 %213, %v74
  %v215 = vpop.permute.xlu0 %214
  %218 = vset.pattern.permute.xlu0 0
  %219 = vperm.xlu0 %218, %v75
  %v220 = vpop.permute.xlu0 %219
  %223 = vset.pattern.permute.xlu0 0
  %224 = vperm.xlu0 %223, %v76
  %v225 = vpop.permute.xlu0 %224
  %228 = vset.pattern.permute.xlu0 0
  %229 = vperm.xlu0 %228, %v77
  %v230 = vpop.permute.xlu0 %229
  %233 = vset.pattern.permute.xlu0 0
  %234 = vperm.xlu0 %233, %v78
  %v235 = vpop.permute.xlu0 %234
  %238 = vset.pattern.permute.xlu0 0
  %239 = vperm.xlu0 %238, %v79
  %v240 = vpop.permute.xlu0 %239
  %243 = vset.pattern.permute.xlu0 0
  %244 = vperm.xlu0 %243, %v80
  %v245 = vpop.permute.xlu0 %244
  %248 = vset.pattern.permute.xlu0 0
  %249 = vperm.xlu0 %248, %v81
  %v250 = vpop.permute.xlu0 %249
  %253 = vset.pattern.permute.xlu0 0
  %254 = vperm.xlu0 %253, %v82
  %v255 = vpop.permute.xlu0 %254
  %258 = vset.pattern.permute.xlu0 0
  %259 = vperm.xlu0 %258, %v83
  %v260 = vpop.permute.xlu0 %259
  %263 = vset.pattern.permute.xlu0 0
  %264 = vperm.xlu0 %263, %v84
  %v265 = vpop.permute.xlu0 %264
  %268 = vset.pattern.permute.xlu0 0
  %269 = vperm.xlu0 %268, %v85
  %v270 = vpop.permute.xlu0 %269
  %273 = vset.pattern.permute.xlu0 0
  %274 = vperm.xlu0 %273, %v86
  %v275 = vpop.permute.xlu0 %274
  %278 = vset.pattern.permute.xlu0 0
  %279 = vperm.xlu0 %278, %v87
  %v280 = vpop.permute.xlu0 %279
  %283 = vset.pattern.permute.xlu0 0
  %284 = vperm.xlu0 %283, %v88
  %v285 = vpop.permute.xlu0 %284
  %288 = vset.pattern.permute.xlu0 0
  %289 = vperm.xlu0 %288, %v89
  %v290 = vpop.permute.xlu0 %289
  %293 = vset.pattern.permute.xlu0 0
  %294 = vperm.xlu0 %293, %v90
  %v295 = vpop.permute.xlu0 %294
  %298 = vset.pattern.permute.xlu0 0
  %299 = vperm.xlu0 %298, %v91
  %v300 = vpop.permute.xlu0 %299
  %303 = vset.pattern.permute.xlu0 0
  %304 = vperm.xlu0 %303, %v92
  %v305 = vpop.permute.xlu0 %304
  %308 = vset.pattern.permute.xlu0 0
  %309 = vperm.xlu0 %308, %v93
  %v310 = vpop.permute.xlu0 %309
  %313 = vset.pattern.permute.xlu0 0
  %314 = vperm.xlu0 %313, %v94
  %v315 = vpop.permute.xlu0 %314
  %318 = vset.pattern.permute.xlu0 0
  %319 = vperm.xlu0 %318, %v95
  %v320 = vpop.permute.xlu0 %319
  %323 = vset.pattern.permute.xlu0 0
  %324 = vperm.xlu0 %323, %v96
  %v325 = vpop.permute.xlu0 %324
  %328 = vset.pattern.permute.xlu0 0
  %329 = vperm.xlu0 %328, %v97
  %v330 = vpop.permute.xlu0 %329
  %333 = vset.pattern.permute.xlu0 0
  %334 = vperm.xlu0 %333, %v98
  %v335 = vpop.permute.xlu0 %334
  %338 = vset.pattern.permute.xlu0 0
  %339 = vperm.xlu0 %338, %v99
  %v340 = vpop.permute.xlu0 %339
  %343 = vset.pattern.permute.xlu0 0
  %344 = vperm.xlu0 %343, %v100
  %v345 = vpop.permute.xlu0 %344
  %348 = vset.pattern.permute.xlu0 0
  %349 = vperm.xlu0 %348, %v101
  %v350 = vpop.permute.xlu0 %349
  %353 = vset.pattern.permute.xlu0 0
  %354 = vperm.xlu0 %353, %v102
  %v355 = vpop.permute.xlu0 %354
  %358 = vset.pattern.permute.xlu0 0
  %359 = vperm.xlu0 %358, %v103
  %v360 = vpop.permute.xlu0 %359
  %363 = vset.pattern.permute.xlu0 0
  %364 = vperm.xlu0 %363, %v104
  %v365 = vpop.permute.xlu0 %364
  %368 = vset.pattern.permute.xlu0 0
  %369 = vperm.xlu0 %368, %v105
  %v370 = vpop.permute.xlu0 %369
  %373 = vset.pattern.permute.xlu0 0
  %374 = vperm.xlu0 %373, %v106
  %v375 = vpop.permute.xlu0 %374
  %378 = vset.pattern.permute.xlu0 0
  %379 = vperm.xlu0 %378, %v107
  %v380 = vpop.permute.xlu0 %379
  %383 = vset.pattern.permute.xlu0 0
  %384 = vperm.xlu0 %383, %v108
  %v385 = vpop.permute.xlu0 %384
  %388 = vset.pattern.permute.xlu0 0
  %389 = vperm.xlu0 %388, %v109
  %v390 = vpop.permute.xlu0 %389
  %393 = vset.pattern.permute.xlu0 0
  %394 = vperm.xlu0 %393, %v110
  %v395 = vpop.permute.xlu0 %394
  %398 = vset.pattern.permute.xlu0 0
  %399 = vperm.xlu0 %398, %v111
  %v400 = vpop.permute.xlu0 %399
  %403 = vset.pattern.permute.xlu0 0
  %404 = vperm.xlu0 %403, %v112
  %v405 = vpop.permute.xlu0 %404
  %408 = vset.pattern.permute.xlu0 0
  %409 = vperm.xlu0 %408, %v113
  %v410 = vpop.permute.xlu0 %409
  %413 = vset.pattern.permute.xlu0 0
  %414 = vperm.xlu0 %413, %v114
  %v415 = vpop.permute.xlu0 %414
  %418 = vset.pattern.permute.xlu0 0
  %419 = vperm.xlu0 %418, %v115
  %v420 = vpop.permute.xlu0 %419
  %423 = vset.pattern.permute.xlu0 0
  %424 = vperm.xlu0 %423, %v116
  %v425 = vpop.permute.xlu0 %424
  %428 = vset.pattern.permute.xlu0 0
  %429 = vperm.xlu0 %428, %v117
  %v430 = vpop.permute.xlu0 %429
  %433 = vset.pattern.permute.xlu0 0
  %434 = vperm.xlu0 %433, %v118
  %v435 = vpop.permute.xlu0 %434
  %438 = vset.pattern.permute.xlu0 0
  %439 = vperm.xlu0 %438, %v119
  %v440 = vpop.permute.xlu0 %439
  %v442 = vperm.slane %v121, 0
  %v443 = vmul.f32 %v125, %v442
  %v444 = vmul.f32 %v130, %v442
  %v445 = vmul.f32 %v135, %v442
  %v446 = vmul.f32 %v140, %v442
  %v447 = vmul.f32 %v145, %v442
  %v448 = vmul.f32 %v150, %v442
  %v449 = vmul.f32 %v155, %v442
  %v450 = vmul.f32 %v160, %v442
  %v451 = vmul.f32 %v165, %v442
  %v452 = vmul.f32 %v170, %v442
  %v453 = vmul.f32 %v175, %v442
  %v454 = vmul.f32 %v180, %v442
  %v455 = vmul.f32 %v185, %v442
  %v456 = vmul.f32 %v190, %v442
  %v457 = vmul.f32 %v195, %v442
  %v458 = vmul.f32 %v200, %v442
  %v459 = vmul.f32 %v205, %v442
  %v460 = vmul.f32 %v210, %v442
  %v461 = vmul.f32 %v215, %v442
  %v462 = vmul.f32 %v220, %v442
  %v463 = vmul.f32 %v225, %v442
  %v464 = vmul.f32 %v230, %v442
  %v465 = vmul.f32 %v235, %v442
  %v466 = vmul.f32 %v240, %v442
  %v467 = vmul.f32 %v245, %v442
  %v468 = vmul.f32 %v250, %v442
  %v469 = vmul.f32 %v255, %v442
  %v470 = vmul.f32 %v260, %v442
  %v471 = vmul.f32 %v265, %v442
  %v472 = vmul.f32 %v270, %v442
  %v473 = vmul.f32 %v275, %v442
  %v474 = vmul.f32 %v280, %v442
  %v475 = vmul.f32 %v285, %v442
  %v476 = vmul.f32 %v290, %v442
  %v477 = vmul.f32 %v295, %v442
  %v478 = vmul.f32 %v300, %v442
  %v479 = vmul.f32 %v305, %v442
  %v480 = vmul.f32 %v310, %v442
  %v481 = vmul.f32 %v315, %v442
  %v482 = vmul.f32 %v320, %v442
  %v483 = vmul.f32 %v325, %v442
  %v484 = vmul.f32 %v330, %v442
  %v485 = vmul.f32 %v335, %v442
  %v486 = vmul.f32 %v340, %v442
  %v487 = vmul.f32 %v345, %v442
  %v488 = vmul.f32 %v350, %v442
  %v489 = vmul.f32 %v355, %v442
  %v490 = vmul.f32 %v360, %v442
  %v491 = vmul.f32 %v365, %v442
  %v492 = vmul.f32 %v370, %v442
  %v493 = vmul.f32 %v375, %v442
  %v494 = vmul.f32 %v380, %v442
  %v495 = vmul.f32 %v385, %v442
  %v496 = vmul.f32 %v390, %v442
  %v497 = vmul.f32 %v395, %v442
  %v498 = vmul.f32 %v400, %v442
  %v499 = vmul.f32 %v405, %v442
  %v500 = vmul.f32 %v410, %v442
  %v501 = vmul.f32 %v415, %v442
  %v502 = vmul.f32 %v420, %v442
  %v503 = vmul.f32 %v425, %v442
  %v504 = vmul.f32 %v430, %v442
  %v505 = vmul.f32 %v435, %v442
  %v506 = vmul.f32 %v440, %v442
  %508 = vset.pattern.permute.xlu0 0
  %509 = vperm.xlu0 %508, %v120
  %v510 = vpop.permute.xlu0 %509
  %v512 = vperm.slane %v121, 1
  %v513 = vmul.f32 %v130, %v512
  %v514 = vmul.f32 %v135, %v512
  %v515 = vmul.f32 %v140, %v512
  %v516 = vmul.f32 %v145, %v512
  %v517 = vmul.f32 %v150, %v512
  %v518 = vmul.f32 %v155, %v512
  %v519 = vmul.f32 %v160, %v512
  %v520 = vmul.f32 %v165, %v512
  %v521 = vmul.f32 %v170, %v512
  %v522 = vmul.f32 %v175, %v512
  %v523 = vmul.f32 %v180, %v512
  %v524 = vmul.f32 %v185, %v512
  %v525 = vmul.f32 %v190, %v512
  %v526 = vmul.f32 %v195, %v512
  %v527 = vmul.f32 %v200, %v512
  %v528 = vmul.f32 %v205, %v512
  %v529 = vmul.f32 %v210, %v512
  %v530 = vmul.f32 %v215, %v512
  %v531 = vmul.f32 %v220, %v512
  %v532 = vmul.f32 %v225, %v512
  %v533 = vmul.f32 %v230, %v512
  %v534 = vmul.f32 %v235, %v512
  %v535 = vmul.f32 %v240, %v512
  %v536 = vmul.f32 %v245, %v512
  %v537 = vmul.f32 %v250, %v512
  %v538 = vmul.f32 %v255, %v512
  %v539 = vmul.f32 %v260, %v512
  %v540 = vmul.f32 %v265, %v512
  %v541 = vmul.f32 %v270, %v512
  %v542 = vmul.f32 %v275, %v512
  %v543 = vmul.f32 %v280, %v512
  %v544 = vmul.f32 %v285, %v512
  %v545 = vmul.f32 %v290, %v512
  %v546 = vmul.f32 %v295, %v512
  %v547 = vmul.f32 %v300, %v512
  %v548 = vmul.f32 %v305, %v512
  %v549 = vmul.f32 %v310, %v512
  %v550 = vmul.f32 %v315, %v512
  %v551 = vmul.f32 %v320, %v512
  %v552 = vmul.f32 %v325, %v512
  %v553 = vmul.f32 %v330, %v512
  %v554 = vmul.f32 %v335, %v512
  %v555 = vmul.f32 %v340, %v512
  %v556 = vmul.f32 %v345, %v512
  %v557 = vmul.f32 %v350, %v512
  %v558 = vmul.f32 %v355, %v512
  %v559 = vmul.f32 %v360, %v512
  %v560 = vmul.f32 %v365, %v512
  %v561 = vmul.f32 %v370, %v512
  %v562 = vmul.f32 %v375, %v512
  %v563 = vmul.f32 %v380, %v512
  %v564 = vmul.f32 %v385, %v512
  %v565 = vmul.f32 %v390, %v512
  %v566 = vmul.f32 %v395, %v512
  %v567 = vmul.f32 %v400, %v512
  %v568 = vmul.f32 %v405, %v512
  %v569 = vmul.f32 %v410, %v512
  %v570 = vmul.f32 %v415, %v512
  %v571 = vmul.f32 %v420, %v512
  %v572 = vmul.f32 %v425, %v512
  %v573 = vmul.f32 %v430, %v512
  %v574 = vmul.f32 %v435, %v512
  %v575 = vmul.f32 %v440, %v512
  %v576 = vmul.f32 %v510, %v512
  %v577 = vadd.f32 %v443, %v513
  %v578 = vadd.f32 %v444, %v514
  %v579 = vadd.f32 %v445, %v515
  %v580 = vadd.f32 %v446, %v516
  %v581 = vadd.f32 %v447, %v517
  %v582 = vadd.f32 %v448, %v518
  %v583 = vadd.f32 %v449, %v519
  %v584 = vadd.f32 %v450, %v520
  %v585 = vadd.f32 %v451, %v521
  %v586 = vadd.f32 %v452, %v522
  %v587 = vadd.f32 %v453, %v523
  %v588 = vadd.f32 %v454, %v524
  %v589 = vadd.f32 %v455, %v525
  %v590 = vadd.f32 %v456, %v526
  %v591 = vadd.f32 %v457, %v527
  %v592 = vadd.f32 %v458, %v528
  %v593 = vadd.f32 %v459, %v529
  %v594 = vadd.f32 %v460, %v530
  %v595 = vadd.f32 %v461, %v531
  %v596 = vadd.f32 %v462, %v532
  %v597 = vadd.f32 %v463, %v533
  %v598 = vadd.f32 %v464, %v534
  %v599 = vadd.f32 %v465, %v535
  %v600 = vadd.f32 %v466, %v536
  %v601 = vadd.f32 %v467, %v537
  %v602 = vadd.f32 %v468, %v538
  %v603 = vadd.f32 %v469, %v539
  %v604 = vadd.f32 %v470, %v540
  %v605 = vadd.f32 %v471, %v541
  %v606 = vadd.f32 %v472, %v542
  %v607 = vadd.f32 %v473, %v543
  %v608 = vadd.f32 %v474, %v544
  %v609 = vadd.f32 %v475, %v545
  %v610 = vadd.f32 %v476, %v546
  %v611 = vadd.f32 %v477, %v547
  %v612 = vadd.f32 %v478, %v548
  %v613 = vadd.f32 %v479, %v549
  %v614 = vadd.f32 %v480, %v550
  %v615 = vadd.f32 %v481, %v551
  %v616 = vadd.f32 %v482, %v552
  %v617 = vadd.f32 %v483, %v553
  %v618 = vadd.f32 %v484, %v554
  %v619 = vadd.f32 %v485, %v555
  %v620 = vadd.f32 %v486, %v556
  %v621 = vadd.f32 %v487, %v557
  %v622 = vadd.f32 %v488, %v558
  %v623 = vadd.f32 %v489, %v559
  %v624 = vadd.f32 %v490, %v560
  %v625 = vadd.f32 %v491, %v561
  %v626 = vadd.f32 %v492, %v562
  %v627 = vadd.f32 %v493, %v563
  %v628 = vadd.f32 %v494, %v564
  %v629 = vadd.f32 %v495, %v565
  %v630 = vadd.f32 %v496, %v566
  %v631 = vadd.f32 %v497, %v567
  %v632 = vadd.f32 %v498, %v568
  %v633 = vadd.f32 %v499, %v569
  %v634 = vadd.f32 %v500, %v570
  %v635 = vadd.f32 %v501, %v571
  %v636 = vadd.f32 %v502, %v572
  %v637 = vadd.f32 %v503, %v573
  %v638 = vadd.f32 %v504, %v574
  %v639 = vadd.f32 %v505, %v575
  %v640 = vadd.f32 %v506, %v576
  %v641 = vperm.slane %v121, 2
  %v642 = vmul.f32 %v135, %v641
  %v643 = vmul.f32 %v140, %v641
  %v644 = vmul.f32 %v145, %v641
  %v645 = vmul.f32 %v150, %v641
  %v646 = vmul.f32 %v155, %v641
  %v647 = vmul.f32 %v160, %v641
  %v648 = vmul.f32 %v165, %v641
  %v649 = vmul.f32 %v170, %v641
  %v650 = vmul.f32 %v175, %v641
  %v651 = vmul.f32 %v180, %v641
  %v652 = vmul.f32 %v185, %v641
  %v653 = vmul.f32 %v190, %v641
  %v654 = vmul.f32 %v195, %v641
  %v655 = vmul.f32 %v200, %v641
  %v656 = vmul.f32 %v205, %v641
  %v657 = vmul.f32 %v210, %v641
  %v658 = vmul.f32 %v215, %v641
  %v659 = vmul.f32 %v220, %v641
  %v660 = vmul.f32 %v225, %v641
  %v661 = vmul.f32 %v230, %v641
  %v662 = vmul.f32 %v235, %v641
  %v663 = vmul.f32 %v240, %v641
  %v664 = vmul.f32 %v245, %v641
  %v665 = vmul.f32 %v250, %v641
  %v666 = vmul.f32 %v255, %v641
  %v667 = vmul.f32 %v260, %v641
  %v668 = vmul.f32 %v265, %v641
  %v669 = vmul.f32 %v270, %v641
  %v670 = vmul.f32 %v275, %v641
  %v671 = vmul.f32 %v280, %v641
  %v672 = vmul.f32 %v285, %v641
  %v673 = vmul.f32 %v290, %v641
  %v674 = vmul.f32 %v295, %v641
  %v675 = vmul.f32 %v300, %v641
  %v676 = vmul.f32 %v305, %v641
  %v677 = vmul.f32 %v310, %v641
  %v678 = vmul.f32 %v315, %v641
  %v679 = vmul.f32 %v320, %v641
  %v680 = vmul.f32 %v325, %v641
  %v681 = vmul.f32 %v330, %v641
  %v682 = vmul.f32 %v335, %v641
  %v683 = vmul.f32 %v340, %v641
  %v684 = vmul.f32 %v345, %v641
  %v685 = vmul.f32 %v350, %v641
  %v686 = vmul.f32 %v355, %v641
  %v687 = vmul.f32 %v360, %v641
  %v688 = vmul.f32 %v365, %v641
  %v689 = vmul.f32 %v370, %v641
  %v690 = vmul.f32 %v375, %v641
  %v691 = vmul.f32 %v380, %v641
  %v692 = vmul.f32 %v385, %v641
  %v693 = vmul.f32 %v390, %v641
  %v694 = vmul.f32 %v395, %v641
  %v695 = vmul.f32 %v400, %v641
  %v696 = vmul.f32 %v405, %v641
  %v697 = vmul.f32 %v410, %v641
  %v698 = vmul.f32 %v415, %v641
  %v699 = vmul.f32 %v420, %v641
  %v700 = vmul.f32 %v425, %v641
  %v701 = vmul.f32 %v430, %v641
  %v702 = vmul.f32 %v435, %v641
  %v703 = vmul.f32 %v440, %v641
  %v704 = vmul.f32 %v510, %v641
  %v705 = vmul.f32 %v125, %v641
  %v706 = vadd.f32 %v577, %v642
  %v707 = vadd.f32 %v578, %v643
  %v708 = vadd.f32 %v579, %v644
  %v709 = vadd.f32 %v580, %v645
  %v710 = vadd.f32 %v581, %v646
  %v711 = vadd.f32 %v582, %v647
  %v712 = vadd.f32 %v583, %v648
  %v713 = vadd.f32 %v584, %v649
  %v714 = vadd.f32 %v585, %v650
  %v715 = vadd.f32 %v586, %v651
  %v716 = vadd.f32 %v587, %v652
  %v717 = vadd.f32 %v588, %v653
  %v718 = vadd.f32 %v589, %v654
  %v719 = vadd.f32 %v590, %v655
  %v720 = vadd.f32 %v591, %v656
  %v721 = vadd.f32 %v592, %v657
  %v722 = vadd.f32 %v593, %v658
  %v723 = vadd.f32 %v594, %v659
  %v724 = vadd.f32 %v595, %v660
  %v725 = vadd.f32 %v596, %v661
  %v726 = vadd.f32 %v597, %v662
  %v727 = vadd.f32 %v598, %v663
  %v728 = vadd.f32 %v599, %v664
  %v729 = vadd.f32 %v600, %v665
  %v730 = vadd.f32 %v601, %v666
  %v731 = vadd.f32 %v602, %v667
  %v732 = vadd.f32 %v603, %v668
  %v733 = vadd.f32 %v604, %v669
  %v734 = vadd.f32 %v605, %v670
  %v735 = vadd.f32 %v606, %v671
  %v736 = vadd.f32 %v607, %v672
  %v737 = vadd.f32 %v608, %v673
  %v738 = vadd.f32 %v609, %v674
  %v739 = vadd.f32 %v610, %v675
  %v740 = vadd.f32 %v611, %v676
  %v741 = vadd.f32 %v612, %v677
  %v742 = vadd.f32 %v613, %v678
  %v743 = vadd.f32 %v614, %v679
  %v744 = vadd.f32 %v615, %v680
  %v745 = vadd.f32 %v616, %v681
  %v746 = vadd.f32 %v617, %v682
  %v747 = vadd.f32 %v618, %v683
  %v748 = vadd.f32 %v619, %v684
  %v749 = vadd.f32 %v620, %v685
  %v750 = vadd.f32 %v621, %v686
  %v751 = vadd.f32 %v622, %v687
  %v752 = vadd.f32 %v623, %v688
  %v753 = vadd.f32 %v624, %v689
  %v754 = vadd.f32 %v625, %v690
  %v755 = vadd.f32 %v626, %v691
  %v756 = vadd.f32 %v627, %v692
  %v757 = vadd.f32 %v628, %v693
  %v758 = vadd.f32 %v629, %v694
  %v759 = vadd.f32 %v630, %v695
  %v760 = vadd.f32 %v631, %v696
  %v761 = vadd.f32 %v632, %v697
  %v762 = vadd.f32 %v633, %v698
  %v763 = vadd.f32 %v634, %v699
  %v764 = vadd.f32 %v635, %v700
  %v765 = vadd.f32 %v636, %v701
  %v766 = vadd.f32 %v637, %v702
  %v767 = vadd.f32 %v638, %v703
  %v768 = vadd.f32 %v639, %v704
  %v769 = vadd.f32 %v640, %v705
  %v770 = vld [vmem:[%s2] sm:$0x1]
  %v772 = vperm.slane %v770, 0
  %v774 = vmul.f32 %v706, %v772
  %v775 = vmul.f32 %v707, %v772
  %v776 = vmul.f32 %v708, %v772
  %v777 = vmul.f32 %v709, %v772
  %v778 = vmul.f32 %v710, %v772
  %v779 = vmul.f32 %v711, %v772
  %v780 = vmul.f32 %v712, %v772
  %v781 = vmul.f32 %v713, %v772
  %v782 = vmul.f32 %v714, %v772
  %v783 = vmul.f32 %v715, %v772
  %v784 = vmul.f32 %v716, %v772
  %v785 = vmul.f32 %v717, %v772
  %v786 = vmul.f32 %v718, %v772
  %v787 = vmul.f32 %v719, %v772
  %v788 = vmul.f32 %v720, %v772
  %v789 = vmul.f32 %v721, %v772
  %v790 = vmul.f32 %v722, %v772
  %v791 = vmul.f32 %v723, %v772
  %v792 = vmul.f32 %v724, %v772
  %v793 = vmul.f32 %v725, %v772
  %v794 = vmul.f32 %v726, %v772
  %v795 = vmul.f32 %v727, %v772
  %v796 = vmul.f32 %v728, %v772
  %v797 = vmul.f32 %v729, %v772
  %v798 = vmul.f32 %v730, %v772
  %v799 = vmul.f32 %v731, %v772
  %v800 = vmul.f32 %v732, %v772
  %v801 = vmul.f32 %v733, %v772
  %v802 = vmul.f32 %v734, %v772
  %v803 = vmul.f32 %v735, %v772
  %v804 = vmul.f32 %v736, %v772
  %v805 = vmul.f32 %v737, %v772
  %v806 = vmul.f32 %v738, %v772
  %v807 = vmul.f32 %v739, %v772
  %v808 = vmul.f32 %v740, %v772
  %v809 = vmul.f32 %v741, %v772
  %v810 = vmul.f32 %v742, %v772
  %v811 = vmul.f32 %v743, %v772
  %v812 = vmul.f32 %v744, %v772
  %v813 = vmul.f32 %v745, %v772
  %v814 = vmul.f32 %v746, %v772
  %v815 = vmul.f32 %v747, %v772
  %v816 = vmul.f32 %v748, %v772
  %v817 = vmul.f32 %v749, %v772
  %v818 = vmul.f32 %v750, %v772
  %v819 = vmul.f32 %v751, %v772
  %v820 = vmul.f32 %v752, %v772
  %v821 = vmul.f32 %v753, %v772
  %v822 = vmul.f32 %v754, %v772
  %v823 = vmul.f32 %v755, %v772
  %v824 = vmul.f32 %v756, %v772
  %v825 = vmul.f32 %v757, %v772
  %v826 = vmul.f32 %v758, %v772
  %v827 = vmul.f32 %v759, %v772
  %v828 = vmul.f32 %v760, %v772
  %v829 = vmul.f32 %v761, %v772
  %v830 = vmul.f32 %v762, %v772
  %v831 = vmul.f32 %v763, %v772
  %v832 = vmul.f32 %v764, %v772
  %v833 = vmul.f32 %v765, %v772
  %v834 = vmul.f32 %v766, %v772
  %v835 = vmul.f32 %v767, %v772
  %v836 = vmul.f32 %v768, %v772
  %v837 = vmul.f32 %v769, %v772
  %v838 = vld [vmem:[%s3] sm:$0x1]
  %v840 = vperm.slane %v838, 0
  %v842 = vadd.f32 %v774, %v840
  %v843 = vadd.f32 %v775, %v840
  %v844 = vadd.f32 %v776, %v840
  %v845 = vadd.f32 %v777, %v840
  %v846 = vadd.f32 %v778, %v840
  %v847 = vadd.f32 %v779, %v840
  %v848 = vadd.f32 %v780, %v840
  %v849 = vadd.f32 %v781, %v840
  %v850 = vadd.f32 %v782, %v840
  %v851 = vadd.f32 %v783, %v840
  %v852 = vadd.f32 %v784, %v840
  %v853 = vadd.f32 %v785, %v840
  %v854 = vadd.f32 %v786, %v840
  %v855 = vadd.f32 %v787, %v840
  %v856 = vadd.f32 %v788, %v840
  %v857 = vadd.f32 %v789, %v840
  %v858 = vadd.f32 %v790, %v840
  %v859 = vadd.f32 %v791, %v840
  %v860 = vadd.f32 %v792, %v840
  %v861 = vadd.f32 %v793, %v840
  %v862 = vadd.f32 %v794, %v840
  %v863 = vadd.f32 %v795, %v840
  %v864 = vadd.f32 %v796, %v840
  %v865 = vadd.f32 %v797, %v840
  %v866 = vadd.f32 %v798, %v840
  %v867 = vadd.f32 %v799, %v840
  %v868 = vadd.f32 %v800, %v840
  %v869 = vadd.f32 %v801, %v840
  %v870 = vadd.f32 %v802, %v840
  %v871 = vadd.f32 %v803, %v840
  %v872 = vadd.f32 %v804, %v840
  %v873 = vadd.f32 %v805, %v840
  %v874 = vadd.f32 %v806, %v840
  %v875 = vadd.f32 %v807, %v840
  %v876 = vadd.f32 %v808, %v840
  %v877 = vadd.f32 %v809, %v840
  %v878 = vadd.f32 %v810, %v840
  %v879 = vadd.f32 %v811, %v840
  %v880 = vadd.f32 %v812, %v840
  %v881 = vadd.f32 %v813, %v840
  %v882 = vadd.f32 %v814, %v840
  %v883 = vadd.f32 %v815, %v840
  %v884 = vadd.f32 %v816, %v840
  %v885 = vadd.f32 %v817, %v840
  %v886 = vadd.f32 %v818, %v840
  %v887 = vadd.f32 %v819, %v840
  %v888 = vadd.f32 %v820, %v840
  %v889 = vadd.f32 %v821, %v840
  %v890 = vadd.f32 %v822, %v840
  %v891 = vadd.f32 %v823, %v840
  %v892 = vadd.f32 %v824, %v840
  %v893 = vadd.f32 %v825, %v840
  %v894 = vadd.f32 %v826, %v840
  %v895 = vadd.f32 %v827, %v840
  %v896 = vadd.f32 %v828, %v840
  %v897 = vadd.f32 %v829, %v840
  %v898 = vadd.f32 %v830, %v840
  %v899 = vadd.f32 %v831, %v840
  %v900 = vadd.f32 %v832, %v840
  %v901 = vadd.f32 %v833, %v840
  %v902 = vadd.f32 %v834, %v840
  %v903 = vadd.f32 %v835, %v840
  %v904 = vadd.f32 %v836, %v840
  %v905 = vadd.f32 %v837, %v840
  %v906 = vmax.f32 %v842, 0.0
  %v907 = vmax.f32 %v843, 0.0
  %v908 = vmax.f32 %v844, 0.0
  %v909 = vmax.f32 %v845, 0.0
  %v910 = vmax.f32 %v846, 0.0
  %v911 = vmax.f32 %v847, 0.0
  %v912 = vmax.f32 %v848, 0.0
  %v913 = vmax.f32 %v849, 0.0
  %v914 = vmax.f32 %v850, 0.0
  %v915 = vmax.f32 %v851, 0.0
  %v916 = vmax.f32 %v852, 0.0
  %v917 = vmax.f32 %v853, 0.0
  %v918 = vmax.f32 %v854, 0.0
  %v919 = vmax.f32 %v855, 0.0
  %v920 = vmax.f32 %v856, 0.0
  %v921 = vmax.f32 %v857, 0.0
  %v922 = vmax.f32 %v858, 0.0
  %v923 = vmax.f32 %v859, 0.0
  %v924 = vmax.f32 %v860, 0.0
  %v925 = vmax.f32 %v861, 0.0
  %v926 = vmax.f32 %v862, 0.0
  %v927 = vmax.f32 %v863, 0.0
  %v928 = vmax.f32 %v864, 0.0
  %v929 = vmax.f32 %v865, 0.0
  %v930 = vmax.f32 %v866, 0.0
  %v931 = vmax.f32 %v867, 0.0
  %v932 = vmax.f32 %v868, 0.0
  %v933 = vmax.f32 %v869, 0.0
  %v934 = vmax.f32 %v870, 0.0
  %v935 = vmax.f32 %v871, 0.0
  %v936 = vmax.f32 %v872, 0.0
  %v937 = vmax.f32 %v873, 0.0
  %v938 = vmax.f32 %v874, 0.0
  %v939 = vmax.f32 %v875, 0.0
  %v940 = vmax.f32 %v876, 0.0
  %v941 = vmax.f32 %v877, 0.0
  %v942 = vmax.f32 %v878, 0.0
  %v943 = vmax.f32 %v879, 0.0
  %v944 = vmax.f32 %v880, 0.0
  %v945 = vmax.f32 %v881, 0.0
  %v946 = vmax.f32 %v882, 0.0
  %v947 = vmax.f32 %v883, 0.0
  %v948 = vmax.f32 %v884, 0.0
  %v949 = vmax.f32 %v885, 0.0
  %v950 = vmax.f32 %v886, 0.0
  %v951 = vmax.f32 %v887, 0.0
  %v952 = vmax.f32 %v888, 0.0
  %v953 = vmax.f32 %v889, 0.0
  %v954 = vmax.f32 %v890, 0.0
  %v955 = vmax.f32 %v891, 0.0
  %v956 = vmax.f32 %v892, 0.0
  %v957 = vmax.f32 %v893, 0.0
  %v958 = vmax.f32 %v894, 0.0
  %v959 = vmax.f32 %v895, 0.0
  %v960 = vmax.f32 %v896, 0.0
  %v961 = vmax.f32 %v897, 0.0
  %v962 = vmax.f32 %v898, 0.0
  %v963 = vmax.f32 %v899, 0.0
  %v964 = vmax.f32 %v900, 0.0
  %v965 = vmax.f32 %v901, 0.0
  %v966 = vmax.f32 %v902, 0.0
  %v967 = vmax.f32 %v903, 0.0
  %v968 = vmax.f32 %v904, 0.0
  %v969 = vmax.f32 %v905, 0.0
  %v970 = vmax.f32 %v906, %v907
  %v971 = vmax.f32 %v908, %v909
  %v972 = vmax.f32 %v910, %v911
  %v973 = vmax.f32 %v912, %v913
  %v974 = vmax.f32 %v914, %v915
  %v975 = vmax.f32 %v916, %v917
  %v976 = vmax.f32 %v918, %v919
  %v977 = vmax.f32 %v920, %v921
  %v978 = vmax.f32 %v922, %v923
  %v979 = vmax.f32 %v924, %v925
  %v980 = vmax.f32 %v926, %v927
  %v981 = vmax.f32 %v928, %v929
  %v982 = vmax.f32 %v930, %v931
  %v983 = vmax.f32 %v932, %v933
  %v984 = vmax.f32 %v934, %v935
  %v985 = vmax.f32 %v936, %v937
  %v986 = vmax.f32 %v938, %v939
  %v987 = vmax.f32 %v940, %v941
  %v988 = vmax.f32 %v942, %v943
  %v989 = vmax.f32 %v944, %v945
  %v990 = vmax.f32 %v946, %v947
  %v991 = vmax.f32 %v948, %v949
  %v992 = vmax.f32 %v950, %v951
  %v993 = vmax.f32 %v952, %v953
  %v994 = vmax.f32 %v954, %v955
  %v995 = vmax.f32 %v956, %v957
  %v996 = vmax.f32 %v958, %v959
  %v997 = vmax.f32 %v960, %v961
  %v998 = vmax.f32 %v962, %v963
  %v999 = vmax.f32 %v964, %v965
  %v1000 = vmax.f32 %v966, %v967
  %v1001 = vmax.f32 %v968, %v969
  %v1002 = vld [vmem:[%s5] sm:$0x1]
  %v1003 = vld [vmem:[%s6] sm:$0x1]
  %v1004 = vld [vmem:[%s4] sm:$0xf]
  %v1005 = vld [vmem:[%s4 + $0x4] sm:$0xf]
  %v1006 = vld [vmem:[%s4 + $0x8] sm:$0xf]
  %v1007 = vld [vmem:[%s4 + $0xc] sm:$0xf]
  %v1008 = vld [vmem:[%s4 + $0x10] sm:$0xf]
  %v1009 = vld [vmem:[%s4 + $0x14] sm:$0xf]
  %v1010 = vld [vmem:[%s4 + $0x18] sm:$0xf]
  %v1011 = vld [vmem:[%s4 + $0x1c] sm:$0xf]
  %v1012 = vpack.c.bf16 %v970, 0.0
  %v1013 = vpack.c.bf16 %v972, %v971
  %v1014 = vpack.c.bf16 %v974, %v973
  %v1015 = vpack.c.bf16 %v976, %v975
  %v1016 = vpack.c.bf16 %v978, %v977
  %v1017 = vpack.c.bf16 %v980, %v979
  %v1018 = vpack.c.bf16 %v982, %v981
  %v1019 = vpack.c.bf16 %v984, %v983
  %v1020 = vpack.c.bf16 %v986, %v985
  %v1021 = vpack.c.bf16 %v988, %v987
  %v1022 = vpack.c.bf16 %v990, %v989
  %v1023 = vpack.c.bf16 %v992, %v991
  %v1024 = vpack.c.bf16 %v994, %v993
  %v1025 = vpack.c.bf16 %v996, %v995
  %v1026 = vpack.c.bf16 %v998, %v997
  %v1027 = vpack.c.bf16 %v1000, %v999
  %s1028 = scalar_lea.vmem %s4, 32
  %v1029 = vld [vmem:[%s1028] sm:$0xf]
  %v1030 = vld [vmem:[%s1028 + $0x4] sm:$0xf]
  %v1031 = vld [vmem:[%s1028 + $0x8] sm:$0xf]
  %v1032 = vld [vmem:[%s1028 + $0xc] sm:$0xf]
  %v1033 = vld [vmem:[%s1028 + $0x10] sm:$0xf]
  %v1034 = vld [vmem:[%s1028 + $0x14] sm:$0xf]
  %v1035 = vld [vmem:[%s1028 + $0x18] sm:$0xf]
  %v1036 = vld [vmem:[%s1028 + $0x1c] sm:$0xf]
  %v1037 = vpack.c.bf16 %v971, %v970
  %v1038 = vpack.c.bf16 %v973, %v972
  %v1039 = vpack.c.bf16 %v975, %v974
  %v1040 = vpack.c.bf16 %v977, %v976
  %v1041 = vpack.c.bf16 %v979, %v978
  %v1042 = vpack.c.bf16 %v981, %v980
  %v1043 = vpack.c.bf16 %v983, %v982
  %v1044 = vpack.c.bf16 %v985, %v984
  %v1045 = vpack.c.bf16 %v987, %v986
  %v1046 = vpack.c.bf16 %v989, %v988
  %v1047 = vpack.c.bf16 %v991, %v990
  %v1048 = vpack.c.bf16 %v993, %v992
  %v1049 = vpack.c.bf16 %v995, %v994
  %v1050 = vpack.c.bf16 %v997, %v996
  %v1051 = vpack.c.bf16 %v999, %v998
  %v1052 = vpack.c.bf16 %v1001, %v1000
  %v1061 = vunpack.c.l.b16 %v1029
  %v1062 = vunpack.c.l.b16 %v1030
  %v1063 = vunpack.c.l.b16 %v1031
  %v1064 = vunpack.c.l.b16 %v1032
  %v1065 = vunpack.c.l.b16 %v1033
  %v1066 = vunpack.c.l.b16 %v1034
  %v1067 = vunpack.c.l.b16 %v1035
  %v1068 = vunpack.c.l.b16 %v1036
  %v1069 = vpack.c.b16 %v1062, %v1061
  %v1070 = vpack.c.b16 %v1064, %v1063
  %v1071 = vpack.c.b16 %v1066, %v1065
  %v1072 = vpack.c.b16 %v1068, %v1067
  %vm1077 = vcmask 523264
  %v1079 = vsel %vm1077, %v1037, 0
  %v1082 = vsel %vm1077, %v1038, 0
  %v1085 = vsel %vm1077, %v1039, 0
  %v1088 = vsel %vm1077, %v1040, 0
  %v1091 = vsel %vm1077, %v1041, 0
  %v1094 = vsel %vm1077, %v1042, 0
  %v1097 = vsel %vm1077, %v1043, 0
  %v1100 = vsel %vm1077, %v1044, 0
  %v1103 = vsel %vm1077, %v1045, 0
  %v1106 = vsel %vm1077, %v1046, 0
  %v1109 = vsel %vm1077, %v1047, 0
  %v1112 = vsel %vm1077, %v1048, 0
  %v1115 = vsel %vm1077, %v1049, 0
  %v1118 = vsel %vm1077, %v1050, 0
  %v1121 = vsel %vm1077, %v1051, 0
  %v1124 = vsel %vm1077, %v1052, 0
  %1126 = vmatpush.bf16.msra.mxu0 0
  %1127 = vmatpush.bf16.msra.mxu0 0
  %1128 = vmatpush.bf16.msra.mxu0 0
  %1129 = vmatpush.bf16.msra.mxu0 0
  %1130 = vmatpush.bf16.msra.mxu0 %v1072
  %1131 = vmatpush.bf16.msra.mxu0 %v1071
  %1132 = vmatpush.bf16.msra.mxu0 %v1070
  %1133 = vmatpush.bf16.msra.mxu0 %v1069
  %1134 = vmatmul.bf16.gmra.mxu0 %v1079
  %v1135 = vpop.f32.mrf.mxu0
  %v1136 = vadd.f32 0.0, %v1135
  %v1137 = vpop.f32.mrf.mxu0
  %v1138 = vadd.f32 0.0, %v1137
  %1139 = vmatmul.bf16.gmra.mxu0 %v1082
  %v1140 = vpop.f32.mrf.mxu0
  %v1141 = vadd.f32 0.0, %v1140
  %v1142 = vpop.f32.mrf.mxu0
  %v1143 = vadd.f32 0.0, %v1142
  %1144 = vmatmul.bf16.gmra.mxu0 %v1085
  %v1145 = vpop.f32.mrf.mxu0
  %v1146 = vadd.f32 0.0, %v1145
  %v1147 = vpop.f32.mrf.mxu0
  %v1148 = vadd.f32 0.0, %v1147
  %1149 = vmatmul.bf16.gmra.mxu0 %v1088
  %v1150 = vpop.f32.mrf.mxu0
  %v1151 = vadd.f32 0.0, %v1150
  %v1152 = vpop.f32.mrf.mxu0
  %v1153 = vadd.f32 0.0, %v1152
  %1154 = vmatmul.bf16.gmra.mxu0 %v1091
  %v1155 = vpop.f32.mrf.mxu0
  %v1156 = vadd.f32 0.0, %v1155
  %v1157 = vpop.f32.mrf.mxu0
  %v1158 = vadd.f32 0.0, %v1157
  %1159 = vmatmul.bf16.gmra.mxu0 %v1094
  %v1160 = vpop.f32.mrf.mxu0
  %v1161 = vadd.f32 0.0, %v1160
  %v1162 = vpop.f32.mrf.mxu0
  %v1163 = vadd.f32 0.0, %v1162
  %1164 = vmatmul.bf16.gmra.mxu0 %v1097
  %v1165 = vpop.f32.mrf.mxu0
  %v1166 = vadd.f32 0.0, %v1165
  %v1167 = vpop.f32.mrf.mxu0
  %v1168 = vadd.f32 0.0, %v1167
  %1169 = vmatmul.bf16.gmra.mxu0 %v1100
  %v1170 = vpop.f32.mrf.mxu0
  %v1171 = vadd.f32 0.0, %v1170
  %v1172 = vpop.f32.mrf.mxu0
  %v1173 = vadd.f32 0.0, %v1172
  %1174 = vmatmul.bf16.gmra.mxu0 %v1103
  %v1175 = vpop.f32.mrf.mxu0
  %v1176 = vadd.f32 0.0, %v1175
  %v1177 = vpop.f32.mrf.mxu0
  %v1178 = vadd.f32 0.0, %v1177
  %1179 = vmatmul.bf16.gmra.mxu0 %v1106
  %v1180 = vpop.f32.mrf.mxu0
  %v1181 = vadd.f32 0.0, %v1180
  %v1182 = vpop.f32.mrf.mxu0
  %v1183 = vadd.f32 0.0, %v1182
  %1184 = vmatmul.bf16.gmra.mxu0 %v1109
  %v1185 = vpop.f32.mrf.mxu0
  %v1186 = vadd.f32 0.0, %v1185
  %v1187 = vpop.f32.mrf.mxu0
  %v1188 = vadd.f32 0.0, %v1187
  %1189 = vmatmul.bf16.gmra.mxu0 %v1112
  %v1190 = vpop.f32.mrf.mxu0
  %v1191 = vadd.f32 0.0, %v1190
  %v1192 = vpop.f32.mrf.mxu0
  %v1193 = vadd.f32 0.0, %v1192
  %1194 = vmatmul.bf16.gmra.mxu0 %v1115
  %v1195 = vpop.f32.mrf.mxu0
  %v1196 = vadd.f32 0.0, %v1195
  %v1197 = vpop.f32.mrf.mxu0
  %v1198 = vadd.f32 0.0, %v1197
  %1199 = vmatmul.bf16.gmra.mxu0 %v1118
  %v1200 = vpop.f32.mrf.mxu0
  %v1201 = vadd.f32 0.0, %v1200
  %v1202 = vpop.f32.mrf.mxu0
  %v1203 = vadd.f32 0.0, %v1202
  %1204 = vmatmul.bf16.gmra.mxu0 %v1121
  %v1205 = vpop.f32.mrf.mxu0
  %v1206 = vadd.f32 0.0, %v1205
  %v1207 = vpop.f32.mrf.mxu0
  %v1208 = vadd.f32 0.0, %v1207
  %1209 = vmatmul.bf16.gmra.mxu0 %v1124
  %v1210 = vpop.f32.mrf.mxu0
  %v1211 = vadd.f32 0.0, %v1210
  %v1212 = vpop.f32.mrf.mxu0
  %v1213 = vadd.f32 0.0, %v1212
  %1214 = vdwg.mxu0
  %v1223 = vunpack.c.l.b16 %v1004
  %v1224 = vunpack.c.l.b16 %v1005
  %v1225 = vunpack.c.l.b16 %v1006
  %v1226 = vunpack.c.l.b16 %v1007
  %v1227 = vunpack.c.l.b16 %v1008
  %v1228 = vunpack.c.l.b16 %v1009
  %v1229 = vunpack.c.l.b16 %v1010
  %v1230 = vunpack.c.l.b16 %v1011
  %v1231 = vpack.c.b16 %v1224, %v1223
  %v1232 = vpack.c.b16 %v1226, %v1225
  %v1233 = vpack.c.b16 %v1228, %v1227
  %v1234 = vpack.c.b16 %v1230, %v1229
  %v1240 = vsel %vm1077, %v1012, 0
  %v1243 = vsel %vm1077, %v1013, 0
  %v1246 = vsel %vm1077, %v1014, 0
  %v1249 = vsel %vm1077, %v1015, 0
  %v1252 = vsel %vm1077, %v1016, 0
  %v1255 = vsel %vm1077, %v1017, 0
  %v1258 = vsel %vm1077, %v1018, 0
  %v1261 = vsel %vm1077, %v1019, 0
  %v1264 = vsel %vm1077, %v1020, 0
  %v1267 = vsel %vm1077, %v1021, 0
  %v1270 = vsel %vm1077, %v1022, 0
  %v1273 = vsel %vm1077, %v1023, 0
  %v1276 = vsel %vm1077, %v1024, 0
  %v1279 = vsel %vm1077, %v1025, 0
  %v1282 = vsel %vm1077, %v1026, 0
  %v1285 = vsel %vm1077, %v1027, 0
  %1287 = vmatpush.bf16.msra.mxu0 0
  %1288 = vmatpush.bf16.msra.mxu0 0
  %1289 = vmatpush.bf16.msra.mxu0 0
  %1290 = vmatpush.bf16.msra.mxu0 0
  %1291 = vmatpush.bf16.msra.mxu0 %v1234
  %1292 = vmatpush.bf16.msra.mxu0 %v1233
  %1293 = vmatpush.bf16.msra.mxu0 %v1232
  %1294 = vmatpush.bf16.msra.mxu0 %v1231
  %1295 = vmatmul.bf16.gmra.mxu0 %v1240
  %v1296 = vpop.f32.mrf.mxu0
  %v1297 = vadd.f32 %v1136, %v1296
  %v1298 = vpop.f32.mrf.mxu0
  %v1299 = vadd.f32 %v1138, %v1298
  %1300 = vmatmul.bf16.gmra.mxu0 %v1243
  %v1301 = vpop.f32.mrf.mxu0
  %v1302 = vadd.f32 %v1141, %v1301
  %v1303 = vpop.f32.mrf.mxu0
  %v1304 = vadd.f32 %v1143, %v1303
  %1305 = vmatmul.bf16.gmra.mxu0 %v1246
  %v1306 = vpop.f32.mrf.mxu0
  %v1307 = vadd.f32 %v1146, %v1306
  %v1308 = vpop.f32.mrf.mxu0
  %v1309 = vadd.f32 %v1148, %v1308
  %1310 = vmatmul.bf16.gmra.mxu0 %v1249
  %v1311 = vpop.f32.mrf.mxu0
  %v1312 = vadd.f32 %v1151, %v1311
  %v1313 = vpop.f32.mrf.mxu0
  %v1314 = vadd.f32 %v1153, %v1313
  %1315 = vmatmul.bf16.gmra.mxu0 %v1252
  %v1316 = vpop.f32.mrf.mxu0
  %v1317 = vadd.f32 %v1156, %v1316
  %v1318 = vpop.f32.mrf.mxu0
  %v1319 = vadd.f32 %v1158, %v1318
  %1320 = vmatmul.bf16.gmra.mxu0 %v1255
  %v1321 = vpop.f32.mrf.mxu0
  %v1322 = vadd.f32 %v1161, %v1321
  %v1323 = vpop.f32.mrf.mxu0
  %v1324 = vadd.f32 %v1163, %v1323
  %1325 = vmatmul.bf16.gmra.mxu0 %v1258
  %v1326 = vpop.f32.mrf.mxu0
  %v1327 = vadd.f32 %v1166, %v1326
  %v1328 = vpop.f32.mrf.mxu0
  %v1329 = vadd.f32 %v1168, %v1328
  %1330 = vmatmul.bf16.gmra.mxu0 %v1261
  %v1331 = vpop.f32.mrf.mxu0
  %v1332 = vadd.f32 %v1171, %v1331
  %v1333 = vpop.f32.mrf.mxu0
  %v1334 = vadd.f32 %v1173, %v1333
  %1335 = vmatmul.bf16.gmra.mxu0 %v1264
  %v1336 = vpop.f32.mrf.mxu0
  %v1337 = vadd.f32 %v1176, %v1336
  %v1338 = vpop.f32.mrf.mxu0
  %v1339 = vadd.f32 %v1178, %v1338
  %1340 = vmatmul.bf16.gmra.mxu0 %v1267
  %v1341 = vpop.f32.mrf.mxu0
  %v1342 = vadd.f32 %v1181, %v1341
  %v1343 = vpop.f32.mrf.mxu0
  %v1344 = vadd.f32 %v1183, %v1343
  %1345 = vmatmul.bf16.gmra.mxu0 %v1270
  %v1346 = vpop.f32.mrf.mxu0
  %v1347 = vadd.f32 %v1186, %v1346
  %v1348 = vpop.f32.mrf.mxu0
  %v1349 = vadd.f32 %v1188, %v1348
  %1350 = vmatmul.bf16.gmra.mxu0 %v1273
  %v1351 = vpop.f32.mrf.mxu0
  %v1352 = vadd.f32 %v1191, %v1351
  %v1353 = vpop.f32.mrf.mxu0
  %v1354 = vadd.f32 %v1193, %v1353
  %1355 = vmatmul.bf16.gmra.mxu0 %v1276
  %v1356 = vpop.f32.mrf.mxu0
  %v1357 = vadd.f32 %v1196, %v1356
  %v1358 = vpop.f32.mrf.mxu0
  %v1359 = vadd.f32 %v1198, %v1358
  %1360 = vmatmul.bf16.gmra.mxu0 %v1279
  %v1361 = vpop.f32.mrf.mxu0
  %v1362 = vadd.f32 %v1201, %v1361
  %v1363 = vpop.f32.mrf.mxu0
  %v1364 = vadd.f32 %v1203, %v1363
  %1365 = vmatmul.bf16.gmra.mxu0 %v1282
  %v1366 = vpop.f32.mrf.mxu0
  %v1367 = vadd.f32 %v1206, %v1366
  %v1368 = vpop.f32.mrf.mxu0
  %v1369 = vadd.f32 %v1208, %v1368
  %1370 = vmatmul.bf16.gmra.mxu0 %v1285
  %v1371 = vpop.f32.mrf.mxu0
  %v1372 = vadd.f32 %v1211, %v1371
  %v1373 = vpop.f32.mrf.mxu0
  %v1374 = vadd.f32 %v1213, %v1373
  %1375 = vdwg.mxu0
  %s1376 = scalar_lea.vmem %s4, 64
  %v1377 = vld [vmem:[%s1376] sm:$0xf]
  %v1378 = vld [vmem:[%s1376 + $0x4] sm:$0xf]
  %v1379 = vld [vmem:[%s1376 + $0x8] sm:$0xf]
  %v1380 = vld [vmem:[%s1376 + $0xc] sm:$0xf]
  %v1381 = vld [vmem:[%s1376 + $0x10] sm:$0xf]
  %v1382 = vld [vmem:[%s1376 + $0x14] sm:$0xf]
  %v1383 = vld [vmem:[%s1376 + $0x18] sm:$0xf]
  %v1384 = vld [vmem:[%s1376 + $0x1c] sm:$0xf]
  %v1385 = vpack.c.bf16 0.0, %v1001
  %v1394 = vunpack.c.l.b16 %v1377
  %v1395 = vunpack.c.l.b16 %v1378
  %v1396 = vunpack.c.l.b16 %v1379
  %v1397 = vunpack.c.l.b16 %v1380
  %v1398 = vunpack.c.l.b16 %v1381
  %v1399 = vunpack.c.l.b16 %v1382
  %v1400 = vunpack.c.l.b16 %v1383
  %v1401 = vunpack.c.l.b16 %v1384
  %v1402 = vpack.c.b16 %v1395, %v1394
  %v1403 = vpack.c.b16 %v1397, %v1396
  %v1404 = vpack.c.b16 %v1399, %v1398
  %v1405 = vpack.c.b16 %v1401, %v1400
  %v1411 = vsel %vm1077, %v1385, 0
  %1413 = vmatpush.bf16.msra.mxu0 0
  %1414 = vmatpush.bf16.msra.mxu0 0
  %1415 = vmatpush.bf16.msra.mxu0 0
  %1416 = vmatpush.bf16.msra.mxu0 0
  %1417 = vmatpush.bf16.msra.mxu0 %v1405
  %1418 = vmatpush.bf16.msra.mxu0 %v1404
  %1419 = vmatpush.bf16.msra.mxu0 %v1403
  %1420 = vmatpush.bf16.msra.mxu0 %v1402
  %1421 = vmatmul.bf16.gmra.mxu0 %v1243
  %v1422 = vpop.f32.mrf.mxu0
  %v1423 = vadd.f32 0.0, %v1422
  %v1424 = vpop.f32.mrf.mxu0
  %v1425 = vadd.f32 0.0, %v1424
  %1426 = vmatmul.bf16.gmra.mxu0 %v1246
  %v1427 = vpop.f32.mrf.mxu0
  %v1428 = vadd.f32 0.0, %v1427
  %v1429 = vpop.f32.mrf.mxu0
  %v1430 = vadd.f32 0.0, %v1429
  %1431 = vmatmul.bf16.gmra.mxu0 %v1249
  %v1432 = vpop.f32.mrf.mxu0
  %v1433 = vadd.f32 0.0, %v1432
  %v1434 = vpop.f32.mrf.mxu0
  %v1435 = vadd.f32 0.0, %v1434
  %1436 = vmatmul.bf16.gmra.mxu0 %v1252
  %v1437 = vpop.f32.mrf.mxu0
  %v1438 = vadd.f32 0.0, %v1437
  %v1439 = vpop.f32.mrf.mxu0
  %v1440 = vadd.f32 0.0, %v1439
  %1441 = vmatmul.bf16.gmra.mxu0 %v1255
  %v1442 = vpop.f32.mrf.mxu0
  %v1443 = vadd.f32 0.0, %v1442
  %v1444 = vpop.f32.mrf.mxu0
  %v1445 = vadd.f32 0.0, %v1444
  %1446 = vmatmul.bf16.gmra.mxu0 %v1258
  %v1447 = vpop.f32.mrf.mxu0
  %v1448 = vadd.f32 0.0, %v1447
  %v1449 = vpop.f32.mrf.mxu0
  %v1450 = vadd.f32 0.0, %v1449
  %1451 = vmatmul.bf16.gmra.mxu0 %v1261
  %v1452 = vpop.f32.mrf.mxu0
  %v1453 = vadd.f32 0.0, %v1452
  %v1454 = vpop.f32.mrf.mxu0
  %v1455 = vadd.f32 0.0, %v1454
  %1456 = vmatmul.bf16.gmra.mxu0 %v1264
  %v1457 = vpop.f32.mrf.mxu0
  %v1458 = vadd.f32 0.0, %v1457
  %v1459 = vpop.f32.mrf.mxu0
  %v1460 = vadd.f32 0.0, %v1459
  %1461 = vmatmul.bf16.gmra.mxu0 %v1267
  %v1462 = vpop.f32.mrf.mxu0
  %v1463 = vadd.f32 0.0, %v1462
  %v1464 = vpop.f32.mrf.mxu0
  %v1465 = vadd.f32 0.0, %v1464
  %1466 = vmatmul.bf16.gmra.mxu0 %v1270
  %v1467 = vpop.f32.mrf.mxu0
  %v1468 = vadd.f32 0.0, %v1467
  %v1469 = vpop.f32.mrf.mxu0
  %v1470 = vadd.f32 0.0, %v1469
  %1471 = vmatmul.bf16.gmra.mxu0 %v1273
  %v1472 = vpop.f32.mrf.mxu0
  %v1473 = vadd.f32 0.0, %v1472
  %v1474 = vpop.f32.mrf.mxu0
  %v1475 = vadd.f32 0.0, %v1474
  %1476 = vmatmul.bf16.gmra.mxu0 %v1276
  %v1477 = vpop.f32.mrf.mxu0
  %v1478 = vadd.f32 0.0, %v1477
  %v1479 = vpop.f32.mrf.mxu0
  %v1480 = vadd.f32 0.0, %v1479
  %1481 = vmatmul.bf16.gmra.mxu0 %v1279
  %v1482 = vpop.f32.mrf.mxu0
  %v1483 = vadd.f32 0.0, %v1482
  %v1484 = vpop.f32.mrf.mxu0
  %v1485 = vadd.f32 0.0, %v1484
  %1486 = vmatmul.bf16.gmra.mxu0 %v1282
  %v1487 = vpop.f32.mrf.mxu0
  %v1488 = vadd.f32 0.0, %v1487
  %v1489 = vpop.f32.mrf.mxu0
  %v1490 = vadd.f32 0.0, %v1489
  %1491 = vmatmul.bf16.gmra.mxu0 %v1285
  %v1492 = vpop.f32.mrf.mxu0
  %v1493 = vadd.f32 0.0, %v1492
  %v1494 = vpop.f32.mrf.mxu0
  %v1495 = vadd.f32 0.0, %v1494
  %1496 = vmatmul.bf16.gmra.mxu0 %v1411
  %v1497 = vpop.f32.mrf.mxu0
  %v1498 = vadd.f32 0.0, %v1497
  %v1499 = vpop.f32.mrf.mxu0
  %v1500 = vadd.f32 0.0, %v1499
  %1501 = vdwg.mxu0
  %v1502 = vadd.f32 %v1297, %v1423
  %v1503 = vadd.f32 %v1299, %v1425
  %v1504 = vadd.f32 %v1302, %v1428
  %v1505 = vadd.f32 %v1304, %v1430
  %v1506 = vadd.f32 %v1307, %v1433
  %v1507 = vadd.f32 %v1309, %v1435
  %v1508 = vadd.f32 %v1312, %v1438
  %v1509 = vadd.f32 %v1314, %v1440
  %v1510 = vadd.f32 %v1317, %v1443
  %v1511 = vadd.f32 %v1319, %v1445
  %v1512 = vadd.f32 %v1322, %v1448
  %v1513 = vadd.f32 %v1324, %v1450
  %v1514 = vadd.f32 %v1327, %v1453
  %v1515 = vadd.f32 %v1329, %v1455
  %v1516 = vadd.f32 %v1332, %v1458
  %v1517 = vadd.f32 %v1334, %v1460
  %v1518 = vadd.f32 %v1337, %v1463
  %v1519 = vadd.f32 %v1339, %v1465
  %v1520 = vadd.f32 %v1342, %v1468
  %v1521 = vadd.f32 %v1344, %v1470
  %v1522 = vadd.f32 %v1347, %v1473
  %v1523 = vadd.f32 %v1349, %v1475
  %v1524 = vadd.f32 %v1352, %v1478
  %v1525 = vadd.f32 %v1354, %v1480
  %v1526 = vadd.f32 %v1357, %v1483
  %v1527 = vadd.f32 %v1359, %v1485
  %v1528 = vadd.f32 %v1362, %v1488
  %v1529 = vadd.f32 %v1364, %v1490
  %v1530 = vadd.f32 %v1367, %v1493
  %v1531 = vadd.f32 %v1369, %v1495
  %v1532 = vadd.f32 %v1372, %v1498
  %v1533 = vadd.f32 %v1374, %v1500
  %v1535 = vperm.slane %v1002, 0
  %v1537 = vmul.f32 %v1502, %v1535
  %v1538 = vmul.f32 %v1503, %v1535
  %v1539 = vmul.f32 %v1504, %v1535
  %v1540 = vmul.f32 %v1505, %v1535
  %v1541 = vmul.f32 %v1506, %v1535
  %v1542 = vmul.f32 %v1507, %v1535
  %v1543 = vmul.f32 %v1508, %v1535
  %v1544 = vmul.f32 %v1509, %v1535
  %v1545 = vmul.f32 %v1510, %v1535
  %v1546 = vmul.f32 %v1511, %v1535
  %v1547 = vmul.f32 %v1512, %v1535
  %v1548 = vmul.f32 %v1513, %v1535
  %v1549 = vmul.f32 %v1514, %v1535
  %v1550 = vmul.f32 %v1515, %v1535
  %v1551 = vmul.f32 %v1516, %v1535
  %v1552 = vmul.f32 %v1517, %v1535
  %v1553 = vmul.f32 %v1518, %v1535
  %v1554 = vmul.f32 %v1519, %v1535
  %v1555 = vmul.f32 %v1520, %v1535
  %v1556 = vmul.f32 %v1521, %v1535
  %v1557 = vmul.f32 %v1522, %v1535
  %v1558 = vmul.f32 %v1523, %v1535
  %v1559 = vmul.f32 %v1524, %v1535
  %v1560 = vmul.f32 %v1525, %v1535
  %v1561 = vmul.f32 %v1526, %v1535
  %v1562 = vmul.f32 %v1527, %v1535
  %v1563 = vmul.f32 %v1528, %v1535
  %v1564 = vmul.f32 %v1529, %v1535
  %v1565 = vmul.f32 %v1530, %v1535
  %v1566 = vmul.f32 %v1531, %v1535
  %v1567 = vmul.f32 %v1532, %v1535
  %v1568 = vmul.f32 %v1533, %v1535
  %v1570 = vperm.slane %v1003, 0
  %v1572 = vadd.f32 %v1537, %v1570
  %v1573 = vadd.f32 %v1538, %v1570
  %v1574 = vadd.f32 %v1539, %v1570
  %v1575 = vadd.f32 %v1540, %v1570
  %v1576 = vadd.f32 %v1541, %v1570
  %v1577 = vadd.f32 %v1542, %v1570
  %v1578 = vadd.f32 %v1543, %v1570
  %v1579 = vadd.f32 %v1544, %v1570
  %v1580 = vadd.f32 %v1545, %v1570
  %v1581 = vadd.f32 %v1546, %v1570
  %v1582 = vadd.f32 %v1547, %v1570
  %v1583 = vadd.f32 %v1548, %v1570
  %v1584 = vadd.f32 %v1549, %v1570
  %v1585 = vadd.f32 %v1550, %v1570
  %v1586 = vadd.f32 %v1551, %v1570
  %v1587 = vadd.f32 %v1552, %v1570
  %v1588 = vadd.f32 %v1553, %v1570
  %v1589 = vadd.f32 %v1554, %v1570
  %v1590 = vadd.f32 %v1555, %v1570
  %v1591 = vadd.f32 %v1556, %v1570
  %v1592 = vadd.f32 %v1557, %v1570
  %v1593 = vadd.f32 %v1558, %v1570
  %v1594 = vadd.f32 %v1559, %v1570
  %v1595 = vadd.f32 %v1560, %v1570
  %v1596 = vadd.f32 %v1561, %v1570
  %v1597 = vadd.f32 %v1562, %v1570
  %v1598 = vadd.f32 %v1563, %v1570
  %v1599 = vadd.f32 %v1564, %v1570
  %v1600 = vadd.f32 %v1565, %v1570
  %v1601 = vadd.f32 %v1566, %v1570
  %v1602 = vadd.f32 %v1567, %v1570
  %v1603 = vadd.f32 %v1568, %v1570
  %v1604 = vmax.f32 %v1572, 0.0
  %v1605 = vmax.f32 %v1573, 0.0
  %v1606 = vmax.f32 %v1574, 0.0
  %v1607 = vmax.f32 %v1575, 0.0
  %v1608 = vmax.f32 %v1576, 0.0
  %v1609 = vmax.f32 %v1577, 0.0
  %v1610 = vmax.f32 %v1578, 0.0
  %v1611 = vmax.f32 %v1579, 0.0
  %v1612 = vmax.f32 %v1580, 0.0
  %v1613 = vmax.f32 %v1581, 0.0
  %v1614 = vmax.f32 %v1582, 0.0
  %v1615 = vmax.f32 %v1583, 0.0
  %v1616 = vmax.f32 %v1584, 0.0
  %v1617 = vmax.f32 %v1585, 0.0
  %v1618 = vmax.f32 %v1586, 0.0
  %v1619 = vmax.f32 %v1587, 0.0
  %v1620 = vmax.f32 %v1588, 0.0
  %v1621 = vmax.f32 %v1589, 0.0
  %v1622 = vmax.f32 %v1590, 0.0
  %v1623 = vmax.f32 %v1591, 0.0
  %v1624 = vmax.f32 %v1592, 0.0
  %v1625 = vmax.f32 %v1593, 0.0
  %v1626 = vmax.f32 %v1594, 0.0
  %v1627 = vmax.f32 %v1595, 0.0
  %v1628 = vmax.f32 %v1596, 0.0
  %v1629 = vmax.f32 %v1597, 0.0
  %v1630 = vmax.f32 %v1598, 0.0
  %v1631 = vmax.f32 %v1599, 0.0
  %v1632 = vmax.f32 %v1600, 0.0
  %v1633 = vmax.f32 %v1601, 0.0
  %v1634 = vmax.f32 %v1602, 0.0
  %v1635 = vmax.f32 %v1603, 0.0
  %v1636 = vmax.f32 %v1604, %v1605
  %v1637 = vmax.f32 %v1606, %v1607
  %v1638 = vmax.f32 %v1608, %v1609
  %v1639 = vmax.f32 %v1610, %v1611
  %v1640 = vmax.f32 %v1612, %v1613
  %v1641 = vmax.f32 %v1614, %v1615
  %v1642 = vmax.f32 %v1616, %v1617
  %v1643 = vmax.f32 %v1618, %v1619
  %v1644 = vmax.f32 %v1620, %v1621
  %v1645 = vmax.f32 %v1622, %v1623
  %v1646 = vmax.f32 %v1624, %v1625
  %v1647 = vmax.f32 %v1626, %v1627
  %v1648 = vmax.f32 %v1628, %v1629
  %v1649 = vmax.f32 %v1630, %v1631
  %v1650 = vmax.f32 %v1632, %v1633
  %v1651 = vmax.f32 %v1634, %v1635
  %v1652 = vld [vmem:[%s8] sm:$0x3]
  %v1653 = vld [vmem:[%s7] sm:$0xff]
  %v1654 = vld [vmem:[%s7 + $0x8] sm:$0xff]
  %v1655 = vld [vmem:[%s7 + $0x10] sm:$0xff]
  %v1656 = vld [vmem:[%s7 + $0x18] sm:$0xff]
  %v1657 = vld [vmem:[%s7 + $0x20] sm:$0xff]
  %v1658 = vld [vmem:[%s7 + $0x28] sm:$0xff]
  %v1659 = vld [vmem:[%s7 + $0x30] sm:$0xff]
  %v1660 = vld [vmem:[%s7 + $0x38] sm:$0xff]
  %v1661 = vld [vmem:[%s7 + $0x40] sm:$0xff]
  %v1662 = vld [vmem:[%s7 + $0x48] sm:$0xff]
  %v1663 = vld [vmem:[%s7 + $0x50] sm:$0xff]
  %v1664 = vld [vmem:[%s7 + $0x58] sm:$0xff]
  %v1665 = vld [vmem:[%s7 + $0x60] sm:$0xff]
  %v1666 = vld [vmem:[%s7 + $0x68] sm:$0xff]
  %v1667 = vld [vmem:[%s7 + $0x70] sm:$0xff]
  %v1668 = vld [vmem:[%s7 + $0x78] sm:$0xff]
  %v1669 = vpack.c.bf16 %v1636, 0.0
  %v1670 = vpack.c.bf16 %v1638, %v1637
  %v1671 = vpack.c.bf16 %v1640, %v1639
  %v1672 = vpack.c.bf16 %v1642, %v1641
  %v1673 = vpack.c.bf16 %v1644, %v1643
  %v1674 = vpack.c.bf16 %v1646, %v1645
  %v1675 = vpack.c.bf16 %v1648, %v1647
  %v1676 = vpack.c.bf16 %v1650, %v1649
  %s1677 = scalar_lea.vmem %s7, 128
  %v1678 = vld [vmem:[%s1677] sm:$0xff]
  %v1679 = vld [vmem:[%s1677 + $0x8] sm:$0xff]
  %v1680 = vld [vmem:[%s1677 + $0x10] sm:$0xff]
  %v1681 = vld [vmem:[%s1677 + $0x18] sm:$0xff]
  %v1682 = vld [vmem:[%s1677 + $0x20] sm:$0xff]
  %v1683 = vld [vmem:[%s1677 + $0x28] sm:$0xff]
  %v1684 = vld [vmem:[%s1677 + $0x30] sm:$0xff]
  %v1685 = vld [vmem:[%s1677 + $0x38] sm:$0xff]
  %v1686 = vld [vmem:[%s1677 + $0x40] sm:$0xff]
  %v1687 = vld [vmem:[%s1677 + $0x48] sm:$0xff]
  %v1688 = vld [vmem:[%s1677 + $0x50] sm:$0xff]
  %v1689 = vld [vmem:[%s1677 + $0x58] sm:$0xff]
  %v1690 = vld [vmem:[%s1677 + $0x60] sm:$0xff]
  %v1691 = vld [vmem:[%s1677 + $0x68] sm:$0xff]
  %v1692 = vld [vmem:[%s1677 + $0x70] sm:$0xff]
  %v1693 = vld [vmem:[%s1677 + $0x78] sm:$0xff]
  %v1694 = vpack.c.bf16 %v1637, %v1636
  %v1695 = vpack.c.bf16 %v1639, %v1638
  %v1696 = vpack.c.bf16 %v1641, %v1640
  %v1697 = vpack.c.bf16 %v1643, %v1642
  %v1698 = vpack.c.bf16 %v1645, %v1644
  %v1699 = vpack.c.bf16 %v1647, %v1646
  %v1700 = vpack.c.bf16 %v1649, %v1648
  %v1701 = vpack.c.bf16 %v1651, %v1650
  %v1718 = vunpack.c.l.b16 %v1678
  %v1719 = vunpack.c.h.b16 %v1678
  %v1720 = vunpack.c.l.b16 %v1679
  %v1721 = vunpack.c.h.b16 %v1679
  %v1722 = vunpack.c.l.b16 %v1680
  %v1723 = vunpack.c.h.b16 %v1680
  %v1724 = vunpack.c.l.b16 %v1681
  %v1725 = vunpack.c.h.b16 %v1681
  %v1726 = vunpack.c.l.b16 %v1682
  %v1727 = vunpack.c.h.b16 %v1682
  %v1728 = vunpack.c.l.b16 %v1683
  %v1729 = vunpack.c.h.b16 %v1683
  %v1730 = vunpack.c.l.b16 %v1684
  %v1731 = vunpack.c.h.b16 %v1684
  %v1732 = vunpack.c.l.b16 %v1685
  %v1733 = vunpack.c.h.b16 %v1685
  %v1734 = vunpack.c.l.b16 %v1686
  %v1735 = vunpack.c.h.b16 %v1686
  %v1736 = vunpack.c.l.b16 %v1687
  %v1737 = vunpack.c.h.b16 %v1687
  %v1738 = vunpack.c.l.b16 %v1688
  %v1739 = vunpack.c.h.b16 %v1688
  %v1740 = vunpack.c.l.b16 %v1689
  %v1741 = vunpack.c.h.b16 %v1689
  %v1742 = vunpack.c.l.b16 %v1690
  %v1743 = vunpack.c.h.b16 %v1690
  %v1744 = vunpack.c.l.b16 %v1691
  %v1745 = vunpack.c.h.b16 %v1691
  %v1746 = vunpack.c.l.b16 %v1692
  %v1747 = vunpack.c.h.b16 %v1692
  %v1748 = vunpack.c.l.b16 %v1693
  %v1749 = vunpack.c.h.b16 %v1693
  %v1750 = vpack.c.b16 %v1720, %v1718
  %v1751 = vpack.c.b16 %v1721, %v1719
  %v1752 = vpack.c.b16 %v1724, %v1722
  %v1753 = vpack.c.b16 %v1725, %v1723
  %v1754 = vpack.c.b16 %v1728, %v1726
  %v1755 = vpack.c.b16 %v1729, %v1727
  %v1756 = vpack.c.b16 %v1732, %v1730
  %v1757 = vpack.c.b16 %v1733, %v1731
  %v1758 = vpack.c.b16 %v1736, %v1734
  %v1759 = vpack.c.b16 %v1737, %v1735
  %v1760 = vpack.c.b16 %v1740, %v1738
  %v1761 = vpack.c.b16 %v1741, %v1739
  %v1762 = vpack.c.b16 %v1744, %v1742
  %v1763 = vpack.c.b16 %v1745, %v1743
  %v1764 = vpack.c.b16 %v1748, %v1746
  %v1765 = vpack.c.b16 %v1749, %v1747
  %1782 = vmatpush.bf16.msra.mxu0 %v1764
  %1783 = vmatpush.bf16.msra.mxu0 %v1762
  %1784 = vmatpush.bf16.msra.mxu0 %v1760
  %1785 = vmatpush.bf16.msra.mxu0 %v1758
  %1786 = vmatpush.bf16.msra.mxu0 %v1756
  %1787 = vmatpush.bf16.msra.mxu0 %v1754
  %1788 = vmatpush.bf16.msra.mxu0 %v1752
  %1789 = vmatpush.bf16.msra.mxu0 %v1750
  %1790 = vmatmul.bf16.gmra.mxu0 %v1694
  %v1791 = vpop.f32.mrf.mxu0
  %v1792 = vadd.f32 0.0, %v1791
  %v1793 = vpop.f32.mrf.mxu0
  %v1794 = vadd.f32 0.0, %v1793
  %1795 = vmatmul.bf16.gmra.mxu0 %v1695
  %v1796 = vpop.f32.mrf.mxu0
  %v1797 = vadd.f32 0.0, %v1796
  %v1798 = vpop.f32.mrf.mxu0
  %v1799 = vadd.f32 0.0, %v1798
  %1800 = vmatmul.bf16.gmra.mxu0 %v1696
  %v1801 = vpop.f32.mrf.mxu0
  %v1802 = vadd.f32 0.0, %v1801
  %v1803 = vpop.f32.mrf.mxu0
  %v1804 = vadd.f32 0.0, %v1803
  %1805 = vmatmul.bf16.gmra.mxu0 %v1697
  %v1806 = vpop.f32.mrf.mxu0
  %v1807 = vadd.f32 0.0, %v1806
  %v1808 = vpop.f32.mrf.mxu0
  %v1809 = vadd.f32 0.0, %v1808
  %1810 = vmatmul.bf16.gmra.mxu0 %v1698
  %v1811 = vpop.f32.mrf.mxu0
  %v1812 = vadd.f32 0.0, %v1811
  %v1813 = vpop.f32.mrf.mxu0
  %v1814 = vadd.f32 0.0, %v1813
  %1815 = vmatmul.bf16.gmra.mxu0 %v1699
  %v1816 = vpop.f32.mrf.mxu0
  %v1817 = vadd.f32 0.0, %v1816
  %v1818 = vpop.f32.mrf.mxu0
  %v1819 = vadd.f32 0.0, %v1818
  %1820 = vmatmul.bf16.gmra.mxu0 %v1700
  %v1821 = vpop.f32.mrf.mxu0
  %v1822 = vadd.f32 0.0, %v1821
  %v1823 = vpop.f32.mrf.mxu0
  %v1824 = vadd.f32 0.0, %v1823
  %1825 = vmatmul.bf16.gmra.mxu0 %v1701
  %v1826 = vpop.f32.mrf.mxu0
  %v1827 = vadd.f32 0.0, %v1826
  %v1828 = vpop.f32.mrf.mxu0
  %v1829 = vadd.f32 0.0, %v1828
  %1830 = vdwg.mxu0
  %1831 = vmatpush.bf16.msra.mxu0 %v1765
  %1832 = vmatpush.bf16.msra.mxu0 %v1763
  %1833 = vmatpush.bf16.msra.mxu0 %v1761
  %1834 = vmatpush.bf16.msra.mxu0 %v1759
  %1835 = vmatpush.bf16.msra.mxu0 %v1757
  %1836 = vmatpush.bf16.msra.mxu0 %v1755
  %1837 = vmatpush.bf16.msra.mxu0 %v1753
  %1838 = vmatpush.bf16.msra.mxu0 %v1751
  %1839 = vmatmul.bf16.gmra.mxu0 %v1694
  %v1840 = vpop.f32.mrf.mxu0
  %v1841 = vadd.f32 0.0, %v1840
  %v1842 = vpop.f32.mrf.mxu0
  %v1843 = vadd.f32 0.0, %v1842
  %1844 = vmatmul.bf16.gmra.mxu0 %v1695
  %v1845 = vpop.f32.mrf.mxu0
  %v1846 = vadd.f32 0.0, %v1845
  %v1847 = vpop.f32.mrf.mxu0
  %v1848 = vadd.f32 0.0, %v1847
  %1849 = vmatmul.bf16.gmra.mxu0 %v1696
  %v1850 = vpop.f32.mrf.mxu0
  %v1851 = vadd.f32 0.0, %v1850
  %v1852 = vpop.f32.mrf.mxu0
  %v1853 = vadd.f32 0.0, %v1852
  %1854 = vmatmul.bf16.gmra.mxu0 %v1697
  %v1855 = vpop.f32.mrf.mxu0
  %v1856 = vadd.f32 0.0, %v1855
  %v1857 = vpop.f32.mrf.mxu0
  %v1858 = vadd.f32 0.0, %v1857
  %1859 = vmatmul.bf16.gmra.mxu0 %v1698
  %v1860 = vpop.f32.mrf.mxu0
  %v1861 = vadd.f32 0.0, %v1860
  %v1862 = vpop.f32.mrf.mxu0
  %v1863 = vadd.f32 0.0, %v1862
  %1864 = vmatmul.bf16.gmra.mxu0 %v1699
  %v1865 = vpop.f32.mrf.mxu0
  %v1866 = vadd.f32 0.0, %v1865
  %v1867 = vpop.f32.mrf.mxu0
  %v1868 = vadd.f32 0.0, %v1867
  %1869 = vmatmul.bf16.gmra.mxu0 %v1700
  %v1870 = vpop.f32.mrf.mxu0
  %v1871 = vadd.f32 0.0, %v1870
  %v1872 = vpop.f32.mrf.mxu0
  %v1873 = vadd.f32 0.0, %v1872
  %1874 = vmatmul.bf16.gmra.mxu0 %v1701
  %v1875 = vpop.f32.mrf.mxu0
  %v1876 = vadd.f32 0.0, %v1875
  %v1877 = vpop.f32.mrf.mxu0
  %v1878 = vadd.f32 0.0, %v1877
  %1879 = vdwg.mxu0
  %v1896 = vunpack.c.l.b16 %v1653
  %v1897 = vunpack.c.h.b16 %v1653
  %v1898 = vunpack.c.l.b16 %v1654
  %v1899 = vunpack.c.h.b16 %v1654
  %v1900 = vunpack.c.l.b16 %v1655
  %v1901 = vunpack.c.h.b16 %v1655
  %v1902 = vunpack.c.l.b16 %v1656
  %v1903 = vunpack.c.h.b16 %v1656
  %v1904 = vunpack.c.l.b16 %v1657
  %v1905 = vunpack.c.h.b16 %v1657
  %v1906 = vunpack.c.l.b16 %v1658
  %v1907 = vunpack.c.h.b16 %v1658
  %v1908 = vunpack.c.l.b16 %v1659
  %v1909 = vunpack.c.h.b16 %v1659
  %v1910 = vunpack.c.l.b16 %v1660
  %v1911 = vunpack.c.h.b16 %v1660
  %v1912 = vunpack.c.l.b16 %v1661
  %v1913 = vunpack.c.h.b16 %v1661
  %v1914 = vunpack.c.l.b16 %v1662
  %v1915 = vunpack.c.h.b16 %v1662
  %v1916 = vunpack.c.l.b16 %v1663
  %v1917 = vunpack.c.h.b16 %v1663
  %v1918 = vunpack.c.l.b16 %v1664
  %v1919 = vunpack.c.h.b16 %v1664
  %v1920 = vunpack.c.l.b16 %v1665
  %v1921 = vunpack.c.h.b16 %v1665
  %v1922 = vunpack.c.l.b16 %v1666
  %v1923 = vunpack.c.h.b16 %v1666
  %v1924 = vunpack.c.l.b16 %v1667
  %v1925 = vunpack.c.h.b16 %v1667
  %v1926 = vunpack.c.l.b16 %v1668
  %v1927 = vunpack.c.h.b16 %v1668
  %v1928 = vpack.c.b16 %v1898, %v1896
  %v1929 = vpack.c.b16 %v1899, %v1897
  %v1930 = vpack.c.b16 %v1902, %v1900
  %v1931 = vpack.c.b16 %v1903, %v1901
  %v1932 = vpack.c.b16 %v1906, %v1904
  %v1933 = vpack.c.b16 %v1907, %v1905
  %v1934 = vpack.c.b16 %v1910, %v1908
  %v1935 = vpack.c.b16 %v1911, %v1909
  %v1936 = vpack.c.b16 %v1914, %v1912
  %v1937 = vpack.c.b16 %v1915, %v1913
  %v1938 = vpack.c.b16 %v1918, %v1916
  %v1939 = vpack.c.b16 %v1919, %v1917
  %v1940 = vpack.c.b16 %v1922, %v1920
  %v1941 = vpack.c.b16 %v1923, %v1921
  %v1942 = vpack.c.b16 %v1926, %v1924
  %v1943 = vpack.c.b16 %v1927, %v1925
  %1960 = vmatpush.bf16.msra.mxu0 %v1942
  %1961 = vmatpush.bf16.msra.mxu0 %v1940
  %1962 = vmatpush.bf16.msra.mxu0 %v1938
  %1963 = vmatpush.bf16.msra.mxu0 %v1936
  %1964 = vmatpush.bf16.msra.mxu0 %v1934
  %1965 = vmatpush.bf16.msra.mxu0 %v1932
  %1966 = vmatpush.bf16.msra.mxu0 %v1930
  %1967 = vmatpush.bf16.msra.mxu0 %v1928
  %1968 = vmatmul.bf16.gmra.mxu0 %v1669
  %v1969 = vpop.f32.mrf.mxu0
  %v1970 = vadd.f32 %v1792, %v1969
  %v1971 = vpop.f32.mrf.mxu0
  %v1972 = vadd.f32 %v1794, %v1971
  %1973 = vmatmul.bf16.gmra.mxu0 %v1670
  %v1974 = vpop.f32.mrf.mxu0
  %v1975 = vadd.f32 %v1797, %v1974
  %v1976 = vpop.f32.mrf.mxu0
  %v1977 = vadd.f32 %v1799, %v1976
  %1978 = vmatmul.bf16.gmra.mxu0 %v1671
  %v1979 = vpop.f32.mrf.mxu0
  %v1980 = vadd.f32 %v1802, %v1979
  %v1981 = vpop.f32.mrf.mxu0
  %v1982 = vadd.f32 %v1804, %v1981
  %1983 = vmatmul.bf16.gmra.mxu0 %v1672
  %v1984 = vpop.f32.mrf.mxu0
  %v1985 = vadd.f32 %v1807, %v1984
  %v1986 = vpop.f32.mrf.mxu0
  %v1987 = vadd.f32 %v1809, %v1986
  %1988 = vmatmul.bf16.gmra.mxu0 %v1673
  %v1989 = vpop.f32.mrf.mxu0
  %v1990 = vadd.f32 %v1812, %v1989
  %v1991 = vpop.f32.mrf.mxu0
  %v1992 = vadd.f32 %v1814, %v1991
  %1993 = vmatmul.bf16.gmra.mxu0 %v1674
  %v1994 = vpop.f32.mrf.mxu0
  %v1995 = vadd.f32 %v1817, %v1994
  %v1996 = vpop.f32.mrf.mxu0
  %v1997 = vadd.f32 %v1819, %v1996
  %1998 = vmatmul.bf16.gmra.mxu0 %v1675
  %v1999 = vpop.f32.mrf.mxu0
  %v2000 = vadd.f32 %v1822, %v1999
  %v2001 = vpop.f32.mrf.mxu0
  %v2002 = vadd.f32 %v1824, %v2001
  %2003 = vmatmul.bf16.gmra.mxu0 %v1676
  %v2004 = vpop.f32.mrf.mxu0
  %v2005 = vadd.f32 %v1827, %v2004
  %v2006 = vpop.f32.mrf.mxu0
  %v2007 = vadd.f32 %v1829, %v2006
  %2008 = vdwg.mxu0
  %2009 = vmatpush.bf16.msra.mxu0 %v1943
  %2010 = vmatpush.bf16.msra.mxu0 %v1941
  %2011 = vmatpush.bf16.msra.mxu0 %v1939
  %2012 = vmatpush.bf16.msra.mxu0 %v1937
  %2013 = vmatpush.bf16.msra.mxu0 %v1935
  %2014 = vmatpush.bf16.msra.mxu0 %v1933
  %2015 = vmatpush.bf16.msra.mxu0 %v1931
  %2016 = vmatpush.bf16.msra.mxu0 %v1929
  %2017 = vmatmul.bf16.gmra.mxu0 %v1669
  %v2018 = vpop.f32.mrf.mxu0
  %v2019 = vadd.f32 %v1841, %v2018
  %v2020 = vpop.f32.mrf.mxu0
  %v2021 = vadd.f32 %v1843, %v2020
  %2022 = vmatmul.bf16.gmra.mxu0 %v1670
  %v2023 = vpop.f32.mrf.mxu0
  %v2024 = vadd.f32 %v1846, %v2023
  %v2025 = vpop.f32.mrf.mxu0
  %v2026 = vadd.f32 %v1848, %v2025
  %2027 = vmatmul.bf16.gmra.mxu0 %v1671
  %v2028 = vpop.f32.mrf.mxu0
  %v2029 = vadd.f32 %v1851, %v2028
  %v2030 = vpop.f32.mrf.mxu0
  %v2031 = vadd.f32 %v1853, %v2030
  %2032 = vmatmul.bf16.gmra.mxu0 %v1672
  %v2033 = vpop.f32.mrf.mxu0
  %v2034 = vadd.f32 %v1856, %v2033
  %v2035 = vpop.f32.mrf.mxu0
  %v2036 = vadd.f32 %v1858, %v2035
  %2037 = vmatmul.bf16.gmra.mxu0 %v1673
  %v2038 = vpop.f32.mrf.mxu0
  %v2039 = vadd.f32 %v1861, %v2038
  %v2040 = vpop.f32.mrf.mxu0
  %v2041 = vadd.f32 %v1863, %v2040
  %2042 = vmatmul.bf16.gmra.mxu0 %v1674
  %v2043 = vpop.f32.mrf.mxu0
  %v2044 = vadd.f32 %v1866, %v2043
  %v2045 = vpop.f32.mrf.mxu0
  %v2046 = vadd.f32 %v1868, %v2045
  %2047 = vmatmul.bf16.gmra.mxu0 %v1675
  %v2048 = vpop.f32.mrf.mxu0
  %v2049 = vadd.f32 %v1871, %v2048
  %v2050 = vpop.f32.mrf.mxu0
  %v2051 = vadd.f32 %v1873, %v2050
  %2052 = vmatmul.bf16.gmra.mxu0 %v1676
  %v2053 = vpop.f32.mrf.mxu0
  %v2054 = vadd.f32 %v1876, %v2053
  %v2055 = vpop.f32.mrf.mxu0
  %v2056 = vadd.f32 %v1878, %v2055
  %2057 = vdwg.mxu0
  %s2058 = scalar_lea.vmem %s7, 256
  %v2059 = vld [vmem:[%s2058] sm:$0xff]
  %v2060 = vld [vmem:[%s2058 + $0x8] sm:$0xff]
  %v2061 = vld [vmem:[%s2058 + $0x10] sm:$0xff]
  %v2062 = vld [vmem:[%s2058 + $0x18] sm:$0xff]
  %v2063 = vld [vmem:[%s2058 + $0x20] sm:$0xff]
  %v2064 = vld [vmem:[%s2058 + $0x28] sm:$0xff]
  %v2065 = vld [vmem:[%s2058 + $0x30] sm:$0xff]
  %v2066 = vld [vmem:[%s2058 + $0x38] sm:$0xff]
  %v2067 = vld [vmem:[%s2058 + $0x40] sm:$0xff]
  %v2068 = vld [vmem:[%s2058 + $0x48] sm:$0xff]
  %v2069 = vld [vmem:[%s2058 + $0x50] sm:$0xff]
  %v2070 = vld [vmem:[%s2058 + $0x58] sm:$0xff]
  %v2071 = vld [vmem:[%s2058 + $0x60] sm:$0xff]
  %v2072 = vld [vmem:[%s2058 + $0x68] sm:$0xff]
  %v2073 = vld [vmem:[%s2058 + $0x70] sm:$0xff]
  %v2074 = vld [vmem:[%s2058 + $0x78] sm:$0xff]
  %v2075 = vpack.c.bf16 0.0, %v1651
  %v2092 = vunpack.c.l.b16 %v2059
  %v2093 = vunpack.c.h.b16 %v2059
  %v2094 = vunpack.c.l.b16 %v2060
  %v2095 = vunpack.c.h.b16 %v2060
  %v2096 = vunpack.c.l.b16 %v2061
  %v2097 = vunpack.c.h.b16 %v2061
  %v2098 = vunpack.c.l.b16 %v2062
  %v2099 = vunpack.c.h.b16 %v2062
  %v2100 = vunpack.c.l.b16 %v2063
  %v2101 = vunpack.c.h.b16 %v2063
  %v2102 = vunpack.c.l.b16 %v2064
  %v2103 = vunpack.c.h.b16 %v2064
  %v2104 = vunpack.c.l.b16 %v2065
  %v2105 = vunpack.c.h.b16 %v2065
  %v2106 = vunpack.c.l.b16 %v2066
  %v2107 = vunpack.c.h.b16 %v2066
  %v2108 = vunpack.c.l.b16 %v2067
  %v2109 = vunpack.c.h.b16 %v2067
  %v2110 = vunpack.c.l.b16 %v2068
  %v2111 = vunpack.c.h.b16 %v2068
  %v2112 = vunpack.c.l.b16 %v2069
  %v2113 = vunpack.c.h.b16 %v2069
  %v2114 = vunpack.c.l.b16 %v2070
  %v2115 = vunpack.c.h.b16 %v2070
  %v2116 = vunpack.c.l.b16 %v2071
  %v2117 = vunpack.c.h.b16 %v2071
  %v2118 = vunpack.c.l.b16 %v2072
  %v2119 = vunpack.c.h.b16 %v2072
  %v2120 = vunpack.c.l.b16 %v2073
  %v2121 = vunpack.c.h.b16 %v2073
  %v2122 = vunpack.c.l.b16 %v2074
  %v2123 = vunpack.c.h.b16 %v2074
  %v2124 = vpack.c.b16 %v2094, %v2092
  %v2125 = vpack.c.b16 %v2095, %v2093
  %v2126 = vpack.c.b16 %v2098, %v2096
  %v2127 = vpack.c.b16 %v2099, %v2097
  %v2128 = vpack.c.b16 %v2102, %v2100
  %v2129 = vpack.c.b16 %v2103, %v2101
  %v2130 = vpack.c.b16 %v2106, %v2104
  %v2131 = vpack.c.b16 %v2107, %v2105
  %v2132 = vpack.c.b16 %v2110, %v2108
  %v2133 = vpack.c.b16 %v2111, %v2109
  %v2134 = vpack.c.b16 %v2114, %v2112
  %v2135 = vpack.c.b16 %v2115, %v2113
  %v2136 = vpack.c.b16 %v2118, %v2116
  %v2137 = vpack.c.b16 %v2119, %v2117
  %v2138 = vpack.c.b16 %v2122, %v2120
  %v2139 = vpack.c.b16 %v2123, %v2121
  %2156 = vmatpush.bf16.msra.mxu0 %v2138
  %2157 = vmatpush.bf16.msra.mxu0 %v2136
  %2158 = vmatpush.bf16.msra.mxu0 %v2134
  %2159 = vmatpush.bf16.msra.mxu0 %v2132
  %2160 = vmatpush.bf16.msra.mxu0 %v2130
  %2161 = vmatpush.bf16.msra.mxu0 %v2128
  %2162 = vmatpush.bf16.msra.mxu0 %v2126
  %2163 = vmatpush.bf16.msra.mxu0 %v2124
  %2164 = vmatmul.bf16.gmra.mxu0 %v1670
  %v2165 = vpop.f32.mrf.mxu0
  %v2166 = vadd.f32 0.0, %v2165
  %v2167 = vpop.f32.mrf.mxu0
  %v2168 = vadd.f32 0.0, %v2167
  %2169 = vmatmul.bf16.gmra.mxu0 %v1671
  %v2170 = vpop.f32.mrf.mxu0
  %v2171 = vadd.f32 0.0, %v2170
  %v2172 = vpop.f32.mrf.mxu0
  %v2173 = vadd.f32 0.0, %v2172
  %2174 = vmatmul.bf16.gmra.mxu0 %v1672
  %v2175 = vpop.f32.mrf.mxu0
  %v2176 = vadd.f32 0.0, %v2175
  %v2177 = vpop.f32.mrf.mxu0
  %v2178 = vadd.f32 0.0, %v2177
  %2179 = vmatmul.bf16.gmra.mxu0 %v1673
  %v2180 = vpop.f32.mrf.mxu0
  %v2181 = vadd.f32 0.0, %v2180
  %v2182 = vpop.f32.mrf.mxu0
  %v2183 = vadd.f32 0.0, %v2182
  %2184 = vmatmul.bf16.gmra.mxu0 %v1674
  %v2185 = vpop.f32.mrf.mxu0
  %v2186 = vadd.f32 0.0, %v2185
  %v2187 = vpop.f32.mrf.mxu0
  %v2188 = vadd.f32 0.0, %v2187
  %2189 = vmatmul.bf16.gmra.mxu0 %v1675
  %v2190 = vpop.f32.mrf.mxu0
  %v2191 = vadd.f32 0.0, %v2190
  %v2192 = vpop.f32.mrf.mxu0
  %v2193 = vadd.f32 0.0, %v2192
  %2194 = vmatmul.bf16.gmra.mxu0 %v1676
  %v2195 = vpop.f32.mrf.mxu0
  %v2196 = vadd.f32 0.0, %v2195
  %v2197 = vpop.f32.mrf.mxu0
  %v2198 = vadd.f32 0.0, %v2197
  %2199 = vmatmul.bf16.gmra.mxu0 %v2075
  %v2200 = vpop.f32.mrf.mxu0
  %v2201 = vadd.f32 0.0, %v2200
  %v2202 = vpop.f32.mrf.mxu0
  %v2203 = vadd.f32 0.0, %v2202
  %2204 = vdwg.mxu0
  %2205 = vmatpush.bf16.msra.mxu0 %v2139
  %2206 = vmatpush.bf16.msra.mxu0 %v2137
  %2207 = vmatpush.bf16.msra.mxu0 %v2135
  %2208 = vmatpush.bf16.msra.mxu0 %v2133
  %2209 = vmatpush.bf16.msra.mxu0 %v2131
  %2210 = vmatpush.bf16.msra.mxu0 %v2129
  %2211 = vmatpush.bf16.msra.mxu0 %v2127
  %2212 = vmatpush.bf16.msra.mxu0 %v2125
  %2213 = vmatmul.bf16.gmra.mxu0 %v1670
  %v2214 = vpop.f32.mrf.mxu0
  %v2215 = vadd.f32 0.0, %v2214
  %v2216 = vpop.f32.mrf.mxu0
  %v2217 = vadd.f32 0.0, %v2216
  %2218 = vmatmul.bf16.gmra.mxu0 %v1671
  %v2219 = vpop.f32.mrf.mxu0
  %v2220 = vadd.f32 0.0, %v2219
  %v2221 = vpop.f32.mrf.mxu0
  %v2222 = vadd.f32 0.0, %v2221
  %2223 = vmatmul.bf16.gmra.mxu0 %v1672
  %v2224 = vpop.f32.mrf.mxu0
  %v2225 = vadd.f32 0.0, %v2224
  %v2226 = vpop.f32.mrf.mxu0
  %v2227 = vadd.f32 0.0, %v2226
  %2228 = vmatmul.bf16.gmra.mxu0 %v1673
  %v2229 = vpop.f32.mrf.mxu0
  %v2230 = vadd.f32 0.0, %v2229
  %v2231 = vpop.f32.mrf.mxu0
  %v2232 = vadd.f32 0.0, %v2231
  %2233 = vmatmul.bf16.gmra.mxu0 %v1674
  %v2234 = vpop.f32.mrf.mxu0
  %v2235 = vadd.f32 0.0, %v2234
  %v2236 = vpop.f32.mrf.mxu0
  %v2237 = vadd.f32 0.0, %v2236
  %2238 = vmatmul.bf16.gmra.mxu0 %v1675
  %v2239 = vpop.f32.mrf.mxu0
  %v2240 = vadd.f32 0.0, %v2239
  %v2241 = vpop.f32.mrf.mxu0
  %v2242 = vadd.f32 0.0, %v2241
  %2243 = vmatmul.bf16.gmra.mxu0 %v1676
  %v2244 = vpop.f32.mrf.mxu0
  %v2245 = vadd.f32 0.0, %v2244
  %v2246 = vpop.f32.mrf.mxu0
  %v2247 = vadd.f32 0.0, %v2246
  %2248 = vmatmul.bf16.gmra.mxu0 %v2075
  %v2249 = vpop.f32.mrf.mxu0
  %v2250 = vadd.f32 0.0, %v2249
  %v2251 = vpop.f32.mrf.mxu0
  %v2252 = vadd.f32 0.0, %v2251
  %2253 = vdwg.mxu0
  %v2254 = vadd.f32 %v1970, %v2166
  %v2255 = vadd.f32 %v2019, %v2215
  %v2256 = vadd.f32 %v1972, %v2168
  %v2257 = vadd.f32 %v2021, %v2217
  %v2258 = vadd.f32 %v1975, %v2171
  %v2259 = vadd.f32 %v2024, %v2220
  %v2260 = vadd.f32 %v1977, %v2173
  %v2261 = vadd.f32 %v2026, %v2222
  %v2262 = vadd.f32 %v1980, %v2176
  %v2263 = vadd.f32 %v2029, %v2225
  %v2264 = vadd.f32 %v1982, %v2178
  %v2265 = vadd.f32 %v2031, %v2227
  %v2266 = vadd.f32 %v1985, %v2181
  %v2267 = vadd.f32 %v2034, %v2230
  %v2268 = vadd.f32 %v1987, %v2183
  %v2269 = vadd.f32 %v2036, %v2232
  %v2270 = vadd.f32 %v1990, %v2186
  %v2271 = vadd.f32 %v2039, %v2235
  %v2272 = vadd.f32 %v1992, %v2188
  %v2273 = vadd.f32 %v2041, %v2237
  %v2274 = vadd.f32 %v1995, %v2191
  %v2275 = vadd.f32 %v2044, %v2240
  %v2276 = vadd.f32 %v1997, %v2193
  %v2277 = vadd.f32 %v2046, %v2242
  %v2278 = vadd.f32 %v2000, %v2196
  %v2279 = vadd.f32 %v2049, %v2245
  %v2280 = vadd.f32 %v2002, %v2198
  %v2281 = vadd.f32 %v2051, %v2247
  %v2282 = vadd.f32 %v2005, %v2201
  %v2283 = vadd.f32 %v2054, %v2250
  %v2284 = vadd.f32 %v2007, %v2203
  %v2285 = vadd.f32 %v2056, %v2252
  %v2287 = vperm.slane %v1652, 0
  %v2288 = vperm.slane %v1652, 1
  %v2291 = vadd.f32 %v2254, %v2287
  %v2292 = vadd.f32 %v2255, %v2288
  %v2293 = vadd.f32 %v2256, %v2287
  %v2294 = vadd.f32 %v2257, %v2288
  %v2295 = vadd.f32 %v2258, %v2287
  %v2296 = vadd.f32 %v2259, %v2288
  %v2297 = vadd.f32 %v2260, %v2287
  %v2298 = vadd.f32 %v2261, %v2288
  %v2299 = vadd.f32 %v2262, %v2287
  %v2300 = vadd.f32 %v2263, %v2288
  %v2301 = vadd.f32 %v2264, %v2287
  %v2302 = vadd.f32 %v2265, %v2288
  %v2303 = vadd.f32 %v2266, %v2287
  %v2304 = vadd.f32 %v2267, %v2288
  %v2305 = vadd.f32 %v2268, %v2287
  %v2306 = vadd.f32 %v2269, %v2288
  %v2307 = vadd.f32 %v2270, %v2287
  %v2308 = vadd.f32 %v2271, %v2288
  %v2309 = vadd.f32 %v2272, %v2287
  %v2310 = vadd.f32 %v2273, %v2288
  %v2311 = vadd.f32 %v2274, %v2287
  %v2312 = vadd.f32 %v2275, %v2288
  %v2313 = vadd.f32 %v2276, %v2287
  %v2314 = vadd.f32 %v2277, %v2288
  %v2315 = vadd.f32 %v2278, %v2287
  %v2316 = vadd.f32 %v2279, %v2288
  %v2317 = vadd.f32 %v2280, %v2287
  %v2318 = vadd.f32 %v2281, %v2288
  %v2319 = vadd.f32 %v2282, %v2287
  %v2320 = vadd.f32 %v2283, %v2288
  %v2321 = vadd.f32 %v2284, %v2287
  %v2322 = vadd.f32 %v2285, %v2288
  %v2323 = vmax.f32 %v2291, 0.0
  %v2324 = vmax.f32 %v2292, 0.0
  %v2325 = vmax.f32 %v2293, 0.0
  %v2326 = vmax.f32 %v2294, 0.0
  %v2327 = vmax.f32 %v2295, 0.0
  %v2328 = vmax.f32 %v2296, 0.0
  %v2329 = vmax.f32 %v2297, 0.0
  %v2330 = vmax.f32 %v2298, 0.0
  %v2331 = vmax.f32 %v2299, 0.0
  %v2332 = vmax.f32 %v2300, 0.0
  %v2333 = vmax.f32 %v2301, 0.0
  %v2334 = vmax.f32 %v2302, 0.0
  %v2335 = vmax.f32 %v2303, 0.0
  %v2336 = vmax.f32 %v2304, 0.0
  %v2337 = vmax.f32 %v2305, 0.0
  %v2338 = vmax.f32 %v2306, 0.0
  %v2339 = vmax.f32 %v2307, 0.0
  %v2340 = vmax.f32 %v2308, 0.0
  %v2341 = vmax.f32 %v2309, 0.0
  %v2342 = vmax.f32 %v2310, 0.0
  %v2343 = vmax.f32 %v2311, 0.0
  %v2344 = vmax.f32 %v2312, 0.0
  %v2345 = vmax.f32 %v2313, 0.0
  %v2346 = vmax.f32 %v2314, 0.0
  %v2347 = vmax.f32 %v2315, 0.0
  %v2348 = vmax.f32 %v2316, 0.0
  %v2349 = vmax.f32 %v2317, 0.0
  %v2350 = vmax.f32 %v2318, 0.0
  %v2351 = vmax.f32 %v2319, 0.0
  %v2352 = vmax.f32 %v2320, 0.0
  %v2353 = vmax.f32 %v2321, 0.0
  %v2354 = vmax.f32 %v2322, 0.0
  %v2355 = vmax.f32 %v2323, %v2325
  %v2356 = vmax.f32 %v2324, %v2326
  %v2357 = vmax.f32 %v2327, %v2329
  %v2358 = vmax.f32 %v2328, %v2330
  %v2359 = vmax.f32 %v2331, %v2333
  %v2360 = vmax.f32 %v2332, %v2334
  %v2361 = vmax.f32 %v2335, %v2337
  %v2362 = vmax.f32 %v2336, %v2338
  %v2363 = vmax.f32 %v2339, %v2341
  %v2364 = vmax.f32 %v2340, %v2342
  %v2365 = vmax.f32 %v2343, %v2345
  %v2366 = vmax.f32 %v2344, %v2346
  %v2367 = vmax.f32 %v2347, %v2349
  %v2368 = vmax.f32 %v2348, %v2350
  %v2369 = vmax.f32 %v2351, %v2353
  %v2370 = vmax.f32 %v2352, %v2354
  %v2371 = vld [vmem:[%s9] sm:$0xf]
  %v2372 = vld [vmem:[%s9 + $0x4] sm:$0xf]
  %v2373 = vld [vmem:[%s9 + $0x8] sm:$0xf]
  %v2374 = vld [vmem:[%s9 + $0xc] sm:$0xf]
  %v2375 = vld [vmem:[%s9 + $0x10] sm:$0xf]
  %v2376 = vld [vmem:[%s9 + $0x14] sm:$0xf]
  %v2377 = vld [vmem:[%s9 + $0x18] sm:$0xf]
  %v2378 = vld [vmem:[%s9 + $0x1c] sm:$0xf]
  %v2379 = vld [vmem:[%s9 + $0x20] sm:$0xf]
  %v2380 = vld [vmem:[%s9 + $0x24] sm:$0xf]
  %v2381 = vld [vmem:[%s9 + $0x28] sm:$0xf]
  %v2382 = vld [vmem:[%s9 + $0x2c] sm:$0xf]
  %v2383 = vld [vmem:[%s9 + $0x30] sm:$0xf]
  %v2384 = vld [vmem:[%s9 + $0x34] sm:$0xf]
  %v2385 = vld [vmem:[%s9 + $0x38] sm:$0xf]
  %v2386 = vld [vmem:[%s9 + $0x3c] sm:$0xf]
  %v2387 = vld [vmem:[%s9 + $0x40] sm:$0xf]
  %v2388 = vld [vmem:[%s9 + $0x44] sm:$0xf]
  %v2389 = vld [vmem:[%s9 + $0x48] sm:$0xf]
  %v2390 = vld [vmem:[%s9 + $0x4c] sm:$0xf]
  %v2391 = vld [vmem:[%s9 + $0x50] sm:$0xf]
  %v2392 = vld [vmem:[%s9 + $0x54] sm:$0xf]
  %v2393 = vld [vmem:[%s9 + $0x58] sm:$0xf]
  %v2394 = vld [vmem:[%s9 + $0x5c] sm:$0xf]
  %v2395 = vld [vmem:[%s9 + $0x60] sm:$0xf]
  %v2396 = vld [vmem:[%s9 + $0x64] sm:$0xf]
  %v2397 = vld [vmem:[%s9 + $0x68] sm:$0xf]
  %v2398 = vld [vmem:[%s9 + $0x6c] sm:$0xf]
  %v2399 = vld [vmem:[%s9 + $0x70] sm:$0xf]
  %v2400 = vld [vmem:[%s9 + $0x74] sm:$0xf]
  %v2401 = vld [vmem:[%s9 + $0x78] sm:$0xf]
  %v2402 = vld [vmem:[%s9 + $0x7c] sm:$0xf]
  %v2403 = vpack.c.bf16 %v2355, %v2355
  %v2404 = vpack.c.bf16 %v2356, %v2356
  %s2405 = scalar_lea.vmem %s9, 128
  %v2406 = vld [vmem:[%s2405] sm:$0xf]
  %v2407 = vld [vmem:[%s2405 + $0x4] sm:$0xf]
  %v2408 = vld [vmem:[%s2405 + $0x8] sm:$0xf]
  %v2409 = vld [vmem:[%s2405 + $0xc] sm:$0xf]
  %v2410 = vld [vmem:[%s2405 + $0x10] sm:$0xf]
  %v2411 = vld [vmem:[%s2405 + $0x14] sm:$0xf]
  %v2412 = vld [vmem:[%s2405 + $0x18] sm:$0xf]
  %v2413 = vld [vmem:[%s2405 + $0x1c] sm:$0xf]
  %v2414 = vld [vmem:[%s2405 + $0x20] sm:$0xf]
  %v2415 = vld [vmem:[%s2405 + $0x24] sm:$0xf]
  %v2416 = vld [vmem:[%s2405 + $0x28] sm:$0xf]
  %v2417 = vld [vmem:[%s2405 + $0x2c] sm:$0xf]
  %v2418 = vld [vmem:[%s2405 + $0x30] sm:$0xf]
  %v2419 = vld [vmem:[%s2405 + $0x34] sm:$0xf]
  %v2420 = vld [vmem:[%s2405 + $0x38] sm:$0xf]
  %v2421 = vld [vmem:[%s2405 + $0x3c] sm:$0xf]
  %v2422 = vld [vmem:[%s2405 + $0x40] sm:$0xf]
  %v2423 = vld [vmem:[%s2405 + $0x44] sm:$0xf]
  %v2424 = vld [vmem:[%s2405 + $0x48] sm:$0xf]
  %v2425 = vld [vmem:[%s2405 + $0x4c] sm:$0xf]
  %v2426 = vld [vmem:[%s2405 + $0x50] sm:$0xf]
  %v2427 = vld [vmem:[%s2405 + $0x54] sm:$0xf]
  %v2428 = vld [vmem:[%s2405 + $0x58] sm:$0xf]
  %v2429 = vld [vmem:[%s2405 + $0x5c] sm:$0xf]
  %v2430 = vld [vmem:[%s2405 + $0x60] sm:$0xf]
  %v2431 = vld [vmem:[%s2405 + $0x64] sm:$0xf]
  %v2432 = vld [vmem:[%s2405 + $0x68] sm:$0xf]
  %v2433 = vld [vmem:[%s2405 + $0x6c] sm:$0xf]
  %v2434 = vld [vmem:[%s2405 + $0x70] sm:$0xf]
  %v2435 = vld [vmem:[%s2405 + $0x74] sm:$0xf]
  %v2436 = vld [vmem:[%s2405 + $0x78] sm:$0xf]
  %v2437 = vld [vmem:[%s2405 + $0x7c] sm:$0xf]
  %v2438 = vpack.c.bf16 %v2357, %v2357
  %v2439 = vpack.c.bf16 %v2358, %v2358
  %v2472 = vunpack.c.l.b16 %v2406
  %v2473 = vunpack.c.l.b16 %v2407
  %v2474 = vunpack.c.l.b16 %v2408
  %v2475 = vunpack.c.l.b16 %v2409
  %v2476 = vunpack.c.l.b16 %v2410
  %v2477 = vunpack.c.l.b16 %v2411
  %v2478 = vunpack.c.l.b16 %v2412
  %v2479 = vunpack.c.l.b16 %v2413
  %v2480 = vunpack.c.l.b16 %v2414
  %v2481 = vunpack.c.l.b16 %v2415
  %v2482 = vunpack.c.l.b16 %v2416
  %v2483 = vunpack.c.l.b16 %v2417
  %v2484 = vunpack.c.l.b16 %v2418
  %v2485 = vunpack.c.l.b16 %v2419
  %v2486 = vunpack.c.l.b16 %v2420
  %v2487 = vunpack.c.l.b16 %v2421
  %v2488 = vunpack.c.l.b16 %v2422
  %v2489 = vunpack.c.l.b16 %v2423
  %v2490 = vunpack.c.l.b16 %v2424
  %v2491 = vunpack.c.l.b16 %v2425
  %v2492 = vunpack.c.l.b16 %v2426
  %v2493 = vunpack.c.l.b16 %v2427
  %v2494 = vunpack.c.l.b16 %v2428
  %v2495 = vunpack.c.l.b16 %v2429
  %v2496 = vunpack.c.l.b16 %v2430
  %v2497 = vunpack.c.l.b16 %v2431
  %v2498 = vunpack.c.l.b16 %v2432
  %v2499 = vunpack.c.l.b16 %v2433
  %v2500 = vunpack.c.l.b16 %v2434
  %v2501 = vunpack.c.l.b16 %v2435
  %v2502 = vunpack.c.l.b16 %v2436
  %v2503 = vunpack.c.l.b16 %v2437
  %v2504 = vpack.c.b16 %v2473, %v2472
  %v2505 = vpack.c.b16 %v2475, %v2474
  %v2506 = vpack.c.b16 %v2477, %v2476
  %v2507 = vpack.c.b16 %v2479, %v2478
  %v2508 = vpack.c.b16 %v2481, %v2480
  %v2509 = vpack.c.b16 %v2483, %v2482
  %v2510 = vpack.c.b16 %v2485, %v2484
  %v2511 = vpack.c.b16 %v2487, %v2486
  %v2512 = vpack.c.b16 %v2489, %v2488
  %v2513 = vpack.c.b16 %v2491, %v2490
  %v2514 = vpack.c.b16 %v2493, %v2492
  %v2515 = vpack.c.b16 %v2495, %v2494
  %v2516 = vpack.c.b16 %v2497, %v2496
  %v2517 = vpack.c.b16 %v2499, %v2498
  %v2518 = vpack.c.b16 %v2501, %v2500
  %v2519 = vpack.c.b16 %v2503, %v2502
  %2536 = vmatpush.bf16.msra.mxu0 %v2511
  %2537 = vmatpush.bf16.msra.mxu0 %v2510
  %2538 = vmatpush.bf16.msra.mxu0 %v2509
  %2539 = vmatpush.bf16.msra.mxu0 %v2508
  %2540 = vmatpush.bf16.msra.mxu0 %v2507
  %2541 = vmatpush.bf16.msra.mxu0 %v2506
  %2542 = vmatpush.bf16.msra.mxu0 %v2505
  %2543 = vmatpush.bf16.msra.mxu0 %v2504
  %2544 = vmatmul.bf16.gmra.mxu0 %v2438
  %v2545 = vpop.f32.mrf.mxu0
  %v2546 = vadd.f32 0.0, %v2545
  %v2547 = vpop.f32.mrf.mxu0
  %2548 = vdwg.mxu0
  %2549 = vmatpush.bf16.msra.mxu0 %v2519
  %2550 = vmatpush.bf16.msra.mxu0 %v2518
  %2551 = vmatpush.bf16.msra.mxu0 %v2517
  %2552 = vmatpush.bf16.msra.mxu0 %v2516
  %2553 = vmatpush.bf16.msra.mxu0 %v2515
  %2554 = vmatpush.bf16.msra.mxu0 %v2514
  %2555 = vmatpush.bf16.msra.mxu0 %v2513
  %2556 = vmatpush.bf16.msra.mxu0 %v2512
  %2557 = vmatmul.bf16.gmra.mxu0 %v2439
  %v2558 = vpop.f32.mrf.mxu0
  %v2559 = vadd.f32 %v2546, %v2558
  %v2560 = vpop.f32.mrf.mxu0
  %2561 = vdwg.mxu0
  %v2594 = vunpack.c.l.b16 %v2371
  %v2595 = vunpack.c.l.b16 %v2372
  %v2596 = vunpack.c.l.b16 %v2373
  %v2597 = vunpack.c.l.b16 %v2374
  %v2598 = vunpack.c.l.b16 %v2375
  %v2599 = vunpack.c.l.b16 %v2376
  %v2600 = vunpack.c.l.b16 %v2377
  %v2601 = vunpack.c.l.b16 %v2378
  %v2602 = vunpack.c.l.b16 %v2379
  %v2603 = vunpack.c.l.b16 %v2380
  %v2604 = vunpack.c.l.b16 %v2381
  %v2605 = vunpack.c.l.b16 %v2382
  %v2606 = vunpack.c.l.b16 %v2383
  %v2607 = vunpack.c.l.b16 %v2384
  %v2608 = vunpack.c.l.b16 %v2385
  %v2609 = vunpack.c.l.b16 %v2386
  %v2610 = vunpack.c.l.b16 %v2387
  %v2611 = vunpack.c.l.b16 %v2388
  %v2612 = vunpack.c.l.b16 %v2389
  %v2613 = vunpack.c.l.b16 %v2390
  %v2614 = vunpack.c.l.b16 %v2391
  %v2615 = vunpack.c.l.b16 %v2392
  %v2616 = vunpack.c.l.b16 %v2393
  %v2617 = vunpack.c.l.b16 %v2394
  %v2618 = vunpack.c.l.b16 %v2395
  %v2619 = vunpack.c.l.b16 %v2396
  %v2620 = vunpack.c.l.b16 %v2397
  %v2621 = vunpack.c.l.b16 %v2398
  %v2622 = vunpack.c.l.b16 %v2399
  %v2623 = vunpack.c.l.b16 %v2400
  %v2624 = vunpack.c.l.b16 %v2401
  %v2625 = vunpack.c.l.b16 %v2402
  %v2626 = vpack.c.b16 %v2595, %v2594
  %v2627 = vpack.c.b16 %v2597, %v2596
  %v2628 = vpack.c.b16 %v2599, %v2598
  %v2629 = vpack.c.b16 %v2601, %v2600
  %v2630 = vpack.c.b16 %v2603, %v2602
  %v2631 = vpack.c.b16 %v2605, %v2604
  %v2632 = vpack.c.b16 %v2607, %v2606
  %v2633 = vpack.c.b16 %v2609, %v2608
  %v2634 = vpack.c.b16 %v2611, %v2610
  %v2635 = vpack.c.b16 %v2613, %v2612
  %v2636 = vpack.c.b16 %v2615, %v2614
  %v2637 = vpack.c.b16 %v2617, %v2616
  %v2638 = vpack.c.b16 %v2619, %v2618
  %v2639 = vpack.c.b16 %v2621, %v2620
  %v2640 = vpack.c.b16 %v2623, %v2622
  %v2641 = vpack.c.b16 %v2625, %v2624
  %2658 = vmatpush.bf16.msra.mxu0 %v2633
  %2659 = vmatpush.bf16.msra.mxu0 %v2632
  %2660 = vmatpush.bf16.msra.mxu0 %v2631
  %2661 = vmatpush.bf16.msra.mxu0 %v2630
  %2662 = vmatpush.bf16.msra.mxu0 %v2629
  %2663 = vmatpush.bf16.msra.mxu0 %v2628
  %2664 = vmatpush.bf16.msra.mxu0 %v2627
  %2665 = vmatpush.bf16.msra.mxu0 %v2626
  %2666 = vmatmul.bf16.gmra.mxu0 %v2403
  %v2667 = vpop.f32.mrf.mxu0
  %v2668 = vadd.f32 %v2559, %v2667
  %v2669 = vpop.f32.mrf.mxu0
  %2670 = vdwg.mxu0
  %2671 = vmatpush.bf16.msra.mxu0 %v2641
  %2672 = vmatpush.bf16.msra.mxu0 %v2640
  %2673 = vmatpush.bf16.msra.mxu0 %v2639
  %2674 = vmatpush.bf16.msra.mxu0 %v2638
  %2675 = vmatpush.bf16.msra.mxu0 %v2637
  %2676 = vmatpush.bf16.msra.mxu0 %v2636
  %2677 = vmatpush.bf16.msra.mxu0 %v2635
  %2678 = vmatpush.bf16.msra.mxu0 %v2634
  %2679 = vmatmul.bf16.gmra.mxu0 %v2404
  %v2680 = vpop.f32.mrf.mxu0
  %v2681 = vadd.f32 %v2668, %v2680
  %v2682 = vpop.f32.mrf.mxu0
  %2683 = vdwg.mxu0
  %s2684 = scalar_lea.vmem %s9, 256
  %v2685 = vld [vmem:[%s2684] sm:$0xf]
  %v2686 = vld [vmem:[%s2684 + $0x4] sm:$0xf]
  %v2687 = vld [vmem:[%s2684 + $0x8] sm:$0xf]
  %v2688 = vld [vmem:[%s2684 + $0xc] sm:$0xf]
  %v2689 = vld [vmem:[%s2684 + $0x10] sm:$0xf]
  %v2690 = vld [vmem:[%s2684 + $0x14] sm:$0xf]
  %v2691 = vld [vmem:[%s2684 + $0x18] sm:$0xf]
  %v2692 = vld [vmem:[%s2684 + $0x1c] sm:$0xf]
  %v2693 = vld [vmem:[%s2684 + $0x20] sm:$0xf]
  %v2694 = vld [vmem:[%s2684 + $0x24] sm:$0xf]
  %v2695 = vld [vmem:[%s2684 + $0x28] sm:$0xf]
  %v2696 = vld [vmem:[%s2684 + $0x2c] sm:$0xf]
  %v2697 = vld [vmem:[%s2684 + $0x30] sm:$0xf]
  %v2698 = vld [vmem:[%s2684 + $0x34] sm:$0xf]
  %v2699 = vld [vmem:[%s2684 + $0x38] sm:$0xf]
  %v2700 = vld [vmem:[%s2684 + $0x3c] sm:$0xf]
  %v2701 = vld [vmem:[%s2684 + $0x40] sm:$0xf]
  %v2702 = vld [vmem:[%s2684 + $0x44] sm:$0xf]
  %v2703 = vld [vmem:[%s2684 + $0x48] sm:$0xf]
  %v2704 = vld [vmem:[%s2684 + $0x4c] sm:$0xf]
  %v2705 = vld [vmem:[%s2684 + $0x50] sm:$0xf]
  %v2706 = vld [vmem:[%s2684 + $0x54] sm:$0xf]
  %v2707 = vld [vmem:[%s2684 + $0x58] sm:$0xf]
  %v2708 = vld [vmem:[%s2684 + $0x5c] sm:$0xf]
  %v2709 = vld [vmem:[%s2684 + $0x60] sm:$0xf]
  %v2710 = vld [vmem:[%s2684 + $0x64] sm:$0xf]
  %v2711 = vld [vmem:[%s2684 + $0x68] sm:$0xf]
  %v2712 = vld [vmem:[%s2684 + $0x6c] sm:$0xf]
  %v2713 = vld [vmem:[%s2684 + $0x70] sm:$0xf]
  %v2714 = vld [vmem:[%s2684 + $0x74] sm:$0xf]
  %v2715 = vld [vmem:[%s2684 + $0x78] sm:$0xf]
  %v2716 = vld [vmem:[%s2684 + $0x7c] sm:$0xf]
  %v2717 = vpack.c.bf16 %v2359, %v2359
  %v2718 = vpack.c.bf16 %v2360, %v2360
  %v2751 = vunpack.c.l.b16 %v2685
  %v2752 = vunpack.c.l.b16 %v2686
  %v2753 = vunpack.c.l.b16 %v2687
  %v2754 = vunpack.c.l.b16 %v2688
  %v2755 = vunpack.c.l.b16 %v2689
  %v2756 = vunpack.c.l.b16 %v2690
  %v2757 = vunpack.c.l.b16 %v2691
  %v2758 = vunpack.c.l.b16 %v2692
  %v2759 = vunpack.c.l.b16 %v2693
  %v2760 = vunpack.c.l.b16 %v2694
  %v2761 = vunpack.c.l.b16 %v2695
  %v2762 = vunpack.c.l.b16 %v2696
  %v2763 = vunpack.c.l.b16 %v2697
  %v2764 = vunpack.c.l.b16 %v2698
  %v2765 = vunpack.c.l.b16 %v2699
  %v2766 = vunpack.c.l.b16 %v2700
  %v2767 = vunpack.c.l.b16 %v2701
  %v2768 = vunpack.c.l.b16 %v2702
  %v2769 = vunpack.c.l.b16 %v2703
  %v2770 = vunpack.c.l.b16 %v2704
  %v2771 = vunpack.c.l.b16 %v2705
  %v2772 = vunpack.c.l.b16 %v2706
  %v2773 = vunpack.c.l.b16 %v2707
  %v2774 = vunpack.c.l.b16 %v2708
  %v2775 = vunpack.c.l.b16 %v2709
  %v2776 = vunpack.c.l.b16 %v2710
  %v2777 = vunpack.c.l.b16 %v2711
  %v2778 = vunpack.c.l.b16 %v2712
  %v2779 = vunpack.c.l.b16 %v2713
  %v2780 = vunpack.c.l.b16 %v2714
  %v2781 = vunpack.c.l.b16 %v2715
  %v2782 = vunpack.c.l.b16 %v2716
  %v2783 = vpack.c.b16 %v2752, %v2751
  %v2784 = vpack.c.b16 %v2754, %v2753
  %v2785 = vpack.c.b16 %v2756, %v2755
  %v2786 = vpack.c.b16 %v2758, %v2757
  %v2787 = vpack.c.b16 %v2760, %v2759
  %v2788 = vpack.c.b16 %v2762, %v2761
  %v2789 = vpack.c.b16 %v2764, %v2763
  %v2790 = vpack.c.b16 %v2766, %v2765
  %v2791 = vpack.c.b16 %v2768, %v2767
  %v2792 = vpack.c.b16 %v2770, %v2769
  %v2793 = vpack.c.b16 %v2772, %v2771
  %v2794 = vpack.c.b16 %v2774, %v2773
  %v2795 = vpack.c.b16 %v2776, %v2775
  %v2796 = vpack.c.b16 %v2778, %v2777
  %v2797 = vpack.c.b16 %v2780, %v2779
  %v2798 = vpack.c.b16 %v2782, %v2781
  %2815 = vmatpush.bf16.msra.mxu0 %v2790
  %2816 = vmatpush.bf16.msra.mxu0 %v2789
  %2817 = vmatpush.bf16.msra.mxu0 %v2788
  %2818 = vmatpush.bf16.msra.mxu0 %v2787
  %2819 = vmatpush.bf16.msra.mxu0 %v2786
  %2820 = vmatpush.bf16.msra.mxu0 %v2785
  %2821 = vmatpush.bf16.msra.mxu0 %v2784
  %2822 = vmatpush.bf16.msra.mxu0 %v2783
  %2823 = vmatmul.bf16.gmra.mxu0 %v2717
  %v2824 = vpop.f32.mrf.mxu0
  %v2825 = vadd.f32 0.0, %v2824
  %v2826 = vpop.f32.mrf.mxu0
  %2827 = vdwg.mxu0
  %2828 = vmatpush.bf16.msra.mxu0 %v2798
  %2829 = vmatpush.bf16.msra.mxu0 %v2797
  %2830 = vmatpush.bf16.msra.mxu0 %v2796
  %2831 = vmatpush.bf16.msra.mxu0 %v2795
  %2832 = vmatpush.bf16.msra.mxu0 %v2794
  %2833 = vmatpush.bf16.msra.mxu0 %v2793
  %2834 = vmatpush.bf16.msra.mxu0 %v2792
  %2835 = vmatpush.bf16.msra.mxu0 %v2791
  %2836 = vmatmul.bf16.gmra.mxu0 %v2718
  %v2837 = vpop.f32.mrf.mxu0
  %v2838 = vadd.f32 %v2825, %v2837
  %v2839 = vpop.f32.mrf.mxu0
  %2840 = vdwg.mxu0
  %v2841 = vadd.f32 %v2681, %v2838
  %s2842 = scalar_lea.vmem %s9, 384
  %v2843 = vld [vmem:[%s2842] sm:$0xf]
  %v2844 = vld [vmem:[%s2842 + $0x4] sm:$0xf]
  %v2845 = vld [vmem:[%s2842 + $0x8] sm:$0xf]
  %v2846 = vld [vmem:[%s2842 + $0xc] sm:$0xf]
  %v2847 = vld [vmem:[%s2842 + $0x10] sm:$0xf]
  %v2848 = vld [vmem:[%s2842 + $0x14] sm:$0xf]
  %v2849 = vld [vmem:[%s2842 + $0x18] sm:$0xf]
  %v2850 = vld [vmem:[%s2842 + $0x1c] sm:$0xf]
  %v2851 = vld [vmem:[%s2842 + $0x20] sm:$0xf]
  %v2852 = vld [vmem:[%s2842 + $0x24] sm:$0xf]
  %v2853 = vld [vmem:[%s2842 + $0x28] sm:$0xf]
  %v2854 = vld [vmem:[%s2842 + $0x2c] sm:$0xf]
  %v2855 = vld [vmem:[%s2842 + $0x30] sm:$0xf]
  %v2856 = vld [vmem:[%s2842 + $0x34] sm:$0xf]
  %v2857 = vld [vmem:[%s2842 + $0x38] sm:$0xf]
  %v2858 = vld [vmem:[%s2842 + $0x3c] sm:$0xf]
  %v2859 = vld [vmem:[%s2842 + $0x40] sm:$0xf]
  %v2860 = vld [vmem:[%s2842 + $0x44] sm:$0xf]
  %v2861 = vld [vmem:[%s2842 + $0x48] sm:$0xf]
  %v2862 = vld [vmem:[%s2842 + $0x4c] sm:$0xf]
  %v2863 = vld [vmem:[%s2842 + $0x50] sm:$0xf]
  %v2864 = vld [vmem:[%s2842 + $0x54] sm:$0xf]
  %v2865 = vld [vmem:[%s2842 + $0x58] sm:$0xf]
  %v2866 = vld [vmem:[%s2842 + $0x5c] sm:$0xf]
  %v2867 = vld [vmem:[%s2842 + $0x60] sm:$0xf]
  %v2868 = vld [vmem:[%s2842 + $0x64] sm:$0xf]
  %v2869 = vld [vmem:[%s2842 + $0x68] sm:$0xf]
  %v2870 = vld [vmem:[%s2842 + $0x6c] sm:$0xf]
  %v2871 = vld [vmem:[%s2842 + $0x70] sm:$0xf]
  %v2872 = vld [vmem:[%s2842 + $0x74] sm:$0xf]
  %v2873 = vld [vmem:[%s2842 + $0x78] sm:$0xf]
  %v2874 = vld [vmem:[%s2842 + $0x7c] sm:$0xf]
  %v2875 = vpack.c.bf16 %v2361, %v2361
  %v2876 = vpack.c.bf16 %v2362, %v2362
  %v2909 = vunpack.c.l.b16 %v2843
  %v2910 = vunpack.c.l.b16 %v2844
  %v2911 = vunpack.c.l.b16 %v2845
  %v2912 = vunpack.c.l.b16 %v2846
  %v2913 = vunpack.c.l.b16 %v2847
  %v2914 = vunpack.c.l.b16 %v2848
  %v2915 = vunpack.c.l.b16 %v2849
  %v2916 = vunpack.c.l.b16 %v2850
  %v2917 = vunpack.c.l.b16 %v2851
  %v2918 = vunpack.c.l.b16 %v2852
  %v2919 = vunpack.c.l.b16 %v2853
  %v2920 = vunpack.c.l.b16 %v2854
  %v2921 = vunpack.c.l.b16 %v2855
  %v2922 = vunpack.c.l.b16 %v2856
  %v2923 = vunpack.c.l.b16 %v2857
  %v2924 = vunpack.c.l.b16 %v2858
  %v2925 = vunpack.c.l.b16 %v2859
  %v2926 = vunpack.c.l.b16 %v2860
  %v2927 = vunpack.c.l.b16 %v2861
  %v2928 = vunpack.c.l.b16 %v2862
  %v2929 = vunpack.c.l.b16 %v2863
  %v2930 = vunpack.c.l.b16 %v2864
  %v2931 = vunpack.c.l.b16 %v2865
  %v2932 = vunpack.c.l.b16 %v2866
  %v2933 = vunpack.c.l.b16 %v2867
  %v2934 = vunpack.c.l.b16 %v2868
  %v2935 = vunpack.c.l.b16 %v2869
  %v2936 = vunpack.c.l.b16 %v2870
  %v2937 = vunpack.c.l.b16 %v2871
  %v2938 = vunpack.c.l.b16 %v2872
  %v2939 = vunpack.c.l.b16 %v2873
  %v2940 = vunpack.c.l.b16 %v2874
  %v2941 = vpack.c.b16 %v2910, %v2909
  %v2942 = vpack.c.b16 %v2912, %v2911
  %v2943 = vpack.c.b16 %v2914, %v2913
  %v2944 = vpack.c.b16 %v2916, %v2915
  %v2945 = vpack.c.b16 %v2918, %v2917
  %v2946 = vpack.c.b16 %v2920, %v2919
  %v2947 = vpack.c.b16 %v2922, %v2921
  %v2948 = vpack.c.b16 %v2924, %v2923
  %v2949 = vpack.c.b16 %v2926, %v2925
  %v2950 = vpack.c.b16 %v2928, %v2927
  %v2951 = vpack.c.b16 %v2930, %v2929
  %v2952 = vpack.c.b16 %v2932, %v2931
  %v2953 = vpack.c.b16 %v2934, %v2933
  %v2954 = vpack.c.b16 %v2936, %v2935
  %v2955 = vpack.c.b16 %v2938, %v2937
  %v2956 = vpack.c.b16 %v2940, %v2939
  %2973 = vmatpush.bf16.msra.mxu0 %v2948
  %2974 = vmatpush.bf16.msra.mxu0 %v2947
  %2975 = vmatpush.bf16.msra.mxu0 %v2946
  %2976 = vmatpush.bf16.msra.mxu0 %v2945
  %2977 = vmatpush.bf16.msra.mxu0 %v2944
  %2978 = vmatpush.bf16.msra.mxu0 %v2943
  %2979 = vmatpush.bf16.msra.mxu0 %v2942
  %2980 = vmatpush.bf16.msra.mxu0 %v2941
  %2981 = vmatmul.bf16.gmra.mxu0 %v2875
  %v2982 = vpop.f32.mrf.mxu0
  %v2983 = vadd.f32 0.0, %v2982
  %v2984 = vpop.f32.mrf.mxu0
  %2985 = vdwg.mxu0
  %2986 = vmatpush.bf16.msra.mxu0 %v2956
  %2987 = vmatpush.bf16.msra.mxu0 %v2955
  %2988 = vmatpush.bf16.msra.mxu0 %v2954
  %2989 = vmatpush.bf16.msra.mxu0 %v2953
  %2990 = vmatpush.bf16.msra.mxu0 %v2952
  %2991 = vmatpush.bf16.msra.mxu0 %v2951
  %2992 = vmatpush.bf16.msra.mxu0 %v2950
  %2993 = vmatpush.bf16.msra.mxu0 %v2949
  %2994 = vmatmul.bf16.gmra.mxu0 %v2876
  %v2995 = vpop.f32.mrf.mxu0
  %v2996 = vadd.f32 %v2983, %v2995
  %v2997 = vpop.f32.mrf.mxu0
  %2998 = vdwg.mxu0
  %v2999 = vadd.f32 %v2841, %v2996
  %s3000 = scalar_lea.vmem %s9, 512
  %v3001 = vld [vmem:[%s3000] sm:$0xf]
  %v3002 = vld [vmem:[%s3000 + $0x4] sm:$0xf]
  %v3003 = vld [vmem:[%s3000 + $0x8] sm:$0xf]
  %v3004 = vld [vmem:[%s3000 + $0xc] sm:$0xf]
  %v3005 = vld [vmem:[%s3000 + $0x10] sm:$0xf]
  %v3006 = vld [vmem:[%s3000 + $0x14] sm:$0xf]
  %v3007 = vld [vmem:[%s3000 + $0x18] sm:$0xf]
  %v3008 = vld [vmem:[%s3000 + $0x1c] sm:$0xf]
  %v3009 = vld [vmem:[%s3000 + $0x20] sm:$0xf]
  %v3010 = vld [vmem:[%s3000 + $0x24] sm:$0xf]
  %v3011 = vld [vmem:[%s3000 + $0x28] sm:$0xf]
  %v3012 = vld [vmem:[%s3000 + $0x2c] sm:$0xf]
  %v3013 = vld [vmem:[%s3000 + $0x30] sm:$0xf]
  %v3014 = vld [vmem:[%s3000 + $0x34] sm:$0xf]
  %v3015 = vld [vmem:[%s3000 + $0x38] sm:$0xf]
  %v3016 = vld [vmem:[%s3000 + $0x3c] sm:$0xf]
  %v3017 = vld [vmem:[%s3000 + $0x40] sm:$0xf]
  %v3018 = vld [vmem:[%s3000 + $0x44] sm:$0xf]
  %v3019 = vld [vmem:[%s3000 + $0x48] sm:$0xf]
  %v3020 = vld [vmem:[%s3000 + $0x4c] sm:$0xf]
  %v3021 = vld [vmem:[%s3000 + $0x50] sm:$0xf]
  %v3022 = vld [vmem:[%s3000 + $0x54] sm:$0xf]
  %v3023 = vld [vmem:[%s3000 + $0x58] sm:$0xf]
  %v3024 = vld [vmem:[%s3000 + $0x5c] sm:$0xf]
  %v3025 = vld [vmem:[%s3000 + $0x60] sm:$0xf]
  %v3026 = vld [vmem:[%s3000 + $0x64] sm:$0xf]
  %v3027 = vld [vmem:[%s3000 + $0x68] sm:$0xf]
  %v3028 = vld [vmem:[%s3000 + $0x6c] sm:$0xf]
  %v3029 = vld [vmem:[%s3000 + $0x70] sm:$0xf]
  %v3030 = vld [vmem:[%s3000 + $0x74] sm:$0xf]
  %v3031 = vld [vmem:[%s3000 + $0x78] sm:$0xf]
  %v3032 = vld [vmem:[%s3000 + $0x7c] sm:$0xf]
  %v3033 = vpack.c.bf16 %v2363, %v2363
  %v3034 = vpack.c.bf16 %v2364, %v2364
  %v3067 = vunpack.c.l.b16 %v3001
  %v3068 = vunpack.c.l.b16 %v3002
  %v3069 = vunpack.c.l.b16 %v3003
  %v3070 = vunpack.c.l.b16 %v3004
  %v3071 = vunpack.c.l.b16 %v3005
  %v3072 = vunpack.c.l.b16 %v3006
  %v3073 = vunpack.c.l.b16 %v3007
  %v3074 = vunpack.c.l.b16 %v3008
  %v3075 = vunpack.c.l.b16 %v3009
  %v3076 = vunpack.c.l.b16 %v3010
  %v3077 = vunpack.c.l.b16 %v3011
  %v3078 = vunpack.c.l.b16 %v3012
  %v3079 = vunpack.c.l.b16 %v3013
  %v3080 = vunpack.c.l.b16 %v3014
  %v3081 = vunpack.c.l.b16 %v3015
  %v3082 = vunpack.c.l.b16 %v3016
  %v3083 = vunpack.c.l.b16 %v3017
  %v3084 = vunpack.c.l.b16 %v3018
  %v3085 = vunpack.c.l.b16 %v3019
  %v3086 = vunpack.c.l.b16 %v3020
  %v3087 = vunpack.c.l.b16 %v3021
  %v3088 = vunpack.c.l.b16 %v3022
  %v3089 = vunpack.c.l.b16 %v3023
  %v3090 = vunpack.c.l.b16 %v3024
  %v3091 = vunpack.c.l.b16 %v3025
  %v3092 = vunpack.c.l.b16 %v3026
  %v3093 = vunpack.c.l.b16 %v3027
  %v3094 = vunpack.c.l.b16 %v3028
  %v3095 = vunpack.c.l.b16 %v3029
  %v3096 = vunpack.c.l.b16 %v3030
  %v3097 = vunpack.c.l.b16 %v3031
  %v3098 = vunpack.c.l.b16 %v3032
  %v3099 = vpack.c.b16 %v3068, %v3067
  %v3100 = vpack.c.b16 %v3070, %v3069
  %v3101 = vpack.c.b16 %v3072, %v3071
  %v3102 = vpack.c.b16 %v3074, %v3073
  %v3103 = vpack.c.b16 %v3076, %v3075
  %v3104 = vpack.c.b16 %v3078, %v3077
  %v3105 = vpack.c.b16 %v3080, %v3079
  %v3106 = vpack.c.b16 %v3082, %v3081
  %v3107 = vpack.c.b16 %v3084, %v3083
  %v3108 = vpack.c.b16 %v3086, %v3085
  %v3109 = vpack.c.b16 %v3088, %v3087
  %v3110 = vpack.c.b16 %v3090, %v3089
  %v3111 = vpack.c.b16 %v3092, %v3091
  %v3112 = vpack.c.b16 %v3094, %v3093
  %v3113 = vpack.c.b16 %v3096, %v3095
  %v3114 = vpack.c.b16 %v3098, %v3097
  %3131 = vmatpush.bf16.msra.mxu0 %v3106
  %3132 = vmatpush.bf16.msra.mxu0 %v3105
  %3133 = vmatpush.bf16.msra.mxu0 %v3104
  %3134 = vmatpush.bf16.msra.mxu0 %v3103
  %3135 = vmatpush.bf16.msra.mxu0 %v3102
  %3136 = vmatpush.bf16.msra.mxu0 %v3101
  %3137 = vmatpush.bf16.msra.mxu0 %v3100
  %3138 = vmatpush.bf16.msra.mxu0 %v3099
  %3139 = vmatmul.bf16.gmra.mxu0 %v3033
  %v3140 = vpop.f32.mrf.mxu0
  %v3141 = vadd.f32 0.0, %v3140
  %v3142 = vpop.f32.mrf.mxu0
  %3143 = vdwg.mxu0
  %3144 = vmatpush.bf16.msra.mxu0 %v3114
  %3145 = vmatpush.bf16.msra.mxu0 %v3113
  %3146 = vmatpush.bf16.msra.mxu0 %v3112
  %3147 = vmatpush.bf16.msra.mxu0 %v3111
  %3148 = vmatpush.bf16.msra.mxu0 %v3110
  %3149 = vmatpush.bf16.msra.mxu0 %v3109
  %3150 = vmatpush.bf16.msra.mxu0 %v3108
  %3151 = vmatpush.bf16.msra.mxu0 %v3107
  %3152 = vmatmul.bf16.gmra.mxu0 %v3034
  %v3153 = vpop.f32.mrf.mxu0
  %v3154 = vadd.f32 %v3141, %v3153
  %v3155 = vpop.f32.mrf.mxu0
  %3156 = vdwg.mxu0
  %v3157 = vadd.f32 %v2999, %v3154
  %s3158 = scalar_lea.vmem %s9, 640
  %v3159 = vld [vmem:[%s3158] sm:$0xf]
  %v3160 = vld [vmem:[%s3158 + $0x4] sm:$0xf]
  %v3161 = vld [vmem:[%s3158 + $0x8] sm:$0xf]
  %v3162 = vld [vmem:[%s3158 + $0xc] sm:$0xf]
  %v3163 = vld [vmem:[%s3158 + $0x10] sm:$0xf]
  %v3164 = vld [vmem:[%s3158 + $0x14] sm:$0xf]
  %v3165 = vld [vmem:[%s3158 + $0x18] sm:$0xf]
  %v3166 = vld [vmem:[%s3158 + $0x1c] sm:$0xf]
  %v3167 = vld [vmem:[%s3158 + $0x20] sm:$0xf]
  %v3168 = vld [vmem:[%s3158 + $0x24] sm:$0xf]
  %v3169 = vld [vmem:[%s3158 + $0x28] sm:$0xf]
  %v3170 = vld [vmem:[%s3158 + $0x2c] sm:$0xf]
  %v3171 = vld [vmem:[%s3158 + $0x30] sm:$0xf]
  %v3172 = vld [vmem:[%s3158 + $0x34] sm:$0xf]
  %v3173 = vld [vmem:[%s3158 + $0x38] sm:$0xf]
  %v3174 = vld [vmem:[%s3158 + $0x3c] sm:$0xf]
  %v3175 = vld [vmem:[%s3158 + $0x40] sm:$0xf]
  %v3176 = vld [vmem:[%s3158 + $0x44] sm:$0xf]
  %v3177 = vld [vmem:[%s3158 + $0x48] sm:$0xf]
  %v3178 = vld [vmem:[%s3158 + $0x4c] sm:$0xf]
  %v3179 = vld [vmem:[%s3158 + $0x50] sm:$0xf]
  %v3180 = vld [vmem:[%s3158 + $0x54] sm:$0xf]
  %v3181 = vld [vmem:[%s3158 + $0x58] sm:$0xf]
  %v3182 = vld [vmem:[%s3158 + $0x5c] sm:$0xf]
  %v3183 = vld [vmem:[%s3158 + $0x60] sm:$0xf]
  %v3184 = vld [vmem:[%s3158 + $0x64] sm:$0xf]
  %v3185 = vld [vmem:[%s3158 + $0x68] sm:$0xf]
  %v3186 = vld [vmem:[%s3158 + $0x6c] sm:$0xf]
  %v3187 = vld [vmem:[%s3158 + $0x70] sm:$0xf]
  %v3188 = vld [vmem:[%s3158 + $0x74] sm:$0xf]
  %v3189 = vld [vmem:[%s3158 + $0x78] sm:$0xf]
  %v3190 = vld [vmem:[%s3158 + $0x7c] sm:$0xf]
  %v3191 = vpack.c.bf16 %v2365, %v2365
  %v3192 = vpack.c.bf16 %v2366, %v2366
  %v3225 = vunpack.c.l.b16 %v3159
  %v3226 = vunpack.c.l.b16 %v3160
  %v3227 = vunpack.c.l.b16 %v3161
  %v3228 = vunpack.c.l.b16 %v3162
  %v3229 = vunpack.c.l.b16 %v3163
  %v3230 = vunpack.c.l.b16 %v3164
  %v3231 = vunpack.c.l.b16 %v3165
  %v3232 = vunpack.c.l.b16 %v3166
  %v3233 = vunpack.c.l.b16 %v3167
  %v3234 = vunpack.c.l.b16 %v3168
  %v3235 = vunpack.c.l.b16 %v3169
  %v3236 = vunpack.c.l.b16 %v3170
  %v3237 = vunpack.c.l.b16 %v3171
  %v3238 = vunpack.c.l.b16 %v3172
  %v3239 = vunpack.c.l.b16 %v3173
  %v3240 = vunpack.c.l.b16 %v3174
  %v3241 = vunpack.c.l.b16 %v3175
  %v3242 = vunpack.c.l.b16 %v3176
  %v3243 = vunpack.c.l.b16 %v3177
  %v3244 = vunpack.c.l.b16 %v3178
  %v3245 = vunpack.c.l.b16 %v3179
  %v3246 = vunpack.c.l.b16 %v3180
  %v3247 = vunpack.c.l.b16 %v3181
  %v3248 = vunpack.c.l.b16 %v3182
  %v3249 = vunpack.c.l.b16 %v3183
  %v3250 = vunpack.c.l.b16 %v3184
  %v3251 = vunpack.c.l.b16 %v3185
  %v3252 = vunpack.c.l.b16 %v3186
  %v3253 = vunpack.c.l.b16 %v3187
  %v3254 = vunpack.c.l.b16 %v3188
  %v3255 = vunpack.c.l.b16 %v3189
  %v3256 = vunpack.c.l.b16 %v3190
  %v3257 = vpack.c.b16 %v3226, %v3225
  %v3258 = vpack.c.b16 %v3228, %v3227
  %v3259 = vpack.c.b16 %v3230, %v3229
  %v3260 = vpack.c.b16 %v3232, %v3231
  %v3261 = vpack.c.b16 %v3234, %v3233
  %v3262 = vpack.c.b16 %v3236, %v3235
  %v3263 = vpack.c.b16 %v3238, %v3237
  %v3264 = vpack.c.b16 %v3240, %v3239
  %v3265 = vpack.c.b16 %v3242, %v3241
  %v3266 = vpack.c.b16 %v3244, %v3243
  %v3267 = vpack.c.b16 %v3246, %v3245
  %v3268 = vpack.c.b16 %v3248, %v3247
  %v3269 = vpack.c.b16 %v3250, %v3249
  %v3270 = vpack.c.b16 %v3252, %v3251
  %v3271 = vpack.c.b16 %v3254, %v3253
  %v3272 = vpack.c.b16 %v3256, %v3255
  %3289 = vmatpush.bf16.msra.mxu0 %v3264
  %3290 = vmatpush.bf16.msra.mxu0 %v3263
  %3291 = vmatpush.bf16.msra.mxu0 %v3262
  %3292 = vmatpush.bf16.msra.mxu0 %v3261
  %3293 = vmatpush.bf16.msra.mxu0 %v3260
  %3294 = vmatpush.bf16.msra.mxu0 %v3259
  %3295 = vmatpush.bf16.msra.mxu0 %v3258
  %3296 = vmatpush.bf16.msra.mxu0 %v3257
  %3297 = vmatmul.bf16.gmra.mxu0 %v3191
  %v3298 = vpop.f32.mrf.mxu0
  %v3299 = vadd.f32 0.0, %v3298
  %v3300 = vpop.f32.mrf.mxu0
  %3301 = vdwg.mxu0
  %3302 = vmatpush.bf16.msra.mxu0 %v3272
  %3303 = vmatpush.bf16.msra.mxu0 %v3271
  %3304 = vmatpush.bf16.msra.mxu0 %v3270
  %3305 = vmatpush.bf16.msra.mxu0 %v3269
  %3306 = vmatpush.bf16.msra.mxu0 %v3268
  %3307 = vmatpush.bf16.msra.mxu0 %v3267
  %3308 = vmatpush.bf16.msra.mxu0 %v3266
  %3309 = vmatpush.bf16.msra.mxu0 %v3265
  %3310 = vmatmul.bf16.gmra.mxu0 %v3192
  %v3311 = vpop.f32.mrf.mxu0
  %v3312 = vadd.f32 %v3299, %v3311
  %v3313 = vpop.f32.mrf.mxu0
  %3314 = vdwg.mxu0
  %v3315 = vadd.f32 %v3157, %v3312
  %s3316 = scalar_lea.vmem %s9, 768
  %v3317 = vld [vmem:[%s3316] sm:$0xf]
  %v3318 = vld [vmem:[%s3316 + $0x4] sm:$0xf]
  %v3319 = vld [vmem:[%s3316 + $0x8] sm:$0xf]
  %v3320 = vld [vmem:[%s3316 + $0xc] sm:$0xf]
  %v3321 = vld [vmem:[%s3316 + $0x10] sm:$0xf]
  %v3322 = vld [vmem:[%s3316 + $0x14] sm:$0xf]
  %v3323 = vld [vmem:[%s3316 + $0x18] sm:$0xf]
  %v3324 = vld [vmem:[%s3316 + $0x1c] sm:$0xf]
  %v3325 = vld [vmem:[%s3316 + $0x20] sm:$0xf]
  %v3326 = vld [vmem:[%s3316 + $0x24] sm:$0xf]
  %v3327 = vld [vmem:[%s3316 + $0x28] sm:$0xf]
  %v3328 = vld [vmem:[%s3316 + $0x2c] sm:$0xf]
  %v3329 = vld [vmem:[%s3316 + $0x30] sm:$0xf]
  %v3330 = vld [vmem:[%s3316 + $0x34] sm:$0xf]
  %v3331 = vld [vmem:[%s3316 + $0x38] sm:$0xf]
  %v3332 = vld [vmem:[%s3316 + $0x3c] sm:$0xf]
  %v3333 = vld [vmem:[%s3316 + $0x40] sm:$0xf]
  %v3334 = vld [vmem:[%s3316 + $0x44] sm:$0xf]
  %v3335 = vld [vmem:[%s3316 + $0x48] sm:$0xf]
  %v3336 = vld [vmem:[%s3316 + $0x4c] sm:$0xf]
  %v3337 = vld [vmem:[%s3316 + $0x50] sm:$0xf]
  %v3338 = vld [vmem:[%s3316 + $0x54] sm:$0xf]
  %v3339 = vld [vmem:[%s3316 + $0x58] sm:$0xf]
  %v3340 = vld [vmem:[%s3316 + $0x5c] sm:$0xf]
  %v3341 = vld [vmem:[%s3316 + $0x60] sm:$0xf]
  %v3342 = vld [vmem:[%s3316 + $0x64] sm:$0xf]
  %v3343 = vld [vmem:[%s3316 + $0x68] sm:$0xf]
  %v3344 = vld [vmem:[%s3316 + $0x6c] sm:$0xf]
  %v3345 = vld [vmem:[%s3316 + $0x70] sm:$0xf]
  %v3346 = vld [vmem:[%s3316 + $0x74] sm:$0xf]
  %v3347 = vld [vmem:[%s3316 + $0x78] sm:$0xf]
  %v3348 = vld [vmem:[%s3316 + $0x7c] sm:$0xf]
  %v3349 = vpack.c.bf16 %v2367, %v2367
  %v3350 = vpack.c.bf16 %v2368, %v2368
  %v3383 = vunpack.c.l.b16 %v3317
  %v3384 = vunpack.c.l.b16 %v3318
  %v3385 = vunpack.c.l.b16 %v3319
  %v3386 = vunpack.c.l.b16 %v3320
  %v3387 = vunpack.c.l.b16 %v3321
  %v3388 = vunpack.c.l.b16 %v3322
  %v3389 = vunpack.c.l.b16 %v3323
  %v3390 = vunpack.c.l.b16 %v3324
  %v3391 = vunpack.c.l.b16 %v3325
  %v3392 = vunpack.c.l.b16 %v3326
  %v3393 = vunpack.c.l.b16 %v3327
  %v3394 = vunpack.c.l.b16 %v3328
  %v3395 = vunpack.c.l.b16 %v3329
  %v3396 = vunpack.c.l.b16 %v3330
  %v3397 = vunpack.c.l.b16 %v3331
  %v3398 = vunpack.c.l.b16 %v3332
  %v3399 = vunpack.c.l.b16 %v3333
  %v3400 = vunpack.c.l.b16 %v3334
  %v3401 = vunpack.c.l.b16 %v3335
  %v3402 = vunpack.c.l.b16 %v3336
  %v3403 = vunpack.c.l.b16 %v3337
  %v3404 = vunpack.c.l.b16 %v3338
  %v3405 = vunpack.c.l.b16 %v3339
  %v3406 = vunpack.c.l.b16 %v3340
  %v3407 = vunpack.c.l.b16 %v3341
  %v3408 = vunpack.c.l.b16 %v3342
  %v3409 = vunpack.c.l.b16 %v3343
  %v3410 = vunpack.c.l.b16 %v3344
  %v3411 = vunpack.c.l.b16 %v3345
  %v3412 = vunpack.c.l.b16 %v3346
  %v3413 = vunpack.c.l.b16 %v3347
  %v3414 = vunpack.c.l.b16 %v3348
  %v3415 = vpack.c.b16 %v3384, %v3383
  %v3416 = vpack.c.b16 %v3386, %v3385
  %v3417 = vpack.c.b16 %v3388, %v3387
  %v3418 = vpack.c.b16 %v3390, %v3389
  %v3419 = vpack.c.b16 %v3392, %v3391
  %v3420 = vpack.c.b16 %v3394, %v3393
  %v3421 = vpack.c.b16 %v3396, %v3395
  %v3422 = vpack.c.b16 %v3398, %v3397
  %v3423 = vpack.c.b16 %v3400, %v3399
  %v3424 = vpack.c.b16 %v3402, %v3401
  %v3425 = vpack.c.b16 %v3404, %v3403
  %v3426 = vpack.c.b16 %v3406, %v3405
  %v3427 = vpack.c.b16 %v3408, %v3407
  %v3428 = vpack.c.b16 %v3410, %v3409
  %v3429 = vpack.c.b16 %v3412, %v3411
  %v3430 = vpack.c.b16 %v3414, %v3413
  %3447 = vmatpush.bf16.msra.mxu0 %v3422
  %3448 = vmatpush.bf16.msra.mxu0 %v3421
  %3449 = vmatpush.bf16.msra.mxu0 %v3420
  %3450 = vmatpush.bf16.msra.mxu0 %v3419
  %3451 = vmatpush.bf16.msra.mxu0 %v3418
  %3452 = vmatpush.bf16.msra.mxu0 %v3417
  %3453 = vmatpush.bf16.msra.mxu0 %v3416
  %3454 = vmatpush.bf16.msra.mxu0 %v3415
  %3455 = vmatmul.bf16.gmra.mxu0 %v3349
  %v3456 = vpop.f32.mrf.mxu0
  %v3457 = vadd.f32 0.0, %v3456
  %v3458 = vpop.f32.mrf.mxu0
  %3459 = vdwg.mxu0
  %3460 = vmatpush.bf16.msra.mxu0 %v3430
  %3461 = vmatpush.bf16.msra.mxu0 %v3429
  %3462 = vmatpush.bf16.msra.mxu0 %v3428
  %3463 = vmatpush.bf16.msra.mxu0 %v3427
  %3464 = vmatpush.bf16.msra.mxu0 %v3426
  %3465 = vmatpush.bf16.msra.mxu0 %v3425
  %3466 = vmatpush.bf16.msra.mxu0 %v3424
  %3467 = vmatpush.bf16.msra.mxu0 %v3423
  %3468 = vmatmul.bf16.gmra.mxu0 %v3350
  %v3469 = vpop.f32.mrf.mxu0
  %v3470 = vadd.f32 %v3457, %v3469
  %v3471 = vpop.f32.mrf.mxu0
  %3472 = vdwg.mxu0
  %v3473 = vadd.f32 %v3315, %v3470
  %s3474 = scalar_lea.vmem %s9, 896
  %v3475 = vld [vmem:[%s3474] sm:$0xf]
  %v3476 = vld [vmem:[%s3474 + $0x4] sm:$0xf]
  %v3477 = vld [vmem:[%s3474 + $0x8] sm:$0xf]
  %v3478 = vld [vmem:[%s3474 + $0xc] sm:$0xf]
  %v3479 = vld [vmem:[%s3474 + $0x10] sm:$0xf]
  %v3480 = vld [vmem:[%s3474 + $0x14] sm:$0xf]
  %v3481 = vld [vmem:[%s3474 + $0x18] sm:$0xf]
  %v3482 = vld [vmem:[%s3474 + $0x1c] sm:$0xf]
  %v3483 = vld [vmem:[%s3474 + $0x20] sm:$0xf]
  %v3484 = vld [vmem:[%s3474 + $0x24] sm:$0xf]
  %v3485 = vld [vmem:[%s3474 + $0x28] sm:$0xf]
  %v3486 = vld [vmem:[%s3474 + $0x2c] sm:$0xf]
  %v3487 = vld [vmem:[%s3474 + $0x30] sm:$0xf]
  %v3488 = vld [vmem:[%s3474 + $0x34] sm:$0xf]
  %v3489 = vld [vmem:[%s3474 + $0x38] sm:$0xf]
  %v3490 = vld [vmem:[%s3474 + $0x3c] sm:$0xf]
  %v3491 = vld [vmem:[%s3474 + $0x40] sm:$0xf]
  %v3492 = vld [vmem:[%s3474 + $0x44] sm:$0xf]
  %v3493 = vld [vmem:[%s3474 + $0x48] sm:$0xf]
  %v3494 = vld [vmem:[%s3474 + $0x4c] sm:$0xf]
  %v3495 = vld [vmem:[%s3474 + $0x50] sm:$0xf]
  %v3496 = vld [vmem:[%s3474 + $0x54] sm:$0xf]
  %v3497 = vld [vmem:[%s3474 + $0x58] sm:$0xf]
  %v3498 = vld [vmem:[%s3474 + $0x5c] sm:$0xf]
  %v3499 = vld [vmem:[%s3474 + $0x60] sm:$0xf]
  %v3500 = vld [vmem:[%s3474 + $0x64] sm:$0xf]
  %v3501 = vld [vmem:[%s3474 + $0x68] sm:$0xf]
  %v3502 = vld [vmem:[%s3474 + $0x6c] sm:$0xf]
  %v3503 = vld [vmem:[%s3474 + $0x70] sm:$0xf]
  %v3504 = vld [vmem:[%s3474 + $0x74] sm:$0xf]
  %v3505 = vld [vmem:[%s3474 + $0x78] sm:$0xf]
  %v3506 = vld [vmem:[%s3474 + $0x7c] sm:$0xf]
  %v3507 = vpack.c.bf16 %v2369, %v2369
  %v3508 = vpack.c.bf16 %v2370, %v2370
  %v3541 = vunpack.c.l.b16 %v3475
  %v3542 = vunpack.c.l.b16 %v3476
  %v3543 = vunpack.c.l.b16 %v3477
  %v3544 = vunpack.c.l.b16 %v3478
  %v3545 = vunpack.c.l.b16 %v3479
  %v3546 = vunpack.c.l.b16 %v3480
  %v3547 = vunpack.c.l.b16 %v3481
  %v3548 = vunpack.c.l.b16 %v3482
  %v3549 = vunpack.c.l.b16 %v3483
  %v3550 = vunpack.c.l.b16 %v3484
  %v3551 = vunpack.c.l.b16 %v3485
  %v3552 = vunpack.c.l.b16 %v3486
  %v3553 = vunpack.c.l.b16 %v3487
  %v3554 = vunpack.c.l.b16 %v3488
  %v3555 = vunpack.c.l.b16 %v3489
  %v3556 = vunpack.c.l.b16 %v3490
  %v3557 = vunpack.c.l.b16 %v3491
  %v3558 = vunpack.c.l.b16 %v3492
  %v3559 = vunpack.c.l.b16 %v3493
  %v3560 = vunpack.c.l.b16 %v3494
  %v3561 = vunpack.c.l.b16 %v3495
  %v3562 = vunpack.c.l.b16 %v3496
  %v3563 = vunpack.c.l.b16 %v3497
  %v3564 = vunpack.c.l.b16 %v3498
  %v3565 = vunpack.c.l.b16 %v3499
  %v3566 = vunpack.c.l.b16 %v3500
  %v3567 = vunpack.c.l.b16 %v3501
  %v3568 = vunpack.c.l.b16 %v3502
  %v3569 = vunpack.c.l.b16 %v3503
  %v3570 = vunpack.c.l.b16 %v3504
  %v3571 = vunpack.c.l.b16 %v3505
  %v3572 = vunpack.c.l.b16 %v3506
  %v3573 = vpack.c.b16 %v3542, %v3541
  %v3574 = vpack.c.b16 %v3544, %v3543
  %v3575 = vpack.c.b16 %v3546, %v3545
  %v3576 = vpack.c.b16 %v3548, %v3547
  %v3577 = vpack.c.b16 %v3550, %v3549
  %v3578 = vpack.c.b16 %v3552, %v3551
  %v3579 = vpack.c.b16 %v3554, %v3553
  %v3580 = vpack.c.b16 %v3556, %v3555
  %v3581 = vpack.c.b16 %v3558, %v3557
  %v3582 = vpack.c.b16 %v3560, %v3559
  %v3583 = vpack.c.b16 %v3562, %v3561
  %v3584 = vpack.c.b16 %v3564, %v3563
  %v3585 = vpack.c.b16 %v3566, %v3565
  %v3586 = vpack.c.b16 %v3568, %v3567
  %v3587 = vpack.c.b16 %v3570, %v3569
  %v3588 = vpack.c.b16 %v3572, %v3571
  %3605 = vmatpush.bf16.msra.mxu0 %v3580
  %3606 = vmatpush.bf16.msra.mxu0 %v3579
  %3607 = vmatpush.bf16.msra.mxu0 %v3578
  %3608 = vmatpush.bf16.msra.mxu0 %v3577
  %3609 = vmatpush.bf16.msra.mxu0 %v3576
  %3610 = vmatpush.bf16.msra.mxu0 %v3575
  %3611 = vmatpush.bf16.msra.mxu0 %v3574
  %3612 = vmatpush.bf16.msra.mxu0 %v3573
  %3613 = vmatmul.bf16.gmra.mxu0 %v3507
  %v3614 = vpop.f32.mrf.mxu0
  %v3615 = vadd.f32 0.0, %v3614
  %v3616 = vpop.f32.mrf.mxu0
  %3617 = vdwg.mxu0
  %3618 = vmatpush.bf16.msra.mxu0 %v3588
  %3619 = vmatpush.bf16.msra.mxu0 %v3587
  %3620 = vmatpush.bf16.msra.mxu0 %v3586
  %3621 = vmatpush.bf16.msra.mxu0 %v3585
  %3622 = vmatpush.bf16.msra.mxu0 %v3584
  %3623 = vmatpush.bf16.msra.mxu0 %v3583
  %3624 = vmatpush.bf16.msra.mxu0 %v3582
  %3625 = vmatpush.bf16.msra.mxu0 %v3581
  %3626 = vmatmul.bf16.gmra.mxu0 %v3508
  %v3627 = vpop.f32.mrf.mxu0
  %v3628 = vadd.f32 %v3615, %v3627
  %v3629 = vpop.f32.mrf.mxu0
  %3630 = vdwg.mxu0
  %v3631 = vadd.f32 %v3473, %v3628
  %v3632 = vld [vmem:[%s10] sm:$0x1]
  %v3634 = vperm.slane %v3632, 0
  %v3636 = vadd.f32 %v3631, %v3634
  %v3637 = vtanh.pop %v3636
  %v3638 = vld [vmem:[%s11] sm:$0xff]
  %v3639 = vld [vmem:[%s11 + $0x8] sm:$0xff]
  %v3640 = vld [vmem:[%s11 + $0x10] sm:$0xff]
  %v3641 = vld [vmem:[%s11 + $0x18] sm:$0xff]
  %v3642 = vld [vmem:[%s11 + $0x20] sm:$0xff]
  %v3643 = vld [vmem:[%s11 + $0x28] sm:$0xff]
  %v3644 = vld [vmem:[%s11 + $0x30] sm:$0xff]
  %v3645 = vld [vmem:[%s11 + $0x38] sm:$0xff]
  %v3646 = vld [vmem:[%s12] sm:$0x1]
  %v3648 = vperm.slane %v3646, 0
  %v3651 = vsel %vm1077, %v3637, 0
  %3653 = vmatpush.msra.mxu0 0.0
  %3654 = vmatpush.msra.mxu0 0.0
  %3655 = vmatpush.msra.mxu0 0.0
  %3656 = vmatpush.msra.mxu0 0.0
  %3657 = vmatpush.msra.mxu0 0.0
  %3658 = vmatpush.msra.mxu0 0.0
  %3659 = vmatpush.msra.mxu0 0.0
  %3660 = vmatpush.msra.mxu0 0.0
  %3661 = vmatpush.msra.mxu0 %v3645
  %3662 = vmatpush.msra.mxu0 %v3644
  %3663 = vmatpush.msra.mxu0 %v3643
  %3664 = vmatpush.msra.mxu0 %v3642
  %3665 = vmatpush.msra.mxu0 %v3641
  %3666 = vmatpush.msra.mxu0 %v3640
  %3667 = vmatpush.msra.mxu0 %v3639
  %3668 = vmatpush.msra.mxu0 %v3638
  %3669 = vmatmul.f32.gmra.mxu0 %v3651
  %v3670 = vpop.f32.mrf.mxu0
  %v3671 = vadd.f32 %v3648, %v3670
  %3672 = vdwg.mxu0
  %v3673 = vtanh.pop %v3671
  %v3674 = vld [vmem:[%s13] sm:$0xff]
  %v3675 = vld [vmem:[%s13 + $0x8] sm:$0xff]
  %v3676 = vld [vmem:[%s13 + $0x10] sm:$0xff]
  %v3677 = vld [vmem:[%s13 + $0x18] sm:$0xff]
  %v3678 = vld [vmem:[%s14] sm:$0x1]
  %v3680 = vperm.slane %v3678, 0
  %vm3682 = vcmask 261120
  %v3684 = vsel %vm3682, %v3673, 0
  %3686 = vmatpush.msra.mxu0 0.0
  %3687 = vmatpush.msra.mxu0 0.0
  %3688 = vmatpush.msra.mxu0 0.0
  %3689 = vmatpush.msra.mxu0 0.0
  %3690 = vmatpush.msra.mxu0 0.0
  %3691 = vmatpush.msra.mxu0 0.0
  %3692 = vmatpush.msra.mxu0 0.0
  %3693 = vmatpush.msra.mxu0 0.0
  %3694 = vmatpush.msra.mxu0 0.0
  %3695 = vmatpush.msra.mxu0 0.0
  %3696 = vmatpush.msra.mxu0 0.0
  %3697 = vmatpush.msra.mxu0 0.0
  %3698 = vmatpush.msra.mxu0 %v3677
  %3699 = vmatpush.msra.mxu0 %v3676
  %3700 = vmatpush.msra.mxu0 %v3675
  %3701 = vmatpush.msra.mxu0 %v3674
  %3702 = vmatmul.f32.gmra.mxu0 %v3684
  %v3703 = vpop.f32.mrf.mxu0
  %v3704 = vadd.f32 %v3680, %v3703
  %3705 = vdwg.mxu0
  %v3706 = vmax.f32 %v3704, 0.0
  %v3707 = vld [vmem:[%s15] sm:$0xff]
  %v3708 = vld [vmem:[%s15 + $0x8] sm:$0xff]
  %v3709 = vld [vmem:[%s16] sm:$0x1]
  %v3711 = vperm.slane %v3709, 0
  %vm3713 = vcmask 130048
  %v3715 = vsel %vm3713, %v3706, 0
  %3717 = vmatpush.msra.mxu0 0.0
  %3718 = vmatpush.msra.mxu0 0.0
  %3719 = vmatpush.msra.mxu0 0.0
  %3720 = vmatpush.msra.mxu0 0.0
  %3721 = vmatpush.msra.mxu0 0.0
  %3722 = vmatpush.msra.mxu0 0.0
  %3723 = vmatpush.msra.mxu0 0.0
  %3724 = vmatpush.msra.mxu0 0.0
  %3725 = vmatpush.msra.mxu0 0.0
  %3726 = vmatpush.msra.mxu0 0.0
  %3727 = vmatpush.msra.mxu0 0.0
  %3728 = vmatpush.msra.mxu0 0.0
  %3729 = vmatpush.msra.mxu0 0.0
  %3730 = vmatpush.msra.mxu0 0.0
  %3731 = vmatpush.msra.mxu0 %v3708
  %3732 = vmatpush.msra.mxu0 %v3707
  %3733 = vmatmul.f32.gmra.mxu0 %v3715
  %v3734 = vpop.f32.mrf.mxu0
  %v3735 = vadd.f32 %v3711, %v3734
  %3736 = vdwg.mxu0
  %3737 = vst [vmem:[%s17] sm:$0xff] %v3735
  // Predicated region
  $region70: #{cnn1d_forward.1} parent=0 // pred_check
    _
  $region71: #{cnn1d_forward.1} parent=0 // pred_check_branch
    %3739 = sbr.rel (0) target = $region73
  $region72: #{cnn1d_forward.1} parent=0 // pred_region
    _
  $region73: #{cnn1d_forward.1} parent=0 // pred_fallthru
    _
  // Predicated region
  $region74: #{cnn1d_forward.1} parent=0 // pred_check
    _
  $region75: #{cnn1d_forward.1} parent=0 // pred_check_branch
    %3741 = sbr.rel (0) target = $region77
  $region76: #{cnn1d_forward.1} parent=0 // pred_region
    _
  $region77: #{cnn1d_forward.1} parent=0 // pred_fallthru
    _

</llo_original>
